<compile_context>
chip_gen: v6e
topology: v6e:2x2x1
jax: 0.10.0
libtpu: 0.0.40
codegen_flags: <defaults>
</compile_context>

<pallas_src>
import functools

import numpy as np
import jax
import jax.numpy as jnp
from jax.experimental import pallas as pl
from jax.experimental.pallas import tpu as pltpu

TEMPERATURE = 0.1
HIDDEN = 1024            # hardcoded in the reference module's nn.Sequential
E_PAD = 128              # expert (lane) dim padded to a full vreg lane width


# ----------------------------- Pallas kernel ---------------------------------
def _router_kernel(x_ref, y_ref,
                   w1r_ref, b1r_ref, w2r_ref, b2r_ref,
                   w1g_ref, b1g_ref, w2g_ref, b2g_ref,
                   r_ref,
                   probs_ref, *, num_experts):
    x = x_ref[...]        # (TM, input_dim) bf16
    y = y_ref[...]

    # proj_rel: Linear(input_dim,1024) -> ReLU -> Dropout(identity, eval) ->
    #           Linear(1024,d_rel) -> ReLU      (bf16 MXU matmuls, f32 accumulate)
    h_r = jnp.dot(x, w1r_ref[...], preferred_element_type=jnp.float32) + b1r_ref[...]
    h_r = jnp.maximum(h_r, 0.0).astype(jnp.bfloat16)
    q_r = jnp.dot(h_r, w2r_ref[...], preferred_element_type=jnp.float32) + b2r_ref[...]
    q_r = jnp.maximum(q_r, 0.0)

    # proj_graph: same structure on y
    h_g = jnp.dot(y, w1g_ref[...], preferred_element_type=jnp.float32) + b1g_ref[...]
    h_g = jnp.maximum(h_g, 0.0).astype(jnp.bfloat16)
    q_g = jnp.dot(h_g, w2g_ref[...], preferred_element_type=jnp.float32) + b2g_ref[...]
    q_g = jnp.maximum(q_g, 0.0)

    # scores = concat([q_r, q_g], -1) @ routing_embeds.T / temperature
    # (1/temperature already folded into r_ref; expert axis padded to E_PAD lanes)
    q = jnp.concatenate([q_r, q_g], axis=-1)
    scores = jnp.dot(q, r_ref[...], preferred_element_type=jnp.float32)

    # mask padded expert lanes so they carry no probability mass
    lane = jax.lax.broadcasted_iota(jnp.int32, scores.shape, 1)
    scores = jnp.where(lane < num_experts, scores, -1e30)

    # softmax over experts (f32), reciprocal on the EUP
    m = jnp.max(scores, axis=-1, keepdims=True)
    e = jnp.exp(scores - m)
    inv = pl.reciprocal(jnp.sum(e, axis=-1, keepdims=True), approx=True)
    probs_ref[...] = e * inv


def routing_probs(x, y, p, num_experts):
    """Fused routing kernel; returns softmax probs [N, num_experts] (f32)."""
    n, input_dim = x.shape
    hidden = p["w1r"].shape[1]
    d_rel = p["w2r"].shape[1]
    d_graph = p["w2g"].shape[1]

    # Batch tile: 256 rows (MXU-friendly on v6e/v7x, multiple of 128 for v5e)
    # for large N; for tiny N just round up to the 8-sublane granule.
    tm = 256 if n >= 256 else max(8, -(-n // 8) * 8)
    n_pad = -(-n // tm) * tm

    xb = jnp.pad(x.astype(jnp.bfloat16), ((0, n_pad - n), (0, 0)))
    yb = jnp.pad(y.astype(jnp.bfloat16), ((0, n_pad - n), (0, 0)))

    row_spec = pl.BlockSpec((tm, input_dim), lambda i: (i, 0))

    def const(shape):
        # Weight blocks never change across the grid -> resident in VMEM.
        return pl.BlockSpec(shape, lambda i: (0, 0))

    probs_pad = pl.pallas_call(
        functools.partial(_router_kernel, num_experts=num_experts),
        out_shape=jax.ShapeDtypeStruct((n_pad, E_PAD), jnp.float32),
        grid=(pl.cdiv(n_pad, tm),),
        in_specs=[
            row_spec, row_spec,                                   # x, y tiles
            const((input_dim, hidden)), const((1, hidden)),       # w1r, b1r
            const((hidden, d_rel)),     const((1, d_rel)),        # w2r, b2r
            const((input_dim, hidden)), const((1, hidden)),       # w1g, b1g
            const((hidden, d_graph)),   const((1, d_graph)),      # w2g, b2g
            const((d_rel + d_graph, E_PAD)),                      # routing embeds
        ],
        out_specs=pl.BlockSpec((tm, E_PAD), lambda i: (i, 0)),
        compiler_params=pltpu.CompilerParams(
            dimension_semantics=("parallel",),
            vmem_limit_bytes=48 * 1024 * 1024,
        ),
    )(xb, yb,
      p["w1r"], p["b1r"], p["w2r"], p["b2r"],
      p["w1g"], p["b1g"], p["w2g"], p["b2g"],
      p["r_pad"])

    return probs_pad[:n, :num_experts]


# ----------------------------- Module wrapper ---------------------------------
class UniformMoERouter3Tucker:
    def __init__(self, input_dim=2048, num_experts=3, balance_weight=0.1,
                 d_rel=512, d_graph=512, key=None):
        self.num_experts = num_experts
        self.balance_weight = balance_weight
        self.d_r = d_rel + d_graph
        self.temperature = TEMPERATURE

        key = jax.random.PRNGKey(0) if key is None else key
        ks = jax.random.split(key, 9)

        def kaiming(k, fan_in, shape):
            return (jnp.sqrt(2.0 / fan_in) *
                    jax.random.normal(k, shape, dtype=jnp.float32))

        # proj_rel / proj_graph weights, stored [in, out] in bf16; biases f32 [1, out]
        self.params = {
            "w1r": kaiming(ks[0], input_dim, (input_dim, HIDDEN)).astype(jnp.bfloat16),
            "b1r": jnp.zeros((1, HIDDEN), jnp.float32),
            "w2r": kaiming(ks[1], HIDDEN, (HIDDEN, d_rel)).astype(jnp.bfloat16),
            "b2r": jnp.zeros((1, d_rel), jnp.float32),
            "w1g": kaiming(ks[2], input_dim, (input_dim, HIDDEN)).astype(jnp.bfloat16),
            "b1g": jnp.zeros((1, HIDDEN), jnp.float32),
            "w2g": kaiming(ks[3], HIDDEN, (HIDDEN, d_graph)).astype(jnp.bfloat16),
            "b2g": jnp.zeros((1, d_graph), jnp.float32),
        }

        # routing_embeds: [num_experts, d_r] with (semi-)orthogonal rows.
        # Stored pre-transposed [d_r, E], pre-scaled by 1/temperature, and
        # lane-padded to E_PAD columns for a single lane-dense routing matmul.
        a = jax.random.normal(ks[4], (self.d_r, num_experts), dtype=jnp.float32)
        q_mat, _ = jnp.linalg.qr(a)                     # [d_r, E], orthonormal cols
        r_scaled = q_mat / TEMPERATURE                  # fold 1/temperature
        r_pad = jnp.zeros((self.d_r, E_PAD), jnp.float32)
        self.params["r_pad"] = r_pad.at[:, :num_experts].set(r_scaled)

        # expert_emb / relation_embeddings / core_tensor are declared in the
        # reference __init__ but never used in forward(); not materialized here.
        # TODO(synk): materialize expert_emb / relation_embeddings / core_tensor
        # if a downstream Tucker-decomposition path ever consumes them.

    # ---- host-side capacity-balanced allocation (mirrors the torch Python loop)
    @staticmethod
    def _balanced_allocation(probs_np, num_experts):
        n = probs_np.shape[0]
        min_per_expert = (n + 4) // 5
        remaining = n - min_per_expert * num_experts
        while remaining < 0 and min_per_expert > 0:
            min_per_expert -= 1
            remaining = n - min_per_expert * num_experts

        expert_choice = probs_np.argmax(axis=1)
        allocation_pool = [[] for _ in range(num_experts)]
        for idx, expert in enumerate(expert_choice):
            allocation_pool[int(expert)].append(idx)

        # Rebalance under-full experts by stealing low-confidence overflow items.
        for expert in range(num_experts):
            current = len(allocation_pool[expert])
            if current >= min_per_expert:
                continue
            need = min_per_expert - current
            candidates = []
            for other_expert in range(num_experts):
                if other_expert == expert:
                    continue
                if len(allocation_pool[other_expert]) > min_per_expert:
                    overflow = len(allocation_pool[other_expert]) - min_per_expert
                    pool = allocation_pool[other_expert]
                    other_probs = probs_np[pool, other_expert]
                    sorted_indices = np.argsort(other_probs)[:overflow]
                    candidates.extend([(pool[i], other_expert) for i in sorted_indices])
            candidate_scores = [probs_np[idx, expert] for idx, _ in candidates]
            sorted_candidates = sorted(zip(candidates, candidate_scores),
                                       key=lambda t: t[1], reverse=True)
            for (idx, src_expert), _ in sorted_candidates[:need]:
                allocation_pool[src_expert].remove(idx)
                allocation_pool[expert].append(idx)
                need -= 1
                if need == 0:
                    break

        capacities = [len(pool) - min_per_expert for pool in allocation_pool]
        remaining_indices = []
        for expert in range(num_experts):
            if len(allocation_pool[expert]) > min_per_expert:
                keep = allocation_pool[expert][:min_per_expert]
                rem = allocation_pool[expert][min_per_expert:]
                allocation_pool[expert] = keep
                remaining_indices.extend(rem)
        for idx in remaining_indices:
            valid_experts = [e for e in range(num_experts)
                             if len(allocation_pool[e]) < min_per_expert + capacities[e]]
            if not valid_experts:
                valid_experts = list(range(num_experts))
            scs = [(e, probs_np[idx, e]) for e in valid_experts]
            chosen_expert = max(scs, key=lambda t: t[1])[0]
            allocation_pool[chosen_expert].append(idx)
        return allocation_pool

    def forward(self, x, y):
        n = x.shape[0]
        num_experts = self.num_experts

        # Hot path: fused MLP projections + routing matmul + softmax (Pallas).
        probs = routing_probs(x, y, self.params, num_experts)
        probs_np = np.asarray(jax.device_get(probs))

        # Sequential, data-dependent capacity balancing (host, as in reference).
        allocation_pool = self._balanced_allocation(probs_np, num_experts)

        expert_indices = []
        expert_data = []
        total_allocated = 0
        for i in range(num_experts):
            idx = jnp.asarray(np.array(allocation_pool[i], dtype=np.int32))
            expert_indices.append(idx)
            expert_data.append(x[idx])
            total_allocated += len(allocation_pool[i])
        assert total_allocated == n, f"allocation mismatch: {total_allocated}/{n}"
        all_idx = np.concatenate([np.array(p, dtype=np.int64) for p in allocation_pool])
        assert np.all(np.bincount(all_idx, minlength=n) == 1), "duplicate allocation"

        # Distribution loss: counts weighted by mean gate score per expert.
        counts = jnp.array([len(pool) for pool in allocation_pool], dtype=jnp.float32)
        mgs = []
        for i in range(num_experts):
            pool = allocation_pool[i]
            if pool:
                mgs.append(probs[np.array(pool, dtype=np.int32), i].mean())
            else:
                mgs.append(jnp.float32(0.0))
        mean_gate_scores = jnp.stack(mgs)
        distribution_loss = (counts * mean_gate_scores).sum() / num_experts

        # Importance loss: CV of per-expert total routing weight, clamped at 0.1.
        expert_importance = probs.sum(axis=0)
        cv = jnp.std(expert_importance, ddof=1) / (expert_importance.mean() + 1e-6)
        importance_loss = jnp.maximum(cv, 0.1)

        loss = distribution_loss + importance_loss
        return expert_data, loss, expert_indices


# ----------------------------------- main -------------------------------------
if __name__ == "__main__":
    # Small shapes consistent with the module (input_dim, d_rel, d_graph scaled down;
    # the 1024-wide hidden layer is hardcoded in the reference and kept).
    N, INPUT_DIM, D_REL, D_GRAPH, NUM_EXPERTS = 16, 256, 128, 128, 3

    key = jax.random.PRNGKey(0)
    kx, ky = jax.random.split(key)
    x = jax.random.normal(kx, (N, INPUT_DIM), dtype=jnp.float32)
    y = jax.random.normal(ky, (N, INPUT_DIM), dtype=jnp.float32)

    router = UniformMoERouter3Tucker(input_dim=INPUT_DIM, num_experts=NUM_EXPERTS,
                                     d_rel=D_REL, d_graph=D_GRAPH,
                                     key=jax.random.PRNGKey(42))

    expert_data, loss, expert_indices = router.forward(x, y)
    loss = jax.block_until_ready(loss)
    for ed in expert_data:
        jax.block_until_ready(ed)

    # sanity: every sample assigned exactly once, data shapes match gathers,
    # routing probs are a valid (finite, normalized) distribution
    gathered = sum(int(ed.shape[0]) for ed in expert_data)
    assert gathered == N
    assert all(ed.shape[1] == INPUT_DIM for ed in expert_data)
    assert np.isfinite(float(loss))
    probs_chk = np.asarray(routing_probs(x, y, router.params, NUM_EXPERTS))
    assert probs_chk.shape == (N, NUM_EXPERTS)
    assert np.all(np.isfinite(probs_chk))
    assert np.allclose(probs_chk.sum(axis=1), 1.0, atol=2e-2)

    print("KERNEL_OK")
</pallas_src>

<mosaic_0001>
module attributes {stable_mosaic.version = 11 : i64} {
  func.func @_router_kernel(%arg0: i32, %arg1: memref<16x256xbf16, #tpu.memory_space<vmem>>, %arg2: memref<16x256xbf16, #tpu.memory_space<vmem>>, %arg3: memref<256x1024xbf16, #tpu.memory_space<vmem>>, %arg4: memref<1x1024xf32, #tpu.memory_space<vmem>>, %arg5: memref<1024x128xbf16, #tpu.memory_space<vmem>>, %arg6: memref<1x128xf32, #tpu.memory_space<vmem>>, %arg7: memref<256x1024xbf16, #tpu.memory_space<vmem>>, %arg8: memref<1x1024xf32, #tpu.memory_space<vmem>>, %arg9: memref<1024x128xbf16, #tpu.memory_space<vmem>>, %arg10: memref<1x128xf32, #tpu.memory_space<vmem>>, %arg11: memref<256x128xf32, #tpu.memory_space<vmem>>, %arg12: memref<16x128xf32, #tpu.memory_space<vmem>>) attributes {dimension_semantics = [#tpu.dimension_semantics<parallel>], iteration_bounds = array<i64: 1>, scalar_prefetch = 0 : i64, scratch_operands = 0 : i64, tpu.core_type = #tpu.core_type<tc>, window_params = [{transform_indices = @transform_0, window_bounds = array<i64: 16, 256>}, {transform_indices = @transform_1, window_bounds = array<i64: 16, 256>}, {pipeline_mode = #tpu.pipeline_mode<synchronous>, transform_indices = @transform_2, window_bounds = array<i64: 256, 1024>}, {pipeline_mode = #tpu.pipeline_mode<synchronous>, transform_indices = @transform_3, window_bounds = array<i64: 1, 1024>}, {pipeline_mode = #tpu.pipeline_mode<synchronous>, transform_indices = @transform_4, window_bounds = array<i64: 1024, 128>}, {pipeline_mode = #tpu.pipeline_mode<synchronous>, transform_indices = @transform_5, window_bounds = array<i64: 1, 128>}, {pipeline_mode = #tpu.pipeline_mode<synchronous>, transform_indices = @transform_6, window_bounds = array<i64: 256, 1024>}, {pipeline_mode = #tpu.pipeline_mode<synchronous>, transform_indices = @transform_7, window_bounds = array<i64: 1, 1024>}, {pipeline_mode = #tpu.pipeline_mode<synchronous>, transform_indices = @transform_8, window_bounds = array<i64: 1024, 128>}, {pipeline_mode = #tpu.pipeline_mode<synchronous>, transform_indices = @transform_9, window_bounds = array<i64: 1, 128>}, {pipeline_mode = #tpu.pipeline_mode<synchronous>, transform_indices = @transform_10, window_bounds = array<i64: 256, 128>}, {transform_indices = @transform_11, window_bounds = array<i64: 16, 128>}]} {
    %c0 = arith.constant 0 : index
    %c0_0 = arith.constant 0 : index
    %0 = vector.load %arg1[%c0, %c0_0] : memref<16x256xbf16, #tpu.memory_space<vmem>>, vector<16x256xbf16>
    %c0_1 = arith.constant 0 : index
    %c0_2 = arith.constant 0 : index
    %1 = vector.load %arg2[%c0_1, %c0_2] : memref<16x256xbf16, #tpu.memory_space<vmem>>, vector<16x256xbf16>
    %c0_3 = arith.constant 0 : index
    %c0_4 = arith.constant 0 : index
    %2 = vector.load %arg3[%c0_3, %c0_4] : memref<256x1024xbf16, #tpu.memory_space<vmem>>, vector<256x1024xbf16>
    %cst = arith.constant dense<0.000000e+00> : vector<16x1024xf32>
    %3 = tpu.matmul %0, %2, %cst {dimension_numbers = #tpu.dot_dimension_numbers<[1], [0], [0], [1], [0, 0, 1, 1], [], []>} : vector<16x256xbf16>, vector<256x1024xbf16>, vector<16x1024xf32> -> vector<16x1024xf32>
    %c0_5 = arith.constant 0 : index
    %c0_6 = arith.constant 0 : index
    %4 = vector.load %arg4[%c0_5, %c0_6] : memref<1x1024xf32, #tpu.memory_space<vmem>>, vector<1x1024xf32>
    %5 = vector.broadcast %4 : vector<1x1024xf32> to vector<16x1024xf32>
    %6 = arith.addf %3, %5 : vector<16x1024xf32>
    %cst_7 = arith.constant 0.000000e+00 : f32
    %7 = vector.broadcast %cst_7 : f32 to vector<16x1024xf32>
    %8 = arith.maximumf %6, %7 : vector<16x1024xf32>
    %9 = arith.truncf %8 : vector<16x1024xf32> to vector<16x1024xbf16>
    %c0_8 = arith.constant 0 : index
    %c0_9 = arith.constant 0 : index
    %10 = vector.load %arg5[%c0_8, %c0_9] : memref<1024x128xbf16, #tpu.memory_space<vmem>>, vector<1024x128xbf16>
    %cst_10 = arith.constant dense<0.000000e+00> : vector<16x128xf32>
    %11 = tpu.matmul %9, %10, %cst_10 {dimension_numbers = #tpu.dot_dimension_numbers<[1], [0], [0], [1], [0, 0, 1, 1], [], []>} : vector<16x1024xbf16>, vector<1024x128xbf16>, vector<16x128xf32> -> vector<16x128xf32>
    %c0_11 = arith.constant 0 : index
    %c0_12 = arith.constant 0 : index
    %12 = vector.load %arg6[%c0_11, %c0_12] : memref<1x128xf32, #tpu.memory_space<vmem>>, vector<1x128xf32>
    %13 = vector.broadcast %12 : vector<1x128xf32> to vector<16x128xf32>
    %14 = arith.addf %11, %13 : vector<16x128xf32>
    %cst_13 = arith.constant 0.000000e+00 : f32
    %15 = vector.broadcast %cst_13 : f32 to vector<16x128xf32>
    %16 = arith.maximumf %14, %15 : vector<16x128xf32>
    %c0_14 = arith.constant 0 : index
    %c0_15 = arith.constant 0 : index
    %17 = vector.load %arg7[%c0_14, %c0_15] : memref<256x1024xbf16, #tpu.memory_space<vmem>>, vector<256x1024xbf16>
    %cst_16 = arith.constant dense<0.000000e+00> : vector<16x1024xf32>
    %18 = tpu.matmul %1, %17, %cst_16 {dimension_numbers = #tpu.dot_dimension_numbers<[1], [0], [0], [1], [0, 0, 1, 1], [], []>} : vector<16x256xbf16>, vector<256x1024xbf16>, vector<16x1024xf32> -> vector<16x1024xf32>
    %c0_17 = arith.constant 0 : index
    %c0_18 = arith.constant 0 : index
    %19 = vector.load %arg8[%c0_17, %c0_18] : memref<1x1024xf32, #tpu.memory_space<vmem>>, vector<1x1024xf32>
    %20 = vector.broadcast %19 : vector<1x1024xf32> to vector<16x1024xf32>
    %21 = arith.addf %18, %20 : vector<16x1024xf32>
    %cst_19 = arith.constant 0.000000e+00 : f32
    %22 = vector.broadcast %cst_19 : f32 to vector<16x1024xf32>
    %23 = arith.maximumf %21, %22 : vector<16x1024xf32>
    %24 = arith.truncf %23 : vector<16x1024xf32> to vector<16x1024xbf16>
    %c0_20 = arith.constant 0 : index
    %c0_21 = arith.constant 0 : index
    %25 = vector.load %arg9[%c0_20, %c0_21] : memref<1024x128xbf16, #tpu.memory_space<vmem>>, vector<1024x128xbf16>
    %cst_22 = arith.constant dense<0.000000e+00> : vector<16x128xf32>
    %26 = tpu.matmul %24, %25, %cst_22 {dimension_numbers = #tpu.dot_dimension_numbers<[1], [0], [0], [1], [0, 0, 1, 1], [], []>} : vector<16x1024xbf16>, vector<1024x128xbf16>, vector<16x128xf32> -> vector<16x128xf32>
    %c0_23 = arith.constant 0 : index
    %c0_24 = arith.constant 0 : index
    %27 = vector.load %arg10[%c0_23, %c0_24] : memref<1x128xf32, #tpu.memory_space<vmem>>, vector<1x128xf32>
    %28 = vector.broadcast %27 : vector<1x128xf32> to vector<16x128xf32>
    %29 = arith.addf %26, %28 : vector<16x128xf32>
    %cst_25 = arith.constant 0.000000e+00 : f32
    %30 = vector.broadcast %cst_25 : f32 to vector<16x128xf32>
    %31 = arith.maximumf %29, %30 : vector<16x128xf32>
    %32 = tpu.concatenate %16, %31 in 1 : vector<16x128xf32>, vector<16x128xf32> -> vector<16x256xf32>
    %c0_26 = arith.constant 0 : index
    %c0_27 = arith.constant 0 : index
    %33 = vector.load %arg11[%c0_26, %c0_27] : memref<256x128xf32, #tpu.memory_space<vmem>>, vector<256x128xf32>
    %cst_28 = arith.constant dense<0.000000e+00> : vector<16x128xf32>
    %34 = tpu.matmul %32, %33, %cst_28 {dimension_numbers = #tpu.dot_dimension_numbers<[1], [0], [0], [1], [0, 0, 1, 1], [], []>} : vector<16x256xf32>, vector<256x128xf32>, vector<16x128xf32> -> vector<16x128xf32>
    %35 = tpu.iota {dimensions = array<i32: 1>} : vector<16x128xi32>
    %c3_i32 = arith.constant 3 : i32
    %36 = vector.broadcast %c3_i32 : i32 to vector<16x128xi32>
    %37 = arith.cmpi slt, %35, %36 : vector<16x128xi32>
    %cst_29 = arith.constant -1.000000e+30 : f32
    %38 = vector.broadcast %cst_29 : f32 to vector<16x128xf32>
    %39 = arith.select %37, %34, %38 : vector<16x128xi1>, vector<16x128xf32>
    %cst_30 = arith.constant dense<0xFF800000> : vector<16xf32>
    %40 = vector.multi_reduction <maximumf>, %39, %cst_30 [1] : vector<16x128xf32> to vector<16xf32>
    %41 = vector.shape_cast %40 : vector<16xf32> to vector<16x1xf32>
    %42 = vector.broadcast %41 : vector<16x1xf32> to vector<16x128xf32>
    %43 = arith.subf %39, %42 : vector<16x128xf32>
    %44 = math.exp %43 : vector<16x128xf32>
    %cst_31 = arith.constant dense<0.000000e+00> : vector<16xf32>
    %45 = vector.multi_reduction <add>, %44, %cst_31 [1] : vector<16x128xf32> to vector<16xf32>
    %46 = vector.shape_cast %45 : vector<16xf32> to vector<16x1xf32>
    %47 = tpu.reciprocal %46 {approx = true} : vector<16x1xf32> -> vector<16x1xf32>
    %48 = vector.broadcast %47 : vector<16x1xf32> to vector<16x128xf32>
    %49 = arith.mulf %44, %48 : vector<16x128xf32>
    %c0_32 = arith.constant 0 : index
    %c0_33 = arith.constant 0 : index
    %50 = vector.load %arg12[%c0_32, %c0_33] : memref<16x128xf32, #tpu.memory_space<vmem>>, vector<16x128xf32>
    tpu.vector_store %arg12[%c0_32, %c0_33], %49 {strides = array<i32>} : memref<16x128xf32, #tpu.memory_space<vmem>>, vector<16x128xf32>,
    return
  }
  func.func @transform_0(%arg0: i32) -> (i32, i32) {
    %c0_i32 = arith.constant 0 : i32
    %c0_i32_0 = arith.constant 0 : i32
    return %arg0, %c0_i32 : i32, i32
  }
  func.func @transform_1(%arg0: i32) -> (i32, i32) {
    %c0_i32 = arith.constant 0 : i32
    %c0_i32_0 = arith.constant 0 : i32
    return %arg0, %c0_i32 : i32, i32
  }
  func.func @transform_2(%arg0: i32) -> (i32, i32) {
    %c0_i32 = arith.constant 0 : i32
    %c0_i32_0 = arith.constant 0 : i32
    %c0_i32_1 = arith.constant 0 : i32
    return %c0_i32, %c0_i32_0 : i32, i32
  }
  func.func @transform_3(%arg0: i32) -> (i32, i32) {
    %c0_i32 = arith.constant 0 : i32
    %c0_i32_0 = arith.constant 0 : i32
    %c0_i32_1 = arith.constant 0 : i32
    return %c0_i32, %c0_i32_0 : i32, i32
  }
  func.func @transform_4(%arg0: i32) -> (i32, i32) {
    %c0_i32 = arith.constant 0 : i32
    %c0_i32_0 = arith.constant 0 : i32
    %c0_i32_1 = arith.constant 0 : i32
    return %c0_i32, %c0_i32_0 : i32, i32
  }
  func.func @transform_5(%arg0: i32) -> (i32, i32) {
    %c0_i32 = arith.constant 0 : i32
    %c0_i32_0 = arith.constant 0 : i32
    %c0_i32_1 = arith.constant 0 : i32
    return %c0_i32, %c0_i32_0 : i32, i32
  }
  func.func @transform_6(%arg0: i32) -> (i32, i32) {
    %c0_i32 = arith.constant 0 : i32
    %c0_i32_0 = arith.constant 0 : i32
    %c0_i32_1 = arith.constant 0 : i32
    return %c0_i32, %c0_i32_0 : i32, i32
  }
  func.func @transform_7(%arg0: i32) -> (i32, i32) {
    %c0_i32 = arith.constant 0 : i32
    %c0_i32_0 = arith.constant 0 : i32
    %c0_i32_1 = arith.constant 0 : i32
    return %c0_i32, %c0_i32_0 : i32, i32
  }
  func.func @transform_8(%arg0: i32) -> (i32, i32) {
    %c0_i32 = arith.constant 0 : i32
    %c0_i32_0 = arith.constant 0 : i32
    %c0_i32_1 = arith.constant 0 : i32
    return %c0_i32, %c0_i32_0 : i32, i32
  }
  func.func @transform_9(%arg0: i32) -> (i32, i32) {
    %c0_i32 = arith.constant 0 : i32
    %c0_i32_0 = arith.constant 0 : i32
    %c0_i32_1 = arith.constant 0 : i32
    return %c0_i32, %c0_i32_0 : i32, i32
  }
  func.func @transform_10(%arg0: i32) -> (i32, i32) {
    %c0_i32 = arith.constant 0 : i32
    %c0_i32_0 = arith.constant 0 : i32
    %c0_i32_1 = arith.constant 0 : i32
    return %c0_i32, %c0_i32_0 : i32, i32
  }
  func.func @transform_11(%arg0: i32) -> (i32, i32) {
    %c0_i32 = arith.constant 0 : i32
    %c0_i32_0 = arith.constant 0 : i32
    return %arg0, %c0_i32 : i32, i32
  }
}

</mosaic_0001>

<llo_original>
// kernel: tpu_custom_call.1
$region0: #{tpu_custom_call.1}
  #allocation0 [shape = 'u32[]', space=smem, size = 0x4, offset = 0x4, fixed_abs, tag = 'smem constant byte address 0x4 - core index']
  #allocation1 [shape = 'u32[144,128]{1,0:T(1,128)}', space=vmem, size = 0x12000, scoped, tag = 'internal scratch']
  %s0 = inlined_call_operand.hbm [shape: bf16[16,256], index: 0, kind: input, shape index: {}]
  %s1 = inlined_call_operand.hbm [shape: bf16[16,256], index: 1, kind: input, shape index: {}]
  %s2 = inlined_call_operand.hbm [shape: bf16[256,1024], index: 2, kind: input, shape index: {}]
  %s3 = inlined_call_operand.hbm [shape: f32[1,1024], index: 3, kind: input, shape index: {}]
  %s4 = inlined_call_operand.hbm [shape: bf16[1024,128], index: 4, kind: input, shape index: {}]
  %s5 = inlined_call_operand.vmem [shape: f32[1,128], index: 5, kind: input, shape index: {}]
  %s6 = inlined_call_operand.hbm [shape: bf16[256,1024], index: 6, kind: input, shape index: {}]
  %s7 = inlined_call_operand.vmem [shape: f32[1,1024], index: 7, kind: input, shape index: {}]
  %s8 = inlined_call_operand.hbm [shape: bf16[1024,128], index: 8, kind: input, shape index: {}]
  %s9 = inlined_call_operand.vmem [shape: f32[1,128], index: 9, kind: input, shape index: {}]
  %s10 = inlined_call_operand.hbm [shape: f32[256,128], index: 10, kind: input, shape index: {}]
  %s11 = inlined_call_operand.hbm [shape: f32[16,128], index: 11, kind: output, shape index: {}]
  %s12 = sld [smem:[#allocation0]]
  $region86: #{tpu_custom_call.1} parent=0
    _
  %s14 = ssub.s32 1, %s12
  %s15 = scalar_select 0, %s14, %s12
  $region1: #{tpu_custom_call.1} parent=0
    #allocation2 [shape = 'u8[8192]{0}', space=vmem, size = 0x2000, scoped, tag = 'input window, operand 0, single buffered']
    #allocation3 [shape = 's32[1]{0}', space=sflag, size = 0x4, scoped, tag = 'scoped memory for tpu_custom_call.1']
    #allocation4 [shape = 's32[1]{0}', space=sflag, size = 0x4, scoped, tag = 'scoped memory for tpu_custom_call.1']
    #allocation5 [shape = 'u8[8192]{0}', space=vmem, size = 0x2000, scoped, tag = 'input window, operand 1, single buffered']
    #allocation6 [shape = 's32[1]{0}', space=sflag, size = 0x4, scoped, tag = 'scoped memory for tpu_custom_call.1']
    #allocation7 [shape = 'u8[524288]{0}', space=vmem, size = 0x80000, scoped, tag = 'input window, operand 2, single buffered']
    #allocation8 [shape = 'u8[4096]{0}', space=vmem, size = 0x1000, scoped, tag = 'input window, operand 3, single buffered']
    #allocation9 [shape = 's32[1]{0}', space=sflag, size = 0x4, scoped, tag = 'scoped memory for tpu_custom_call.1']
    #allocation10 [shape = 'u8[262144]{0}', space=vmem, size = 0x40000, scoped, tag = 'input window, operand 4, single buffered']
    #allocation11 [shape = 'u8[524288]{0}', space=vmem, size = 0x80000, scoped, tag = 'input window, operand 6, single buffered']
    #allocation12 [shape = 's32[1]{0}', space=sflag, size = 0x4, scoped, tag = 'scoped memory for tpu_custom_call.1']
    #allocation13 [shape = 'u8[262144]{0}', space=vmem, size = 0x40000, scoped, tag = 'input window, operand 8, single buffered']
    #allocation14 [shape = 'u8[131072]{0}', space=vmem, size = 0x20000, scoped, tag = 'input window, operand 10, single buffered']
    #allocation15 [shape = 's32[1]{0}', space=sflag, size = 0x4, scoped, tag = 'scoped memory for tpu_custom_call.1']
    #allocation16 [shape = 'u8[8192]{0}', space=vmem, size = 0x2000, scoped, tag = 'output window, operand 0, single buffered']
    %16 = vsyncpa [#allocation3], 0
    %17 = vsyncpa [#allocation6], 0
    %18 = vsyncpa [#allocation9], 0
    %19 = vsyncpa [#allocation12], 0
    %20 = vsyncpa [#allocation15], 0
    %21 = vsyncpa [#allocation4], 0
    // Predicated region
    $region2: #{tpu_custom_call.1} parent=1 // pred_check
      _
    $region3: #{tpu_custom_call.1} parent=1 // pred_check_branch
      %23 = sbr.rel (0) target = $region5
    $region4: #{tpu_custom_call.1} parent=1 // pred_region
      %s25 = ssub.s32 256, 256
      %26 = vsyncadd [#allocation3], %s25
      %s27 = sshll.u32 [#allocation2], 4
      %s28 = int_to_ptr.vmem [resolvable:$true] %s27
      %33 = dma.hbm_to_vmem [thread:$0]  %s0, 256, %s28, [#allocation3], 128, 128, 8
    $region5: #{tpu_custom_call.1} parent=1 // pred_fallthru
      _
    // Predicated region
    $region6: #{tpu_custom_call.1} parent=1 // pred_check
      _
    $region7: #{tpu_custom_call.1} parent=1 // pred_check_branch
      %35 = sbr.rel (0) target = $region9
    $region8: #{tpu_custom_call.1} parent=1 // pred_region
      %s37 = ssub.s32 256, 256
      %38 = vsyncadd [#allocation6], %s37
      %s39 = sshll.u32 [#allocation5], 4
      %s40 = int_to_ptr.vmem [resolvable:$true] %s39
      %45 = dma.hbm_to_vmem [thread:$0]  %s1, 256, %s40, [#allocation6], 128, 128, 8
    $region9: #{tpu_custom_call.1} parent=1 // pred_fallthru
      _
    // Predicated region
    $region10: #{tpu_custom_call.1} parent=1 // pred_check
      _
    $region11: #{tpu_custom_call.1} parent=1 // pred_check_branch
      %47 = sbr.rel (0) target = $region13
    $region12: #{tpu_custom_call.1} parent=1 // pred_region
      %s49 = ssub.s32 16384, 16384
      %50 = vsyncadd [#allocation6], %s49
      %s51 = sshll.u32 [#allocation7], 4
      %s52 = int_to_ptr.vmem [resolvable:$true] %s51
      %57 = dma.hbm_to_vmem [thread:$0]  %s2, 16384, %s52, [#allocation6], 512, 512, 32
    $region13: #{tpu_custom_call.1} parent=1 // pred_fallthru
      _
    // Predicated region
    $region14: #{tpu_custom_call.1} parent=1 // pred_check
      _
    $region15: #{tpu_custom_call.1} parent=1 // pred_check_branch
      %59 = sbr.rel (0) target = $region17
    $region16: #{tpu_custom_call.1} parent=1 // pred_region
      %s61 = ssub.s32 128, 128
      %62 = vsyncadd [#allocation9], %s61
      %s64 = sshll.u32 [#allocation8], 4
      %s65 = int_to_ptr.vmem [resolvable:$true] %s64
      %67 = dma.hbm_to_vmem [thread:$0]  %s3, 128, %s65, [#allocation9]
    $region17: #{tpu_custom_call.1} parent=1 // pred_fallthru
      _
    // Predicated region
    $region18: #{tpu_custom_call.1} parent=1 // pred_check
      _
    $region19: #{tpu_custom_call.1} parent=1 // pred_check_branch
      %69 = sbr.rel (0) target = $region21
    $region20: #{tpu_custom_call.1} parent=1 // pred_region
      %s71 = ssub.s32 8192, 8192
      %72 = vsyncadd [#allocation9], %s71
      %s73 = sshll.u32 [#allocation10], 4
      %s74 = int_to_ptr.vmem [resolvable:$true] %s73
      %79 = dma.hbm_to_vmem [thread:$0]  %s4, 8192, %s74, [#allocation9], 64, 64, 4
    $region21: #{tpu_custom_call.1} parent=1 // pred_fallthru
      _
    // Predicated region
    $region22: #{tpu_custom_call.1} parent=1 // pred_check
      _
    $region23: #{tpu_custom_call.1} parent=1 // pred_check_branch
      %81 = sbr.rel (0) target = $region25
    $region24: #{tpu_custom_call.1} parent=1 // pred_region
      _
    $region25: #{tpu_custom_call.1} parent=1 // pred_fallthru
      _
    // Predicated region
    $region26: #{tpu_custom_call.1} parent=1 // pred_check
      _
    $region27: #{tpu_custom_call.1} parent=1 // pred_check_branch
      %83 = sbr.rel (0) target = $region29
    $region28: #{tpu_custom_call.1} parent=1 // pred_region
      %s85 = ssub.s32 16384, 16384
      %86 = vsyncadd [#allocation12], %s85
      %s87 = sshll.u32 [#allocation11], 4
      %s88 = int_to_ptr.vmem [resolvable:$true] %s87
      %93 = dma.hbm_to_vmem [thread:$0]  %s6, 16384, %s88, [#allocation12], 512, 512, 32
    $region29: #{tpu_custom_call.1} parent=1 // pred_fallthru
      _
    // Predicated region
    $region30: #{tpu_custom_call.1} parent=1 // pred_check
      _
    $region31: #{tpu_custom_call.1} parent=1 // pred_check_branch
      %95 = sbr.rel (0) target = $region33
    $region32: #{tpu_custom_call.1} parent=1 // pred_region
      _
    $region33: #{tpu_custom_call.1} parent=1 // pred_fallthru
      _
    // Predicated region
    $region34: #{tpu_custom_call.1} parent=1 // pred_check
      _
    $region35: #{tpu_custom_call.1} parent=1 // pred_check_branch
      %97 = sbr.rel (0) target = $region37
    $region36: #{tpu_custom_call.1} parent=1 // pred_region
      %s99 = ssub.s32 8192, 8192
      %100 = vsyncadd [#allocation12], %s99
      %s101 = sshll.u32 [#allocation13], 4
      %s102 = int_to_ptr.vmem [resolvable:$true] %s101
      %107 = dma.hbm_to_vmem [thread:$0]  %s8, 8192, %s102, [#allocation12], 64, 64, 4
    $region37: #{tpu_custom_call.1} parent=1 // pred_fallthru
      _
    // Predicated region
    $region38: #{tpu_custom_call.1} parent=1 // pred_check
      _
    $region39: #{tpu_custom_call.1} parent=1 // pred_check_branch
      %109 = sbr.rel (0) target = $region41
    $region40: #{tpu_custom_call.1} parent=1 // pred_region
      _
    $region41: #{tpu_custom_call.1} parent=1 // pred_fallthru
      _
    // Predicated region
    $region42: #{tpu_custom_call.1} parent=1 // pred_check
      _
    $region43: #{tpu_custom_call.1} parent=1 // pred_check_branch
      %111 = sbr.rel (0) target = $region45
    $region44: #{tpu_custom_call.1} parent=1 // pred_region
      %s113 = ssub.s32 4096, 4096
      %114 = vsyncadd [#allocation15], %s113
      %s115 = sshll.u32 [#allocation14], 4
      %s116 = int_to_ptr.vmem [resolvable:$true] %s115
      %121 = dma.hbm_to_vmem [thread:$0]  %s10, 4096, %s116, [#allocation15], 128, 128, 8
    $region45: #{tpu_custom_call.1} parent=1 // pred_fallthru
      _
    // Predicated region
    $region46: #{tpu_custom_call.1} parent=1 // pred_check
      _
    $region47: #{tpu_custom_call.1} parent=1 // pred_check_branch
      %123 = sbr.rel (0) target = $region49
    $region48: #{tpu_custom_call.1} parent=1 // pred_region
      %124 = dma.done [#allocation3], 256
    $region49: #{tpu_custom_call.1} parent=1 // pred_fallthru
      _
    // Predicated region
    $region50: #{tpu_custom_call.1} parent=1 // pred_check
      _
    $region51: #{tpu_custom_call.1} parent=1 // pred_check_branch
      %126 = sbr.rel (0) target = $region53
    $region52: #{tpu_custom_call.1} parent=1 // pred_region
      %127 = dma.done [#allocation6], 256
    $region53: #{tpu_custom_call.1} parent=1 // pred_fallthru
      _
    // Predicated region
    $region54: #{tpu_custom_call.1} parent=1 // pred_check
      _
    $region55: #{tpu_custom_call.1} parent=1 // pred_check_branch
      %129 = sbr.rel (0) target = $region57
    $region56: #{tpu_custom_call.1} parent=1 // pred_region
      %130 = dma.done [#allocation6], 16384
    $region57: #{tpu_custom_call.1} parent=1 // pred_fallthru
      _
    // Predicated region
    $region58: #{tpu_custom_call.1} parent=1 // pred_check
      _
    $region59: #{tpu_custom_call.1} parent=1 // pred_check_branch
      %132 = sbr.rel (0) target = $region61
    $region60: #{tpu_custom_call.1} parent=1 // pred_region
      %133 = dma.done [#allocation9], 128
    $region61: #{tpu_custom_call.1} parent=1 // pred_fallthru
      _
    // Predicated region
    $region62: #{tpu_custom_call.1} parent=1 // pred_check
      _
    $region63: #{tpu_custom_call.1} parent=1 // pred_check_branch
      %135 = sbr.rel (0) target = $region65
    $region64: #{tpu_custom_call.1} parent=1 // pred_region
      %136 = dma.done [#allocation9], 8192
    $region65: #{tpu_custom_call.1} parent=1 // pred_fallthru
      _
    // Predicated region
    $region66: #{tpu_custom_call.1} parent=1 // pred_check
      _
    $region67: #{tpu_custom_call.1} parent=1 // pred_check_branch
      %138 = sbr.rel (0) target = $region69
    $region68: #{tpu_custom_call.1} parent=1 // pred_region
      %139 = dma.done [#allocation12], 16384
    $region69: #{tpu_custom_call.1} parent=1 // pred_fallthru
      _
    // Predicated region
    $region70: #{tpu_custom_call.1} parent=1 // pred_check
      _
    $region71: #{tpu_custom_call.1} parent=1 // pred_check_branch
      %141 = sbr.rel (0) target = $region73
    $region72: #{tpu_custom_call.1} parent=1 // pred_region
      %142 = dma.done [#allocation12], 8192
    $region73: #{tpu_custom_call.1} parent=1 // pred_fallthru
      _
    // Predicated region
    $region74: #{tpu_custom_call.1} parent=1 // pred_check
      _
    $region75: #{tpu_custom_call.1} parent=1 // pred_check_branch
      %144 = sbr.rel (0) target = $region77
    $region76: #{tpu_custom_call.1} parent=1 // pred_region
      %145 = dma.done [#allocation15], 4096
    $region77: #{tpu_custom_call.1} parent=1 // pred_fallthru
      _
    %v147 = vld [vmem:[#allocation2] sm:$0xff]
    %v148 = vld [vmem:[#allocation2 + $0x8] sm:$0xff]
    %v149 = vld [vmem:[#allocation5] sm:$0xff]
    %v150 = vld [vmem:[#allocation5 + $0x8] sm:$0xff]
    %v151 = vld [vmem:[#allocation7] sm:$0xff]
    %v152 = vld [vmem:[#allocation7 + $0x8] sm:$0xff]
    %v153 = vld [vmem:[#allocation7 + $0x10] sm:$0xff]
    %v154 = vld [vmem:[#allocation7 + $0x18] sm:$0xff]
    %v155 = vld [vmem:[#allocation7 + $0x20] sm:$0xff]
    %v156 = vld [vmem:[#allocation7 + $0x28] sm:$0xff]
    %v157 = vld [vmem:[#allocation7 + $0x30] sm:$0xff]
    %v158 = vld [vmem:[#allocation7 + $0x38] sm:$0xff]
    %v159 = vld [vmem:[#allocation7 + $0x40] sm:$0xff]
    %v160 = vld [vmem:[#allocation7 + $0x48] sm:$0xff]
    %v161 = vld [vmem:[#allocation7 + $0x50] sm:$0xff]
    %v162 = vld [vmem:[#allocation7 + $0x58] sm:$0xff]
    %v163 = vld [vmem:[#allocation7 + $0x60] sm:$0xff]
    %v164 = vld [vmem:[#allocation7 + $0x68] sm:$0xff]
    %v165 = vld [vmem:[#allocation7 + $0x70] sm:$0xff]
    %v166 = vld [vmem:[#allocation7 + $0x78] sm:$0xff]
    %v167 = vld [vmem:[#allocation7 + $0x80] sm:$0xff]
    %v168 = vld [vmem:[#allocation7 + $0x88] sm:$0xff]
    %v169 = vld [vmem:[#allocation7 + $0x90] sm:$0xff]
    %v170 = vld [vmem:[#allocation7 + $0x98] sm:$0xff]
    %v171 = vld [vmem:[#allocation7 + $0xa0] sm:$0xff]
    %v172 = vld [vmem:[#allocation7 + $0xa8] sm:$0xff]
    %v173 = vld [vmem:[#allocation7 + $0xb0] sm:$0xff]
    %v174 = vld [vmem:[#allocation7 + $0xb8] sm:$0xff]
    %v175 = vld [vmem:[#allocation7 + $0xc0] sm:$0xff]
    %v176 = vld [vmem:[#allocation7 + $0xc8] sm:$0xff]
    %v177 = vld [vmem:[#allocation7 + $0xd0] sm:$0xff]
    %v178 = vld [vmem:[#allocation7 + $0xd8] sm:$0xff]
    %v179 = vld [vmem:[#allocation7 + $0xe0] sm:$0xff]
    %v180 = vld [vmem:[#allocation7 + $0xe8] sm:$0xff]
    %v181 = vld [vmem:[#allocation7 + $0xf0] sm:$0xff]
    %v182 = vld [vmem:[#allocation7 + $0xf8] sm:$0xff]
    %v183 = vld [vmem:[#allocation7 + $0x100] sm:$0xff]
    %v184 = vld [vmem:[#allocation7 + $0x108] sm:$0xff]
    %v185 = vld [vmem:[#allocation7 + $0x110] sm:$0xff]
    %v186 = vld [vmem:[#allocation7 + $0x118] sm:$0xff]
    %v187 = vld [vmem:[#allocation7 + $0x120] sm:$0xff]
    %v188 = vld [vmem:[#allocation7 + $0x128] sm:$0xff]
    %v189 = vld [vmem:[#allocation7 + $0x130] sm:$0xff]
    %v190 = vld [vmem:[#allocation7 + $0x138] sm:$0xff]
    %v191 = vld [vmem:[#allocation7 + $0x140] sm:$0xff]
    %v192 = vld [vmem:[#allocation7 + $0x148] sm:$0xff]
    %v193 = vld [vmem:[#allocation7 + $0x150] sm:$0xff]
    %v194 = vld [vmem:[#allocation7 + $0x158] sm:$0xff]
    %v195 = vld [vmem:[#allocation7 + $0x160] sm:$0xff]
    %v196 = vld [vmem:[#allocation7 + $0x168] sm:$0xff]
    %v197 = vld [vmem:[#allocation7 + $0x170] sm:$0xff]
    %v198 = vld [vmem:[#allocation7 + $0x178] sm:$0xff]
    %v199 = vld [vmem:[#allocation7 + $0x180] sm:$0xff]
    %v200 = vld [vmem:[#allocation7 + $0x188] sm:$0xff]
    %v201 = vld [vmem:[#allocation7 + $0x190] sm:$0xff]
    %v202 = vld [vmem:[#allocation7 + $0x198] sm:$0xff]
    %v203 = vld [vmem:[#allocation7 + $0x1a0] sm:$0xff]
    %v204 = vld [vmem:[#allocation7 + $0x1a8] sm:$0xff]
    %v205 = vld [vmem:[#allocation7 + $0x1b0] sm:$0xff]
    %v206 = vld [vmem:[#allocation7 + $0x1b8] sm:$0xff]
    %v207 = vld [vmem:[#allocation7 + $0x1c0] sm:$0xff]
    %v208 = vld [vmem:[#allocation7 + $0x1c8] sm:$0xff]
    %v209 = vld [vmem:[#allocation7 + $0x1d0] sm:$0xff]
    %v210 = vld [vmem:[#allocation7 + $0x1d8] sm:$0xff]
    %v211 = vld [vmem:[#allocation7 + $0x1e0] sm:$0xff]
    %v212 = vld [vmem:[#allocation7 + $0x1e8] sm:$0xff]
    %v213 = vld [vmem:[#allocation7 + $0x1f0] sm:$0xff]
    %v214 = vld [vmem:[#allocation7 + $0x1f8] sm:$0xff]
    %v215 = vld [vmem:[#allocation7 + $0x200] sm:$0xff]
    %v216 = vld [vmem:[#allocation7 + $0x208] sm:$0xff]
    %v217 = vld [vmem:[#allocation7 + $0x210] sm:$0xff]
    %v218 = vld [vmem:[#allocation7 + $0x218] sm:$0xff]
    %v219 = vld [vmem:[#allocation7 + $0x220] sm:$0xff]
    %v220 = vld [vmem:[#allocation7 + $0x228] sm:$0xff]
    %v221 = vld [vmem:[#allocation7 + $0x230] sm:$0xff]
    %v222 = vld [vmem:[#allocation7 + $0x238] sm:$0xff]
    %v223 = vld [vmem:[#allocation7 + $0x240] sm:$0xff]
    %v224 = vld [vmem:[#allocation7 + $0x248] sm:$0xff]
    %v225 = vld [vmem:[#allocation7 + $0x250] sm:$0xff]
    %v226 = vld [vmem:[#allocation7 + $0x258] sm:$0xff]
    %v227 = vld [vmem:[#allocation7 + $0x260] sm:$0xff]
    %v228 = vld [vmem:[#allocation7 + $0x268] sm:$0xff]
    %v229 = vld [vmem:[#allocation7 + $0x270] sm:$0xff]
    %v230 = vld [vmem:[#allocation7 + $0x278] sm:$0xff]
    %v231 = vld [vmem:[#allocation7 + $0x280] sm:$0xff]
    %v232 = vld [vmem:[#allocation7 + $0x288] sm:$0xff]
    %v233 = vld [vmem:[#allocation7 + $0x290] sm:$0xff]
    %v234 = vld [vmem:[#allocation7 + $0x298] sm:$0xff]
    %v235 = vld [vmem:[#allocation7 + $0x2a0] sm:$0xff]
    %v236 = vld [vmem:[#allocation7 + $0x2a8] sm:$0xff]
    %v237 = vld [vmem:[#allocation7 + $0x2b0] sm:$0xff]
    %v238 = vld [vmem:[#allocation7 + $0x2b8] sm:$0xff]
    %v239 = vld [vmem:[#allocation7 + $0x2c0] sm:$0xff]
    %v240 = vld [vmem:[#allocation7 + $0x2c8] sm:$0xff]
    %v241 = vld [vmem:[#allocation7 + $0x2d0] sm:$0xff]
    %v242 = vld [vmem:[#allocation7 + $0x2d8] sm:$0xff]
    %v243 = vld [vmem:[#allocation7 + $0x2e0] sm:$0xff]
    %v244 = vld [vmem:[#allocation7 + $0x2e8] sm:$0xff]
    %v245 = vld [vmem:[#allocation7 + $0x2f0] sm:$0xff]
    %v246 = vld [vmem:[#allocation7 + $0x2f8] sm:$0xff]
    %v247 = vld [vmem:[#allocation7 + $0x300] sm:$0xff]
    %v248 = vld [vmem:[#allocation7 + $0x308] sm:$0xff]
    %v249 = vld [vmem:[#allocation7 + $0x310] sm:$0xff]
    %v250 = vld [vmem:[#allocation7 + $0x318] sm:$0xff]
    %v251 = vld [vmem:[#allocation7 + $0x320] sm:$0xff]
    %v252 = vld [vmem:[#allocation7 + $0x328] sm:$0xff]
    %v253 = vld [vmem:[#allocation7 + $0x330] sm:$0xff]
    %v254 = vld [vmem:[#allocation7 + $0x338] sm:$0xff]
    %v255 = vld [vmem:[#allocation7 + $0x340] sm:$0xff]
    %v256 = vld [vmem:[#allocation7 + $0x348] sm:$0xff]
    %v257 = vld [vmem:[#allocation7 + $0x350] sm:$0xff]
    %v258 = vld [vmem:[#allocation7 + $0x358] sm:$0xff]
    %v259 = vld [vmem:[#allocation7 + $0x360] sm:$0xff]
    %v260 = vld [vmem:[#allocation7 + $0x368] sm:$0xff]
    %v261 = vld [vmem:[#allocation7 + $0x370] sm:$0xff]
    %v262 = vld [vmem:[#allocation7 + $0x378] sm:$0xff]
    %v263 = vld [vmem:[#allocation7 + $0x380] sm:$0xff]
    %v264 = vld [vmem:[#allocation7 + $0x388] sm:$0xff]
    %v265 = vld [vmem:[#allocation7 + $0x390] sm:$0xff]
    %v266 = vld [vmem:[#allocation7 + $0x398] sm:$0xff]
    %v267 = vld [vmem:[#allocation7 + $0x3a0] sm:$0xff]
    %v268 = vld [vmem:[#allocation7 + $0x3a8] sm:$0xff]
    %v269 = vld [vmem:[#allocation7 + $0x3b0] sm:$0xff]
    %v270 = vld [vmem:[#allocation7 + $0x3b8] sm:$0xff]
    %v271 = vld [vmem:[#allocation7 + $0x3c0] sm:$0xff]
    %v272 = vld [vmem:[#allocation7 + $0x3c8] sm:$0xff]
    %v273 = vld [vmem:[#allocation7 + $0x3d0] sm:$0xff]
    %v274 = vld [vmem:[#allocation7 + $0x3d8] sm:$0xff]
    %v275 = vld [vmem:[#allocation7 + $0x3e0] sm:$0xff]
    %v276 = vld [vmem:[#allocation7 + $0x3e8] sm:$0xff]
    %v277 = vld [vmem:[#allocation7 + $0x3f0] sm:$0xff]
    %v278 = vld [vmem:[#allocation7 + $0x3f8] sm:$0xff]
    %v279 = vld [vmem:[#allocation8] sm:$0xff]
    %v281 = vlaneseq
    %v282 = vshrl.u32 %v281, 7
    %v283 = vsub.s32 0, %v282
    %v284 = vrot.slane %v279, %v283
    %v285 = vlaneseq
    %v286 = vshrl.u32 %v285, 7
    %v287 = vsub.s32 1, %v286
    %v288 = vrot.slane %v279, %v287
    %v289 = vlaneseq
    %v290 = vshrl.u32 %v289, 7
    %v291 = vsub.s32 2, %v290
    %v292 = vrot.slane %v279, %v291
    %v293 = vlaneseq
    %v294 = vshrl.u32 %v293, 7
    %v295 = vsub.s32 3, %v294
    %v296 = vrot.slane %v279, %v295
    %v297 = vlaneseq
    %v298 = vshrl.u32 %v297, 7
    %v299 = vsub.s32 4, %v298
    %v300 = vrot.slane %v279, %v299
    %v301 = vlaneseq
    %v302 = vshrl.u32 %v301, 7
    %v303 = vsub.s32 5, %v302
    %v304 = vrot.slane %v279, %v303
    %v305 = vlaneseq
    %v306 = vshrl.u32 %v305, 7
    %v307 = vsub.s32 6, %v306
    %v308 = vrot.slane %v279, %v307
    %v309 = vlaneseq
    %v310 = vshrl.u32 %v309, 7
    %v311 = vsub.s32 7, %v310
    %v312 = vrot.slane %v279, %v311
    %v323 = vunpack.c.l.b16 %v147
    %v324 = vunpack.c.h.b16 %v147
    %v325 = vunpack.c.l.b16 %v148
    %v326 = vunpack.c.h.b16 %v148
    %v327 = vpack.c.b16 %v325, %v323
    %v328 = vpack.c.b16 %v326, %v324
    %v459 = vunpack.c.l.b16 %v151
    %v460 = vunpack.c.h.b16 %v151
    %v461 = vunpack.c.l.b16 %v152
    %v462 = vunpack.c.h.b16 %v152
    %v463 = vunpack.c.l.b16 %v153
    %v464 = vunpack.c.h.b16 %v153
    %v465 = vunpack.c.l.b16 %v154
    %v466 = vunpack.c.h.b16 %v154
    %v467 = vunpack.c.l.b16 %v155
    %v468 = vunpack.c.h.b16 %v155
    %v469 = vunpack.c.l.b16 %v156
    %v470 = vunpack.c.h.b16 %v156
    %v471 = vunpack.c.l.b16 %v157
    %v472 = vunpack.c.h.b16 %v157
    %v473 = vunpack.c.l.b16 %v158
    %v474 = vunpack.c.h.b16 %v158
    %v475 = vunpack.c.l.b16 %v159
    %v476 = vunpack.c.h.b16 %v159
    %v477 = vunpack.c.l.b16 %v160
    %v478 = vunpack.c.h.b16 %v160
    %v479 = vunpack.c.l.b16 %v161
    %v480 = vunpack.c.h.b16 %v161
    %v481 = vunpack.c.l.b16 %v162
    %v482 = vunpack.c.h.b16 %v162
    %v483 = vunpack.c.l.b16 %v163
    %v484 = vunpack.c.h.b16 %v163
    %v485 = vunpack.c.l.b16 %v164
    %v486 = vunpack.c.h.b16 %v164
    %v487 = vunpack.c.l.b16 %v165
    %v488 = vunpack.c.h.b16 %v165
    %v489 = vunpack.c.l.b16 %v166
    %v490 = vunpack.c.h.b16 %v166
    %v491 = vunpack.c.l.b16 %v167
    %v492 = vunpack.c.h.b16 %v167
    %v493 = vunpack.c.l.b16 %v168
    %v494 = vunpack.c.h.b16 %v168
    %v495 = vunpack.c.l.b16 %v169
    %v496 = vunpack.c.h.b16 %v169
    %v497 = vunpack.c.l.b16 %v170
    %v498 = vunpack.c.h.b16 %v170
    %v499 = vunpack.c.l.b16 %v171
    %v500 = vunpack.c.h.b16 %v171
    %v501 = vunpack.c.l.b16 %v172
    %v502 = vunpack.c.h.b16 %v172
    %v503 = vunpack.c.l.b16 %v173
    %v504 = vunpack.c.h.b16 %v173
    %v505 = vunpack.c.l.b16 %v174
    %v506 = vunpack.c.h.b16 %v174
    %v507 = vunpack.c.l.b16 %v175
    %v508 = vunpack.c.h.b16 %v175
    %v509 = vunpack.c.l.b16 %v176
    %v510 = vunpack.c.h.b16 %v176
    %v511 = vunpack.c.l.b16 %v177
    %v512 = vunpack.c.h.b16 %v177
    %v513 = vunpack.c.l.b16 %v178
    %v514 = vunpack.c.h.b16 %v178
    %v515 = vunpack.c.l.b16 %v179
    %v516 = vunpack.c.h.b16 %v179
    %v517 = vunpack.c.l.b16 %v180
    %v518 = vunpack.c.h.b16 %v180
    %v519 = vunpack.c.l.b16 %v181
    %v520 = vunpack.c.h.b16 %v181
    %v521 = vunpack.c.l.b16 %v182
    %v522 = vunpack.c.h.b16 %v182
    %v523 = vunpack.c.l.b16 %v183
    %v524 = vunpack.c.h.b16 %v183
    %v525 = vunpack.c.l.b16 %v184
    %v526 = vunpack.c.h.b16 %v184
    %v527 = vunpack.c.l.b16 %v185
    %v528 = vunpack.c.h.b16 %v185
    %v529 = vunpack.c.l.b16 %v186
    %v530 = vunpack.c.h.b16 %v186
    %v531 = vunpack.c.l.b16 %v187
    %v532 = vunpack.c.h.b16 %v187
    %v533 = vunpack.c.l.b16 %v188
    %v534 = vunpack.c.h.b16 %v188
    %v535 = vunpack.c.l.b16 %v189
    %v536 = vunpack.c.h.b16 %v189
    %v537 = vunpack.c.l.b16 %v190
    %v538 = vunpack.c.h.b16 %v190
    %v539 = vunpack.c.l.b16 %v191
    %v540 = vunpack.c.h.b16 %v191
    %v541 = vunpack.c.l.b16 %v192
    %v542 = vunpack.c.h.b16 %v192
    %v543 = vunpack.c.l.b16 %v193
    %v544 = vunpack.c.h.b16 %v193
    %v545 = vunpack.c.l.b16 %v194
    %v546 = vunpack.c.h.b16 %v194
    %v547 = vunpack.c.l.b16 %v195
    %v548 = vunpack.c.h.b16 %v195
    %v549 = vunpack.c.l.b16 %v196
    %v550 = vunpack.c.h.b16 %v196
    %v551 = vunpack.c.l.b16 %v197
    %v552 = vunpack.c.h.b16 %v197
    %v553 = vunpack.c.l.b16 %v198
    %v554 = vunpack.c.h.b16 %v198
    %v555 = vunpack.c.l.b16 %v199
    %v556 = vunpack.c.h.b16 %v199
    %v557 = vunpack.c.l.b16 %v200
    %v558 = vunpack.c.h.b16 %v200
    %v559 = vunpack.c.l.b16 %v201
    %v560 = vunpack.c.h.b16 %v201
    %v561 = vunpack.c.l.b16 %v202
    %v562 = vunpack.c.h.b16 %v202
    %v563 = vunpack.c.l.b16 %v203
    %v564 = vunpack.c.h.b16 %v203
    %v565 = vunpack.c.l.b16 %v204
    %v566 = vunpack.c.h.b16 %v204
    %v567 = vunpack.c.l.b16 %v205
    %v568 = vunpack.c.h.b16 %v205
    %v569 = vunpack.c.l.b16 %v206
    %v570 = vunpack.c.h.b16 %v206
    %v571 = vunpack.c.l.b16 %v207
    %v572 = vunpack.c.h.b16 %v207
    %v573 = vunpack.c.l.b16 %v208
    %v574 = vunpack.c.h.b16 %v208
    %v575 = vunpack.c.l.b16 %v209
    %v576 = vunpack.c.h.b16 %v209
    %v577 = vunpack.c.l.b16 %v210
    %v578 = vunpack.c.h.b16 %v210
    %v579 = vunpack.c.l.b16 %v211
    %v580 = vunpack.c.h.b16 %v211
    %v581 = vunpack.c.l.b16 %v212
    %v582 = vunpack.c.h.b16 %v212
    %v583 = vunpack.c.l.b16 %v213
    %v584 = vunpack.c.h.b16 %v213
    %v585 = vunpack.c.l.b16 %v214
    %v586 = vunpack.c.h.b16 %v214
    %v587 = vunpack.c.l.b16 %v215
    %v588 = vunpack.c.h.b16 %v215
    %v589 = vunpack.c.l.b16 %v216
    %v590 = vunpack.c.h.b16 %v216
    %v591 = vunpack.c.l.b16 %v217
    %v592 = vunpack.c.h.b16 %v217
    %v593 = vunpack.c.l.b16 %v218
    %v594 = vunpack.c.h.b16 %v218
    %v595 = vunpack.c.l.b16 %v219
    %v596 = vunpack.c.h.b16 %v219
    %v597 = vunpack.c.l.b16 %v220
    %v598 = vunpack.c.h.b16 %v220
    %v599 = vunpack.c.l.b16 %v221
    %v600 = vunpack.c.h.b16 %v221
    %v601 = vunpack.c.l.b16 %v222
    %v602 = vunpack.c.h.b16 %v222
    %v603 = vunpack.c.l.b16 %v223
    %v604 = vunpack.c.h.b16 %v223
    %v605 = vunpack.c.l.b16 %v224
    %v606 = vunpack.c.h.b16 %v224
    %v607 = vunpack.c.l.b16 %v225
    %v608 = vunpack.c.h.b16 %v225
    %v609 = vunpack.c.l.b16 %v226
    %v610 = vunpack.c.h.b16 %v226
    %v611 = vunpack.c.l.b16 %v227
    %v612 = vunpack.c.h.b16 %v227
    %v613 = vunpack.c.l.b16 %v228
    %v614 = vunpack.c.h.b16 %v228
    %v615 = vunpack.c.l.b16 %v229
    %v616 = vunpack.c.h.b16 %v229
    %v617 = vunpack.c.l.b16 %v230
    %v618 = vunpack.c.h.b16 %v230
    %v619 = vunpack.c.l.b16 %v231
    %v620 = vunpack.c.h.b16 %v231
    %v621 = vunpack.c.l.b16 %v232
    %v622 = vunpack.c.h.b16 %v232
    %v623 = vunpack.c.l.b16 %v233
    %v624 = vunpack.c.h.b16 %v233
    %v625 = vunpack.c.l.b16 %v234
    %v626 = vunpack.c.h.b16 %v234
    %v627 = vunpack.c.l.b16 %v235
    %v628 = vunpack.c.h.b16 %v235
    %v629 = vunpack.c.l.b16 %v236
    %v630 = vunpack.c.h.b16 %v236
    %v631 = vunpack.c.l.b16 %v237
    %v632 = vunpack.c.h.b16 %v237
    %v633 = vunpack.c.l.b16 %v238
    %v634 = vunpack.c.h.b16 %v238
    %v635 = vunpack.c.l.b16 %v239
    %v636 = vunpack.c.h.b16 %v239
    %v637 = vunpack.c.l.b16 %v240
    %v638 = vunpack.c.h.b16 %v240
    %v639 = vunpack.c.l.b16 %v241
    %v640 = vunpack.c.h.b16 %v241
    %v641 = vunpack.c.l.b16 %v242
    %v642 = vunpack.c.h.b16 %v242
    %v643 = vunpack.c.l.b16 %v243
    %v644 = vunpack.c.h.b16 %v243
    %v645 = vunpack.c.l.b16 %v244
    %v646 = vunpack.c.h.b16 %v244
    %v647 = vunpack.c.l.b16 %v245
    %v648 = vunpack.c.h.b16 %v245
    %v649 = vunpack.c.l.b16 %v246
    %v650 = vunpack.c.h.b16 %v246
    %v651 = vunpack.c.l.b16 %v247
    %v652 = vunpack.c.h.b16 %v247
    %v653 = vunpack.c.l.b16 %v248
    %v654 = vunpack.c.h.b16 %v248
    %v655 = vunpack.c.l.b16 %v249
    %v656 = vunpack.c.h.b16 %v249
    %v657 = vunpack.c.l.b16 %v250
    %v658 = vunpack.c.h.b16 %v250
    %v659 = vunpack.c.l.b16 %v251
    %v660 = vunpack.c.h.b16 %v251
    %v661 = vunpack.c.l.b16 %v252
    %v662 = vunpack.c.h.b16 %v252
    %v663 = vunpack.c.l.b16 %v253
    %v664 = vunpack.c.h.b16 %v253
    %v665 = vunpack.c.l.b16 %v254
    %v666 = vunpack.c.h.b16 %v254
    %v667 = vunpack.c.l.b16 %v255
    %v668 = vunpack.c.h.b16 %v255
    %v669 = vunpack.c.l.b16 %v256
    %v670 = vunpack.c.h.b16 %v256
    %v671 = vunpack.c.l.b16 %v257
    %v672 = vunpack.c.h.b16 %v257
    %v673 = vunpack.c.l.b16 %v258
    %v674 = vunpack.c.h.b16 %v258
    %v675 = vunpack.c.l.b16 %v259
    %v676 = vunpack.c.h.b16 %v259
    %v677 = vunpack.c.l.b16 %v260
    %v678 = vunpack.c.h.b16 %v260
    %v679 = vunpack.c.l.b16 %v261
    %v680 = vunpack.c.h.b16 %v261
    %v681 = vunpack.c.l.b16 %v262
    %v682 = vunpack.c.h.b16 %v262
    %v683 = vunpack.c.l.b16 %v263
    %v684 = vunpack.c.h.b16 %v263
    %v685 = vunpack.c.l.b16 %v264
    %v686 = vunpack.c.h.b16 %v264
    %v687 = vunpack.c.l.b16 %v265
    %v688 = vunpack.c.h.b16 %v265
    %v689 = vunpack.c.l.b16 %v266
    %v690 = vunpack.c.h.b16 %v266
    %v691 = vunpack.c.l.b16 %v267
    %v692 = vunpack.c.h.b16 %v267
    %v693 = vunpack.c.l.b16 %v268
    %v694 = vunpack.c.h.b16 %v268
    %v695 = vunpack.c.l.b16 %v269
    %v696 = vunpack.c.h.b16 %v269
    %v697 = vunpack.c.l.b16 %v270
    %v698 = vunpack.c.h.b16 %v270
    %v699 = vunpack.c.l.b16 %v271
    %v700 = vunpack.c.h.b16 %v271
    %v701 = vunpack.c.l.b16 %v272
    %v702 = vunpack.c.h.b16 %v272
    %v703 = vunpack.c.l.b16 %v273
    %v704 = vunpack.c.h.b16 %v273
    %v705 = vunpack.c.l.b16 %v274
    %v706 = vunpack.c.h.b16 %v274
    %v707 = vunpack.c.l.b16 %v275
    %v708 = vunpack.c.h.b16 %v275
    %v709 = vunpack.c.l.b16 %v276
    %v710 = vunpack.c.h.b16 %v276
    %v711 = vunpack.c.l.b16 %v277
    %v712 = vunpack.c.h.b16 %v277
    %v713 = vunpack.c.l.b16 %v278
    %v714 = vunpack.c.h.b16 %v278
    %v715 = vpack.c.b16 %v467, %v459
    %v716 = vpack.c.b16 %v468, %v460
    %v717 = vpack.c.b16 %v469, %v461
    %v718 = vpack.c.b16 %v470, %v462
    %v719 = vpack.c.b16 %v471, %v463
    %v720 = vpack.c.b16 %v472, %v464
    %v721 = vpack.c.b16 %v473, %v465
    %v722 = vpack.c.b16 %v474, %v466
    %v723 = vpack.c.b16 %v483, %v475
    %v724 = vpack.c.b16 %v484, %v476
    %v725 = vpack.c.b16 %v485, %v477
    %v726 = vpack.c.b16 %v486, %v478
    %v727 = vpack.c.b16 %v487, %v479
    %v728 = vpack.c.b16 %v488, %v480
    %v729 = vpack.c.b16 %v489, %v481
    %v730 = vpack.c.b16 %v490, %v482
    %v731 = vpack.c.b16 %v499, %v491
    %v732 = vpack.c.b16 %v500, %v492
    %v733 = vpack.c.b16 %v501, %v493
    %v734 = vpack.c.b16 %v502, %v494
    %v735 = vpack.c.b16 %v503, %v495
    %v736 = vpack.c.b16 %v504, %v496
    %v737 = vpack.c.b16 %v505, %v497
    %v738 = vpack.c.b16 %v506, %v498
    %v739 = vpack.c.b16 %v515, %v507
    %v740 = vpack.c.b16 %v516, %v508
    %v741 = vpack.c.b16 %v517, %v509
    %v742 = vpack.c.b16 %v518, %v510
    %v743 = vpack.c.b16 %v519, %v511
    %v744 = vpack.c.b16 %v520, %v512
    %v745 = vpack.c.b16 %v521, %v513
    %v746 = vpack.c.b16 %v522, %v514
    %v747 = vpack.c.b16 %v531, %v523
    %v748 = vpack.c.b16 %v532, %v524
    %v749 = vpack.c.b16 %v533, %v525
    %v750 = vpack.c.b16 %v534, %v526
    %v751 = vpack.c.b16 %v535, %v527
    %v752 = vpack.c.b16 %v536, %v528
    %v753 = vpack.c.b16 %v537, %v529
    %v754 = vpack.c.b16 %v538, %v530
    %v755 = vpack.c.b16 %v547, %v539
    %v756 = vpack.c.b16 %v548, %v540
    %v757 = vpack.c.b16 %v549, %v541
    %v758 = vpack.c.b16 %v550, %v542
    %v759 = vpack.c.b16 %v551, %v543
    %v760 = vpack.c.b16 %v552, %v544
    %v761 = vpack.c.b16 %v553, %v545
    %v762 = vpack.c.b16 %v554, %v546
    %v763 = vpack.c.b16 %v563, %v555
    %v764 = vpack.c.b16 %v564, %v556
    %v765 = vpack.c.b16 %v565, %v557
    %v766 = vpack.c.b16 %v566, %v558
    %v767 = vpack.c.b16 %v567, %v559
    %v768 = vpack.c.b16 %v568, %v560
    %v769 = vpack.c.b16 %v569, %v561
    %v770 = vpack.c.b16 %v570, %v562
    %v771 = vpack.c.b16 %v579, %v571
    %v772 = vpack.c.b16 %v580, %v572
    %v773 = vpack.c.b16 %v581, %v573
    %v774 = vpack.c.b16 %v582, %v574
    %v775 = vpack.c.b16 %v583, %v575
    %v776 = vpack.c.b16 %v584, %v576
    %v777 = vpack.c.b16 %v585, %v577
    %v778 = vpack.c.b16 %v586, %v578
    %v779 = vpack.c.b16 %v595, %v587
    %v780 = vpack.c.b16 %v596, %v588
    %v781 = vpack.c.b16 %v597, %v589
    %v782 = vpack.c.b16 %v598, %v590
    %v783 = vpack.c.b16 %v599, %v591
    %v784 = vpack.c.b16 %v600, %v592
    %v785 = vpack.c.b16 %v601, %v593
    %v786 = vpack.c.b16 %v602, %v594
    %v787 = vpack.c.b16 %v611, %v603
    %v788 = vpack.c.b16 %v612, %v604
    %v789 = vpack.c.b16 %v613, %v605
    %v790 = vpack.c.b16 %v614, %v606
    %v791 = vpack.c.b16 %v615, %v607
    %v792 = vpack.c.b16 %v616, %v608
    %v793 = vpack.c.b16 %v617, %v609
    %v794 = vpack.c.b16 %v618, %v610
    %v795 = vpack.c.b16 %v627, %v619
    %v796 = vpack.c.b16 %v628, %v620
    %v797 = vpack.c.b16 %v629, %v621
    %v798 = vpack.c.b16 %v630, %v622
    %v799 = vpack.c.b16 %v631, %v623
    %v800 = vpack.c.b16 %v632, %v624
    %v801 = vpack.c.b16 %v633, %v625
    %v802 = vpack.c.b16 %v634, %v626
    %v803 = vpack.c.b16 %v643, %v635
    %v804 = vpack.c.b16 %v644, %v636
    %v805 = vpack.c.b16 %v645, %v637
    %v806 = vpack.c.b16 %v646, %v638
    %v807 = vpack.c.b16 %v647, %v639
    %v808 = vpack.c.b16 %v648, %v640
    %v809 = vpack.c.b16 %v649, %v641
    %v810 = vpack.c.b16 %v650, %v642
    %v811 = vpack.c.b16 %v659, %v651
    %v812 = vpack.c.b16 %v660, %v652
    %v813 = vpack.c.b16 %v661, %v653
    %v814 = vpack.c.b16 %v662, %v654
    %v815 = vpack.c.b16 %v663, %v655
    %v816 = vpack.c.b16 %v664, %v656
    %v817 = vpack.c.b16 %v665, %v657
    %v818 = vpack.c.b16 %v666, %v658
    %v819 = vpack.c.b16 %v675, %v667
    %v820 = vpack.c.b16 %v676, %v668
    %v821 = vpack.c.b16 %v677, %v669
    %v822 = vpack.c.b16 %v678, %v670
    %v823 = vpack.c.b16 %v679, %v671
    %v824 = vpack.c.b16 %v680, %v672
    %v825 = vpack.c.b16 %v681, %v673
    %v826 = vpack.c.b16 %v682, %v674
    %v827 = vpack.c.b16 %v691, %v683
    %v828 = vpack.c.b16 %v692, %v684
    %v829 = vpack.c.b16 %v693, %v685
    %v830 = vpack.c.b16 %v694, %v686
    %v831 = vpack.c.b16 %v695, %v687
    %v832 = vpack.c.b16 %v696, %v688
    %v833 = vpack.c.b16 %v697, %v689
    %v834 = vpack.c.b16 %v698, %v690
    %v835 = vpack.c.b16 %v707, %v699
    %v836 = vpack.c.b16 %v708, %v700
    %v837 = vpack.c.b16 %v709, %v701
    %v838 = vpack.c.b16 %v710, %v702
    %v839 = vpack.c.b16 %v711, %v703
    %v840 = vpack.c.b16 %v712, %v704
    %v841 = vpack.c.b16 %v713, %v705
    %v842 = vpack.c.b16 %v714, %v706
    %971 = vmatprep.subr.bf16.mxu0 %v772
    %972 = vmatpush1.bf16.msra.mxu0 %v771
    %973 = vmatprep.subr.bf16.mxu0 %v764
    %974 = vmatpush1.bf16.msra.mxu0 %v763
    %975 = vmatprep.subr.bf16.mxu0 %v756
    %976 = vmatpush1.bf16.msra.mxu0 %v755
    %977 = vmatprep.subr.bf16.mxu0 %v748
    %978 = vmatpush1.bf16.msra.mxu0 %v747
    %979 = vmatprep.subr.bf16.mxu0 %v740
    %980 = vmatpush1.bf16.msra.mxu0 %v739
    %981 = vmatprep.subr.bf16.mxu0 %v732
    %982 = vmatpush1.bf16.msra.mxu0 %v731
    %983 = vmatprep.subr.bf16.mxu0 %v724
    %984 = vmatpush1.bf16.msra.mxu0 %v723
    %985 = vmatprep.subr.bf16.mxu0 %v716
    %986 = vmatpush1.bf16.msra.mxu0 %v715
    %987 = vmatprep.subr.bf16.mxu0 %v836
    %988 = vmatpush2.bf16.msra.mxu0 %v835
    %989 = vmatprep.subr.bf16.mxu0 %v828
    %990 = vmatpush2.bf16.msra.mxu0 %v827
    %991 = vmatprep.subr.bf16.mxu0 %v820
    %992 = vmatpush2.bf16.msra.mxu0 %v819
    %993 = vmatprep.subr.bf16.mxu0 %v812
    %994 = vmatpush2.bf16.msra.mxu0 %v811
    %995 = vmatprep.subr.bf16.mxu0 %v804
    %996 = vmatpush2.bf16.msra.mxu0 %v803
    %997 = vmatprep.subr.bf16.mxu0 %v796
    %998 = vmatpush2.bf16.msra.mxu0 %v795
    %999 = vmatprep.subr.bf16.mxu0 %v788
    %1000 = vmatpush2.bf16.msra.mxu0 %v787
    %1001 = vmatprep.subr.bf16.mxu0 %v780
    %1002 = vmatpush2.bf16.msra.mxu0 %v779
    %1003 = vmatprep.mubr.bf16.mxu0 %v328
    %1004 = vmatmul.mubr.bf16.gmra.mxu0 %v327
    %v1005 = vpop.f32.mrf.mxu0
    %v1006 = vadd.f32 %v284, %v1005
    %v1007 = vpop.f32.mrf.mxu0
    %v1008 = vadd.f32 %v288, %v1007
    %v1009 = vpop.f32.mrf.mxu0
    %v1010 = vadd.f32 %v284, %v1009
    %v1011 = vpop.f32.mrf.mxu0
    %v1012 = vadd.f32 %v288, %v1011
    %1013 = vdwg.mxu0
    %1014 = vmatprep.subr.bf16.mxu0 %v774
    %1015 = vmatpush1.bf16.msra.mxu0 %v773
    %1016 = vmatprep.subr.bf16.mxu0 %v766
    %1017 = vmatpush1.bf16.msra.mxu0 %v765
    %1018 = vmatprep.subr.bf16.mxu0 %v758
    %1019 = vmatpush1.bf16.msra.mxu0 %v757
    %1020 = vmatprep.subr.bf16.mxu0 %v750
    %1021 = vmatpush1.bf16.msra.mxu0 %v749
    %1022 = vmatprep.subr.bf16.mxu0 %v742
    %1023 = vmatpush1.bf16.msra.mxu0 %v741
    %1024 = vmatprep.subr.bf16.mxu0 %v734
    %1025 = vmatpush1.bf16.msra.mxu0 %v733
    %1026 = vmatprep.subr.bf16.mxu0 %v726
    %1027 = vmatpush1.bf16.msra.mxu0 %v725
    %1028 = vmatprep.subr.bf16.mxu0 %v718
    %1029 = vmatpush1.bf16.msra.mxu0 %v717
    %1030 = vmatprep.subr.bf16.mxu0 %v838
    %1031 = vmatpush2.bf16.msra.mxu0 %v837
    %1032 = vmatprep.subr.bf16.mxu0 %v830
    %1033 = vmatpush2.bf16.msra.mxu0 %v829
    %1034 = vmatprep.subr.bf16.mxu0 %v822
    %1035 = vmatpush2.bf16.msra.mxu0 %v821
    %1036 = vmatprep.subr.bf16.mxu0 %v814
    %1037 = vmatpush2.bf16.msra.mxu0 %v813
    %1038 = vmatprep.subr.bf16.mxu0 %v806
    %1039 = vmatpush2.bf16.msra.mxu0 %v805
    %1040 = vmatprep.subr.bf16.mxu0 %v798
    %1041 = vmatpush2.bf16.msra.mxu0 %v797
    %1042 = vmatprep.subr.bf16.mxu0 %v790
    %1043 = vmatpush2.bf16.msra.mxu0 %v789
    %1044 = vmatprep.subr.bf16.mxu0 %v782
    %1045 = vmatpush2.bf16.msra.mxu0 %v781
    %1046 = vmatprep.mubr.bf16.mxu0 %v328
    %1047 = vmatmul.mubr.bf16.gmra.mxu0 %v327
    %v1048 = vpop.f32.mrf.mxu0
    %v1049 = vadd.f32 %v292, %v1048
    %v1050 = vpop.f32.mrf.mxu0
    %v1051 = vadd.f32 %v296, %v1050
    %v1052 = vpop.f32.mrf.mxu0
    %v1053 = vadd.f32 %v292, %v1052
    %v1054 = vpop.f32.mrf.mxu0
    %v1055 = vadd.f32 %v296, %v1054
    %1056 = vdwg.mxu0
    %1057 = vmatprep.subr.bf16.mxu0 %v776
    %1058 = vmatpush1.bf16.msra.mxu0 %v775
    %1059 = vmatprep.subr.bf16.mxu0 %v768
    %1060 = vmatpush1.bf16.msra.mxu0 %v767
    %1061 = vmatprep.subr.bf16.mxu0 %v760
    %1062 = vmatpush1.bf16.msra.mxu0 %v759
    %1063 = vmatprep.subr.bf16.mxu0 %v752
    %1064 = vmatpush1.bf16.msra.mxu0 %v751
    %1065 = vmatprep.subr.bf16.mxu0 %v744
    %1066 = vmatpush1.bf16.msra.mxu0 %v743
    %1067 = vmatprep.subr.bf16.mxu0 %v736
    %1068 = vmatpush1.bf16.msra.mxu0 %v735
    %1069 = vmatprep.subr.bf16.mxu0 %v728
    %1070 = vmatpush1.bf16.msra.mxu0 %v727
    %1071 = vmatprep.subr.bf16.mxu0 %v720
    %1072 = vmatpush1.bf16.msra.mxu0 %v719
    %1073 = vmatprep.subr.bf16.mxu0 %v840
    %1074 = vmatpush2.bf16.msra.mxu0 %v839
    %1075 = vmatprep.subr.bf16.mxu0 %v832
    %1076 = vmatpush2.bf16.msra.mxu0 %v831
    %1077 = vmatprep.subr.bf16.mxu0 %v824
    %1078 = vmatpush2.bf16.msra.mxu0 %v823
    %1079 = vmatprep.subr.bf16.mxu0 %v816
    %1080 = vmatpush2.bf16.msra.mxu0 %v815
    %1081 = vmatprep.subr.bf16.mxu0 %v808
    %1082 = vmatpush2.bf16.msra.mxu0 %v807
    %1083 = vmatprep.subr.bf16.mxu0 %v800
    %1084 = vmatpush2.bf16.msra.mxu0 %v799
    %1085 = vmatprep.subr.bf16.mxu0 %v792
    %1086 = vmatpush2.bf16.msra.mxu0 %v791
    %1087 = vmatprep.subr.bf16.mxu0 %v784
    %1088 = vmatpush2.bf16.msra.mxu0 %v783
    %1089 = vmatprep.mubr.bf16.mxu0 %v328
    %1090 = vmatmul.mubr.bf16.gmra.mxu0 %v327
    %v1091 = vpop.f32.mrf.mxu0
    %v1092 = vadd.f32 %v300, %v1091
    %v1093 = vpop.f32.mrf.mxu0
    %v1094 = vadd.f32 %v304, %v1093
    %v1095 = vpop.f32.mrf.mxu0
    %v1096 = vadd.f32 %v300, %v1095
    %v1097 = vpop.f32.mrf.mxu0
    %v1098 = vadd.f32 %v304, %v1097
    %1099 = vdwg.mxu0
    %1100 = vmatprep.subr.bf16.mxu0 %v778
    %1101 = vmatpush1.bf16.msra.mxu0 %v777
    %1102 = vmatprep.subr.bf16.mxu0 %v770
    %1103 = vmatpush1.bf16.msra.mxu0 %v769
    %1104 = vmatprep.subr.bf16.mxu0 %v762
    %1105 = vmatpush1.bf16.msra.mxu0 %v761
    %1106 = vmatprep.subr.bf16.mxu0 %v754
    %1107 = vmatpush1.bf16.msra.mxu0 %v753
    %1108 = vmatprep.subr.bf16.mxu0 %v746
    %1109 = vmatpush1.bf16.msra.mxu0 %v745
    %1110 = vmatprep.subr.bf16.mxu0 %v738
    %1111 = vmatpush1.bf16.msra.mxu0 %v737
    %1112 = vmatprep.subr.bf16.mxu0 %v730
    %1113 = vmatpush1.bf16.msra.mxu0 %v729
    %1114 = vmatprep.subr.bf16.mxu0 %v722
    %1115 = vmatpush1.bf16.msra.mxu0 %v721
    %1116 = vmatprep.subr.bf16.mxu0 %v842
    %1117 = vmatpush2.bf16.msra.mxu0 %v841
    %1118 = vmatprep.subr.bf16.mxu0 %v834
    %1119 = vmatpush2.bf16.msra.mxu0 %v833
    %1120 = vmatprep.subr.bf16.mxu0 %v826
    %1121 = vmatpush2.bf16.msra.mxu0 %v825
    %1122 = vmatprep.subr.bf16.mxu0 %v818
    %1123 = vmatpush2.bf16.msra.mxu0 %v817
    %1124 = vmatprep.subr.bf16.mxu0 %v810
    %1125 = vmatpush2.bf16.msra.mxu0 %v809
    %1126 = vmatprep.subr.bf16.mxu0 %v802
    %1127 = vmatpush2.bf16.msra.mxu0 %v801
    %1128 = vmatprep.subr.bf16.mxu0 %v794
    %1129 = vmatpush2.bf16.msra.mxu0 %v793
    %1130 = vmatprep.subr.bf16.mxu0 %v786
    %1131 = vmatpush2.bf16.msra.mxu0 %v785
    %1132 = vmatprep.mubr.bf16.mxu0 %v328
    %1133 = vmatmul.mubr.bf16.gmra.mxu0 %v327
    %v1134 = vpop.f32.mrf.mxu0
    %v1135 = vadd.f32 %v308, %v1134
    %v1136 = vpop.f32.mrf.mxu0
    %v1137 = vadd.f32 %v312, %v1136
    %v1138 = vpop.f32.mrf.mxu0
    %v1139 = vadd.f32 %v308, %v1138
    %v1140 = vpop.f32.mrf.mxu0
    %v1141 = vadd.f32 %v312, %v1140
    %1142 = vdwg.mxu0
    %v1143 = vmax.f32 %v1006, 0.0
    %v1144 = vmax.f32 %v1008, 0.0
    %v1145 = vmax.f32 %v1049, 0.0
    %v1146 = vmax.f32 %v1051, 0.0
    %v1147 = vmax.f32 %v1092, 0.0
    %v1148 = vmax.f32 %v1094, 0.0
    %v1149 = vmax.f32 %v1135, 0.0
    %v1150 = vmax.f32 %v1137, 0.0
    %v1151 = vmax.f32 %v1010, 0.0
    %v1152 = vmax.f32 %v1012, 0.0
    %v1153 = vmax.f32 %v1053, 0.0
    %v1154 = vmax.f32 %v1055, 0.0
    %v1155 = vmax.f32 %v1096, 0.0
    %v1156 = vmax.f32 %v1098, 0.0
    %v1157 = vmax.f32 %v1139, 0.0
    %v1158 = vmax.f32 %v1141, 0.0
    %v1159 = vpack.c.bf16 %v1151, %v1143
    %v1160 = vpack.c.bf16 %v1152, %v1144
    %v1161 = vpack.c.bf16 %v1153, %v1145
    %v1162 = vpack.c.bf16 %v1154, %v1146
    %v1163 = vpack.c.bf16 %v1155, %v1147
    %v1164 = vpack.c.bf16 %v1156, %v1148
    %v1165 = vpack.c.bf16 %v1157, %v1149
    %v1166 = vpack.c.bf16 %v1158, %v1150
    %v1167 = vld [vmem:[#allocation10] sm:$0xf]
    %v1168 = vld [vmem:[#allocation10 + $0x4] sm:$0xf]
    %v1169 = vld [vmem:[#allocation10 + $0x8] sm:$0xf]
    %v1170 = vld [vmem:[#allocation10 + $0xc] sm:$0xf]
    %v1171 = vld [vmem:[#allocation10 + $0x10] sm:$0xf]
    %v1172 = vld [vmem:[#allocation10 + $0x14] sm:$0xf]
    %v1173 = vld [vmem:[#allocation10 + $0x18] sm:$0xf]
    %v1174 = vld [vmem:[#allocation10 + $0x1c] sm:$0xf]
    %v1175 = vld [vmem:[#allocation10 + $0x20] sm:$0xf]
    %v1176 = vld [vmem:[#allocation10 + $0x24] sm:$0xf]
    %v1177 = vld [vmem:[#allocation10 + $0x28] sm:$0xf]
    %v1178 = vld [vmem:[#allocation10 + $0x2c] sm:$0xf]
    %v1179 = vld [vmem:[#allocation10 + $0x30] sm:$0xf]
    %v1180 = vld [vmem:[#allocation10 + $0x34] sm:$0xf]
    %v1181 = vld [vmem:[#allocation10 + $0x38] sm:$0xf]
    %v1182 = vld [vmem:[#allocation10 + $0x3c] sm:$0xf]
    %v1183 = vld [vmem:[#allocation10 + $0x40] sm:$0xf]
    %v1184 = vld [vmem:[#allocation10 + $0x44] sm:$0xf]
    %v1185 = vld [vmem:[#allocation10 + $0x48] sm:$0xf]
    %v1186 = vld [vmem:[#allocation10 + $0x4c] sm:$0xf]
    %v1187 = vld [vmem:[#allocation10 + $0x50] sm:$0xf]
    %v1188 = vld [vmem:[#allocation10 + $0x54] sm:$0xf]
    %v1189 = vld [vmem:[#allocation10 + $0x58] sm:$0xf]
    %v1190 = vld [vmem:[#allocation10 + $0x5c] sm:$0xf]
    %v1191 = vld [vmem:[#allocation10 + $0x60] sm:$0xf]
    %v1192 = vld [vmem:[#allocation10 + $0x64] sm:$0xf]
    %v1193 = vld [vmem:[#allocation10 + $0x68] sm:$0xf]
    %v1194 = vld [vmem:[#allocation10 + $0x6c] sm:$0xf]
    %v1195 = vld [vmem:[#allocation10 + $0x70] sm:$0xf]
    %v1196 = vld [vmem:[#allocation10 + $0x74] sm:$0xf]
    %v1197 = vld [vmem:[#allocation10 + $0x78] sm:$0xf]
    %v1198 = vld [vmem:[#allocation10 + $0x7c] sm:$0xf]
    %v1199 = vld [vmem:[#allocation10 + $0x80] sm:$0xf]
    %v1200 = vld [vmem:[#allocation10 + $0x84] sm:$0xf]
    %v1201 = vld [vmem:[#allocation10 + $0x88] sm:$0xf]
    %v1202 = vld [vmem:[#allocation10 + $0x8c] sm:$0xf]
    %v1203 = vld [vmem:[#allocation10 + $0x90] sm:$0xf]
    %v1204 = vld [vmem:[#allocation10 + $0x94] sm:$0xf]
    %v1205 = vld [vmem:[#allocation10 + $0x98] sm:$0xf]
    %v1206 = vld [vmem:[#allocation10 + $0x9c] sm:$0xf]
    %v1207 = vld [vmem:[#allocation10 + $0xa0] sm:$0xf]
    %v1208 = vld [vmem:[#allocation10 + $0xa4] sm:$0xf]
    %v1209 = vld [vmem:[#allocation10 + $0xa8] sm:$0xf]
    %v1210 = vld [vmem:[#allocation10 + $0xac] sm:$0xf]
    %v1211 = vld [vmem:[#allocation10 + $0xb0] sm:$0xf]
    %v1212 = vld [vmem:[#allocation10 + $0xb4] sm:$0xf]
    %v1213 = vld [vmem:[#allocation10 + $0xb8] sm:$0xf]
    %v1214 = vld [vmem:[#allocation10 + $0xbc] sm:$0xf]
    %v1215 = vld [vmem:[#allocation10 + $0xc0] sm:$0xf]
    %v1216 = vld [vmem:[#allocation10 + $0xc4] sm:$0xf]
    %v1217 = vld [vmem:[#allocation10 + $0xc8] sm:$0xf]
    %v1218 = vld [vmem:[#allocation10 + $0xcc] sm:$0xf]
    %v1219 = vld [vmem:[#allocation10 + $0xd0] sm:$0xf]
    %v1220 = vld [vmem:[#allocation10 + $0xd4] sm:$0xf]
    %v1221 = vld [vmem:[#allocation10 + $0xd8] sm:$0xf]
    %v1222 = vld [vmem:[#allocation10 + $0xdc] sm:$0xf]
    %v1223 = vld [vmem:[#allocation10 + $0xe0] sm:$0xf]
    %v1224 = vld [vmem:[#allocation10 + $0xe4] sm:$0xf]
    %v1225 = vld [vmem:[#allocation10 + $0xe8] sm:$0xf]
    %v1226 = vld [vmem:[#allocation10 + $0xec] sm:$0xf]
    %v1227 = vld [vmem:[#allocation10 + $0xf0] sm:$0xf]
    %v1228 = vld [vmem:[#allocation10 + $0xf4] sm:$0xf]
    %v1229 = vld [vmem:[#allocation10 + $0xf8] sm:$0xf]
    %v1230 = vld [vmem:[#allocation10 + $0xfc] sm:$0xf]
    %v1231 = vld [vmem:[#allocation10 + $0x100] sm:$0xf]
    %v1232 = vld [vmem:[#allocation10 + $0x104] sm:$0xf]
    %v1233 = vld [vmem:[#allocation10 + $0x108] sm:$0xf]
    %v1234 = vld [vmem:[#allocation10 + $0x10c] sm:$0xf]
    %v1235 = vld [vmem:[#allocation10 + $0x110] sm:$0xf]
    %v1236 = vld [vmem:[#allocation10 + $0x114] sm:$0xf]
    %v1237 = vld [vmem:[#allocation10 + $0x118] sm:$0xf]
    %v1238 = vld [vmem:[#allocation10 + $0x11c] sm:$0xf]
    %v1239 = vld [vmem:[#allocation10 + $0x120] sm:$0xf]
    %v1240 = vld [vmem:[#allocation10 + $0x124] sm:$0xf]
    %v1241 = vld [vmem:[#allocation10 + $0x128] sm:$0xf]
    %v1242 = vld [vmem:[#allocation10 + $0x12c] sm:$0xf]
    %v1243 = vld [vmem:[#allocation10 + $0x130] sm:$0xf]
    %v1244 = vld [vmem:[#allocation10 + $0x134] sm:$0xf]
    %v1245 = vld [vmem:[#allocation10 + $0x138] sm:$0xf]
    %v1246 = vld [vmem:[#allocation10 + $0x13c] sm:$0xf]
    %v1247 = vld [vmem:[#allocation10 + $0x140] sm:$0xf]
    %v1248 = vld [vmem:[#allocation10 + $0x144] sm:$0xf]
    %v1249 = vld [vmem:[#allocation10 + $0x148] sm:$0xf]
    %v1250 = vld [vmem:[#allocation10 + $0x14c] sm:$0xf]
    %v1251 = vld [vmem:[#allocation10 + $0x150] sm:$0xf]
    %v1252 = vld [vmem:[#allocation10 + $0x154] sm:$0xf]
    %v1253 = vld [vmem:[#allocation10 + $0x158] sm:$0xf]
    %v1254 = vld [vmem:[#allocation10 + $0x15c] sm:$0xf]
    %v1255 = vld [vmem:[#allocation10 + $0x160] sm:$0xf]
    %v1256 = vld [vmem:[#allocation10 + $0x164] sm:$0xf]
    %v1257 = vld [vmem:[#allocation10 + $0x168] sm:$0xf]
    %v1258 = vld [vmem:[#allocation10 + $0x16c] sm:$0xf]
    %v1259 = vld [vmem:[#allocation10 + $0x170] sm:$0xf]
    %v1260 = vld [vmem:[#allocation10 + $0x174] sm:$0xf]
    %v1261 = vld [vmem:[#allocation10 + $0x178] sm:$0xf]
    %v1262 = vld [vmem:[#allocation10 + $0x17c] sm:$0xf]
    %v1263 = vld [vmem:[#allocation10 + $0x180] sm:$0xf]
    %v1264 = vld [vmem:[#allocation10 + $0x184] sm:$0xf]
    %v1265 = vld [vmem:[#allocation10 + $0x188] sm:$0xf]
    %v1266 = vld [vmem:[#allocation10 + $0x18c] sm:$0xf]
    %v1267 = vld [vmem:[#allocation10 + $0x190] sm:$0xf]
    %v1268 = vld [vmem:[#allocation10 + $0x194] sm:$0xf]
    %v1269 = vld [vmem:[#allocation10 + $0x198] sm:$0xf]
    %v1270 = vld [vmem:[#allocation10 + $0x19c] sm:$0xf]
    %v1271 = vld [vmem:[#allocation10 + $0x1a0] sm:$0xf]
    %v1272 = vld [vmem:[#allocation10 + $0x1a4] sm:$0xf]
    %v1273 = vld [vmem:[#allocation10 + $0x1a8] sm:$0xf]
    %v1274 = vld [vmem:[#allocation10 + $0x1ac] sm:$0xf]
    %v1275 = vld [vmem:[#allocation10 + $0x1b0] sm:$0xf]
    %v1276 = vld [vmem:[#allocation10 + $0x1b4] sm:$0xf]
    %v1277 = vld [vmem:[#allocation10 + $0x1b8] sm:$0xf]
    %v1278 = vld [vmem:[#allocation10 + $0x1bc] sm:$0xf]
    %v1279 = vld [vmem:[#allocation10 + $0x1c0] sm:$0xf]
    %v1280 = vld [vmem:[#allocation10 + $0x1c4] sm:$0xf]
    %v1281 = vld [vmem:[#allocation10 + $0x1c8] sm:$0xf]
    %v1282 = vld [vmem:[#allocation10 + $0x1cc] sm:$0xf]
    %v1283 = vld [vmem:[#allocation10 + $0x1d0] sm:$0xf]
    %v1284 = vld [vmem:[#allocation10 + $0x1d4] sm:$0xf]
    %v1285 = vld [vmem:[#allocation10 + $0x1d8] sm:$0xf]
    %v1286 = vld [vmem:[#allocation10 + $0x1dc] sm:$0xf]
    %v1287 = vld [vmem:[#allocation10 + $0x1e0] sm:$0xf]
    %v1288 = vld [vmem:[#allocation10 + $0x1e4] sm:$0xf]
    %v1289 = vld [vmem:[#allocation10 + $0x1e8] sm:$0xf]
    %v1290 = vld [vmem:[#allocation10 + $0x1ec] sm:$0xf]
    %v1291 = vld [vmem:[#allocation10 + $0x1f0] sm:$0xf]
    %v1292 = vld [vmem:[#allocation10 + $0x1f4] sm:$0xf]
    %v1293 = vld [vmem:[#allocation10 + $0x1f8] sm:$0xf]
    %v1294 = vld [vmem:[#allocation10 + $0x1fc] sm:$0xf]
    %v1295 = vld [vmem:[%s5] sm:$0x1]
    %v1297 = vlaneseq
    %v1298 = vshrl.u32 %v1297, 7
    %v1299 = vsub.s32 0, %v1298
    %v1300 = vrot.slane %v1295, %v1299
    %v1430 = vunpack.c.l.b16 %v1167
    %v1431 = vunpack.c.l.b16 %v1168
    %v1432 = vunpack.c.l.b16 %v1169
    %v1433 = vunpack.c.l.b16 %v1170
    %v1434 = vunpack.c.l.b16 %v1171
    %v1435 = vunpack.c.l.b16 %v1172
    %v1436 = vunpack.c.l.b16 %v1173
    %v1437 = vunpack.c.l.b16 %v1174
    %v1438 = vunpack.c.l.b16 %v1175
    %v1439 = vunpack.c.l.b16 %v1176
    %v1440 = vunpack.c.l.b16 %v1177
    %v1441 = vunpack.c.l.b16 %v1178
    %v1442 = vunpack.c.l.b16 %v1179
    %v1443 = vunpack.c.l.b16 %v1180
    %v1444 = vunpack.c.l.b16 %v1181
    %v1445 = vunpack.c.l.b16 %v1182
    %v1446 = vunpack.c.l.b16 %v1183
    %v1447 = vunpack.c.l.b16 %v1184
    %v1448 = vunpack.c.l.b16 %v1185
    %v1449 = vunpack.c.l.b16 %v1186
    %v1450 = vunpack.c.l.b16 %v1187
    %v1451 = vunpack.c.l.b16 %v1188
    %v1452 = vunpack.c.l.b16 %v1189
    %v1453 = vunpack.c.l.b16 %v1190
    %v1454 = vunpack.c.l.b16 %v1191
    %v1455 = vunpack.c.l.b16 %v1192
    %v1456 = vunpack.c.l.b16 %v1193
    %v1457 = vunpack.c.l.b16 %v1194
    %v1458 = vunpack.c.l.b16 %v1195
    %v1459 = vunpack.c.l.b16 %v1196
    %v1460 = vunpack.c.l.b16 %v1197
    %v1461 = vunpack.c.l.b16 %v1198
    %v1462 = vunpack.c.l.b16 %v1199
    %v1463 = vunpack.c.l.b16 %v1200
    %v1464 = vunpack.c.l.b16 %v1201
    %v1465 = vunpack.c.l.b16 %v1202
    %v1466 = vunpack.c.l.b16 %v1203
    %v1467 = vunpack.c.l.b16 %v1204
    %v1468 = vunpack.c.l.b16 %v1205
    %v1469 = vunpack.c.l.b16 %v1206
    %v1470 = vunpack.c.l.b16 %v1207
    %v1471 = vunpack.c.l.b16 %v1208
    %v1472 = vunpack.c.l.b16 %v1209
    %v1473 = vunpack.c.l.b16 %v1210
    %v1474 = vunpack.c.l.b16 %v1211
    %v1475 = vunpack.c.l.b16 %v1212
    %v1476 = vunpack.c.l.b16 %v1213
    %v1477 = vunpack.c.l.b16 %v1214
    %v1478 = vunpack.c.l.b16 %v1215
    %v1479 = vunpack.c.l.b16 %v1216
    %v1480 = vunpack.c.l.b16 %v1217
    %v1481 = vunpack.c.l.b16 %v1218
    %v1482 = vunpack.c.l.b16 %v1219
    %v1483 = vunpack.c.l.b16 %v1220
    %v1484 = vunpack.c.l.b16 %v1221
    %v1485 = vunpack.c.l.b16 %v1222
    %v1486 = vunpack.c.l.b16 %v1223
    %v1487 = vunpack.c.l.b16 %v1224
    %v1488 = vunpack.c.l.b16 %v1225
    %v1489 = vunpack.c.l.b16 %v1226
    %v1490 = vunpack.c.l.b16 %v1227
    %v1491 = vunpack.c.l.b16 %v1228
    %v1492 = vunpack.c.l.b16 %v1229
    %v1493 = vunpack.c.l.b16 %v1230
    %v1494 = vunpack.c.l.b16 %v1231
    %v1495 = vunpack.c.l.b16 %v1232
    %v1496 = vunpack.c.l.b16 %v1233
    %v1497 = vunpack.c.l.b16 %v1234
    %v1498 = vunpack.c.l.b16 %v1235
    %v1499 = vunpack.c.l.b16 %v1236
    %v1500 = vunpack.c.l.b16 %v1237
    %v1501 = vunpack.c.l.b16 %v1238
    %v1502 = vunpack.c.l.b16 %v1239
    %v1503 = vunpack.c.l.b16 %v1240
    %v1504 = vunpack.c.l.b16 %v1241
    %v1505 = vunpack.c.l.b16 %v1242
    %v1506 = vunpack.c.l.b16 %v1243
    %v1507 = vunpack.c.l.b16 %v1244
    %v1508 = vunpack.c.l.b16 %v1245
    %v1509 = vunpack.c.l.b16 %v1246
    %v1510 = vunpack.c.l.b16 %v1247
    %v1511 = vunpack.c.l.b16 %v1248
    %v1512 = vunpack.c.l.b16 %v1249
    %v1513 = vunpack.c.l.b16 %v1250
    %v1514 = vunpack.c.l.b16 %v1251
    %v1515 = vunpack.c.l.b16 %v1252
    %v1516 = vunpack.c.l.b16 %v1253
    %v1517 = vunpack.c.l.b16 %v1254
    %v1518 = vunpack.c.l.b16 %v1255
    %v1519 = vunpack.c.l.b16 %v1256
    %v1520 = vunpack.c.l.b16 %v1257
    %v1521 = vunpack.c.l.b16 %v1258
    %v1522 = vunpack.c.l.b16 %v1259
    %v1523 = vunpack.c.l.b16 %v1260
    %v1524 = vunpack.c.l.b16 %v1261
    %v1525 = vunpack.c.l.b16 %v1262
    %v1526 = vunpack.c.l.b16 %v1263
    %v1527 = vunpack.c.l.b16 %v1264
    %v1528 = vunpack.c.l.b16 %v1265
    %v1529 = vunpack.c.l.b16 %v1266
    %v1530 = vunpack.c.l.b16 %v1267
    %v1531 = vunpack.c.l.b16 %v1268
    %v1532 = vunpack.c.l.b16 %v1269
    %v1533 = vunpack.c.l.b16 %v1270
    %v1534 = vunpack.c.l.b16 %v1271
    %v1535 = vunpack.c.l.b16 %v1272
    %v1536 = vunpack.c.l.b16 %v1273
    %v1537 = vunpack.c.l.b16 %v1274
    %v1538 = vunpack.c.l.b16 %v1275
    %v1539 = vunpack.c.l.b16 %v1276
    %v1540 = vunpack.c.l.b16 %v1277
    %v1541 = vunpack.c.l.b16 %v1278
    %v1542 = vunpack.c.l.b16 %v1279
    %v1543 = vunpack.c.l.b16 %v1280
    %v1544 = vunpack.c.l.b16 %v1281
    %v1545 = vunpack.c.l.b16 %v1282
    %v1546 = vunpack.c.l.b16 %v1283
    %v1547 = vunpack.c.l.b16 %v1284
    %v1548 = vunpack.c.l.b16 %v1285
    %v1549 = vunpack.c.l.b16 %v1286
    %v1550 = vunpack.c.l.b16 %v1287
    %v1551 = vunpack.c.l.b16 %v1288
    %v1552 = vunpack.c.l.b16 %v1289
    %v1553 = vunpack.c.l.b16 %v1290
    %v1554 = vunpack.c.l.b16 %v1291
    %v1555 = vunpack.c.l.b16 %v1292
    %v1556 = vunpack.c.l.b16 %v1293
    %v1557 = vunpack.c.l.b16 %v1294
    %v1558 = vpack.c.b16 %v1431, %v1430
    %v1559 = vpack.c.b16 %v1433, %v1432
    %v1560 = vpack.c.b16 %v1435, %v1434
    %v1561 = vpack.c.b16 %v1437, %v1436
    %v1562 = vpack.c.b16 %v1439, %v1438
    %v1563 = vpack.c.b16 %v1441, %v1440
    %v1564 = vpack.c.b16 %v1443, %v1442
    %v1565 = vpack.c.b16 %v1445, %v1444
    %v1566 = vpack.c.b16 %v1447, %v1446
    %v1567 = vpack.c.b16 %v1449, %v1448
    %v1568 = vpack.c.b16 %v1451, %v1450
    %v1569 = vpack.c.b16 %v1453, %v1452
    %v1570 = vpack.c.b16 %v1455, %v1454
    %v1571 = vpack.c.b16 %v1457, %v1456
    %v1572 = vpack.c.b16 %v1459, %v1458
    %v1573 = vpack.c.b16 %v1461, %v1460
    %v1574 = vpack.c.b16 %v1463, %v1462
    %v1575 = vpack.c.b16 %v1465, %v1464
    %v1576 = vpack.c.b16 %v1467, %v1466
    %v1577 = vpack.c.b16 %v1469, %v1468
    %v1578 = vpack.c.b16 %v1471, %v1470
    %v1579 = vpack.c.b16 %v1473, %v1472
    %v1580 = vpack.c.b16 %v1475, %v1474
    %v1581 = vpack.c.b16 %v1477, %v1476
    %v1582 = vpack.c.b16 %v1479, %v1478
    %v1583 = vpack.c.b16 %v1481, %v1480
    %v1584 = vpack.c.b16 %v1483, %v1482
    %v1585 = vpack.c.b16 %v1485, %v1484
    %v1586 = vpack.c.b16 %v1487, %v1486
    %v1587 = vpack.c.b16 %v1489, %v1488
    %v1588 = vpack.c.b16 %v1491, %v1490
    %v1589 = vpack.c.b16 %v1493, %v1492
    %v1590 = vpack.c.b16 %v1495, %v1494
    %v1591 = vpack.c.b16 %v1497, %v1496
    %v1592 = vpack.c.b16 %v1499, %v1498
    %v1593 = vpack.c.b16 %v1501, %v1500
    %v1594 = vpack.c.b16 %v1503, %v1502
    %v1595 = vpack.c.b16 %v1505, %v1504
    %v1596 = vpack.c.b16 %v1507, %v1506
    %v1597 = vpack.c.b16 %v1509, %v1508
    %v1598 = vpack.c.b16 %v1511, %v1510
    %v1599 = vpack.c.b16 %v1513, %v1512
    %v1600 = vpack.c.b16 %v1515, %v1514
    %v1601 = vpack.c.b16 %v1517, %v1516
    %v1602 = vpack.c.b16 %v1519, %v1518
    %v1603 = vpack.c.b16 %v1521, %v1520
    %v1604 = vpack.c.b16 %v1523, %v1522
    %v1605 = vpack.c.b16 %v1525, %v1524
    %v1606 = vpack.c.b16 %v1527, %v1526
    %v1607 = vpack.c.b16 %v1529, %v1528
    %v1608 = vpack.c.b16 %v1531, %v1530
    %v1609 = vpack.c.b16 %v1533, %v1532
    %v1610 = vpack.c.b16 %v1535, %v1534
    %v1611 = vpack.c.b16 %v1537, %v1536
    %v1612 = vpack.c.b16 %v1539, %v1538
    %v1613 = vpack.c.b16 %v1541, %v1540
    %v1614 = vpack.c.b16 %v1543, %v1542
    %v1615 = vpack.c.b16 %v1545, %v1544
    %v1616 = vpack.c.b16 %v1547, %v1546
    %v1617 = vpack.c.b16 %v1549, %v1548
    %v1618 = vpack.c.b16 %v1551, %v1550
    %v1619 = vpack.c.b16 %v1553, %v1552
    %v1620 = vpack.c.b16 %v1555, %v1554
    %v1621 = vpack.c.b16 %v1557, %v1556
    %1686 = vmatprep.subr.bf16.mxu0 0
    %1687 = vmatpush1.bf16.msra.mxu0 %v1565
    %1688 = vmatprep.subr.bf16.mxu0 0
    %1689 = vmatpush1.bf16.msra.mxu0 %v1564
    %1690 = vmatprep.subr.bf16.mxu0 0
    %1691 = vmatpush1.bf16.msra.mxu0 %v1563
    %1692 = vmatprep.subr.bf16.mxu0 0
    %1693 = vmatpush1.bf16.msra.mxu0 %v1562
    %1694 = vmatprep.subr.bf16.mxu0 0
    %1695 = vmatpush1.bf16.msra.mxu0 %v1561
    %1696 = vmatprep.subr.bf16.mxu0 0
    %1697 = vmatpush1.bf16.msra.mxu0 %v1560
    %1698 = vmatprep.subr.bf16.mxu0 0
    %1699 = vmatpush1.bf16.msra.mxu0 %v1559
    %1700 = vmatprep.subr.bf16.mxu0 0
    %1701 = vmatpush1.bf16.msra.mxu0 %v1558
    %1702 = vmatprep.subr.bf16.mxu0 0
    %1703 = vmatpush2.bf16.msra.mxu0 %v1573
    %1704 = vmatprep.subr.bf16.mxu0 0
    %1705 = vmatpush2.bf16.msra.mxu0 %v1572
    %1706 = vmatprep.subr.bf16.mxu0 0
    %1707 = vmatpush2.bf16.msra.mxu0 %v1571
    %1708 = vmatprep.subr.bf16.mxu0 0
    %1709 = vmatpush2.bf16.msra.mxu0 %v1570
    %1710 = vmatprep.subr.bf16.mxu0 0
    %1711 = vmatpush2.bf16.msra.mxu0 %v1569
    %1712 = vmatprep.subr.bf16.mxu0 0
    %1713 = vmatpush2.bf16.msra.mxu0 %v1568
    %1714 = vmatprep.subr.bf16.mxu0 0
    %1715 = vmatpush2.bf16.msra.mxu0 %v1567
    %1716 = vmatprep.subr.bf16.mxu0 0
    %1717 = vmatpush2.bf16.msra.mxu0 %v1566
    %1718 = vmatprep.mubr.bf16.mxu0 %v1160
    %1719 = vmatmul.mubr.bf16.gmra.mxu0 %v1159
    %v1720 = vpop.f32.mrf.mxu0
    %v1721 = vadd.f32 %v1300, %v1720
    %v1722 = vpop.f32.mrf.mxu0
    %v1723 = vpop.f32.mrf.mxu0
    %v1724 = vadd.f32 %v1300, %v1723
    %v1725 = vpop.f32.mrf.mxu0
    %1726 = vdwg.mxu0
    %1727 = vmatprep.subr.bf16.mxu0 0
    %1728 = vmatpush1.bf16.msra.mxu0 %v1581
    %1729 = vmatprep.subr.bf16.mxu0 0
    %1730 = vmatpush1.bf16.msra.mxu0 %v1580
    %1731 = vmatprep.subr.bf16.mxu0 0
    %1732 = vmatpush1.bf16.msra.mxu0 %v1579
    %1733 = vmatprep.subr.bf16.mxu0 0
    %1734 = vmatpush1.bf16.msra.mxu0 %v1578
    %1735 = vmatprep.subr.bf16.mxu0 0
    %1736 = vmatpush1.bf16.msra.mxu0 %v1577
    %1737 = vmatprep.subr.bf16.mxu0 0
    %1738 = vmatpush1.bf16.msra.mxu0 %v1576
    %1739 = vmatprep.subr.bf16.mxu0 0
    %1740 = vmatpush1.bf16.msra.mxu0 %v1575
    %1741 = vmatprep.subr.bf16.mxu0 0
    %1742 = vmatpush1.bf16.msra.mxu0 %v1574
    %1743 = vmatprep.subr.bf16.mxu0 0
    %1744 = vmatpush2.bf16.msra.mxu0 %v1589
    %1745 = vmatprep.subr.bf16.mxu0 0
    %1746 = vmatpush2.bf16.msra.mxu0 %v1588
    %1747 = vmatprep.subr.bf16.mxu0 0
    %1748 = vmatpush2.bf16.msra.mxu0 %v1587
    %1749 = vmatprep.subr.bf16.mxu0 0
    %1750 = vmatpush2.bf16.msra.mxu0 %v1586
    %1751 = vmatprep.subr.bf16.mxu0 0
    %1752 = vmatpush2.bf16.msra.mxu0 %v1585
    %1753 = vmatprep.subr.bf16.mxu0 0
    %1754 = vmatpush2.bf16.msra.mxu0 %v1584
    %1755 = vmatprep.subr.bf16.mxu0 0
    %1756 = vmatpush2.bf16.msra.mxu0 %v1583
    %1757 = vmatprep.subr.bf16.mxu0 0
    %1758 = vmatpush2.bf16.msra.mxu0 %v1582
    %1759 = vmatprep.mubr.bf16.mxu0 %v1162
    %1760 = vmatmul.mubr.bf16.gmra.mxu0 %v1161
    %v1761 = vpop.f32.mrf.mxu0
    %v1762 = vadd.f32 %v1721, %v1761
    %v1763 = vpop.f32.mrf.mxu0
    %v1764 = vpop.f32.mrf.mxu0
    %v1765 = vadd.f32 %v1724, %v1764
    %v1766 = vpop.f32.mrf.mxu0
    %1767 = vdwg.mxu0
    %1768 = vmatprep.subr.bf16.mxu0 0
    %1769 = vmatpush1.bf16.msra.mxu0 %v1597
    %1770 = vmatprep.subr.bf16.mxu0 0
    %1771 = vmatpush1.bf16.msra.mxu0 %v1596
    %1772 = vmatprep.subr.bf16.mxu0 0
    %1773 = vmatpush1.bf16.msra.mxu0 %v1595
    %1774 = vmatprep.subr.bf16.mxu0 0
    %1775 = vmatpush1.bf16.msra.mxu0 %v1594
    %1776 = vmatprep.subr.bf16.mxu0 0
    %1777 = vmatpush1.bf16.msra.mxu0 %v1593
    %1778 = vmatprep.subr.bf16.mxu0 0
    %1779 = vmatpush1.bf16.msra.mxu0 %v1592
    %1780 = vmatprep.subr.bf16.mxu0 0
    %1781 = vmatpush1.bf16.msra.mxu0 %v1591
    %1782 = vmatprep.subr.bf16.mxu0 0
    %1783 = vmatpush1.bf16.msra.mxu0 %v1590
    %1784 = vmatprep.subr.bf16.mxu0 0
    %1785 = vmatpush2.bf16.msra.mxu0 %v1605
    %1786 = vmatprep.subr.bf16.mxu0 0
    %1787 = vmatpush2.bf16.msra.mxu0 %v1604
    %1788 = vmatprep.subr.bf16.mxu0 0
    %1789 = vmatpush2.bf16.msra.mxu0 %v1603
    %1790 = vmatprep.subr.bf16.mxu0 0
    %1791 = vmatpush2.bf16.msra.mxu0 %v1602
    %1792 = vmatprep.subr.bf16.mxu0 0
    %1793 = vmatpush2.bf16.msra.mxu0 %v1601
    %1794 = vmatprep.subr.bf16.mxu0 0
    %1795 = vmatpush2.bf16.msra.mxu0 %v1600
    %1796 = vmatprep.subr.bf16.mxu0 0
    %1797 = vmatpush2.bf16.msra.mxu0 %v1599
    %1798 = vmatprep.subr.bf16.mxu0 0
    %1799 = vmatpush2.bf16.msra.mxu0 %v1598
    %1800 = vmatprep.mubr.bf16.mxu0 %v1164
    %1801 = vmatmul.mubr.bf16.gmra.mxu0 %v1163
    %v1802 = vpop.f32.mrf.mxu0
    %v1803 = vadd.f32 %v1762, %v1802
    %v1804 = vpop.f32.mrf.mxu0
    %v1805 = vpop.f32.mrf.mxu0
    %v1806 = vadd.f32 %v1765, %v1805
    %v1807 = vpop.f32.mrf.mxu0
    %1808 = vdwg.mxu0
    %1809 = vmatprep.subr.bf16.mxu0 0
    %1810 = vmatpush1.bf16.msra.mxu0 %v1613
    %1811 = vmatprep.subr.bf16.mxu0 0
    %1812 = vmatpush1.bf16.msra.mxu0 %v1612
    %1813 = vmatprep.subr.bf16.mxu0 0
    %1814 = vmatpush1.bf16.msra.mxu0 %v1611
    %1815 = vmatprep.subr.bf16.mxu0 0
    %1816 = vmatpush1.bf16.msra.mxu0 %v1610
    %1817 = vmatprep.subr.bf16.mxu0 0
    %1818 = vmatpush1.bf16.msra.mxu0 %v1609
    %1819 = vmatprep.subr.bf16.mxu0 0
    %1820 = vmatpush1.bf16.msra.mxu0 %v1608
    %1821 = vmatprep.subr.bf16.mxu0 0
    %1822 = vmatpush1.bf16.msra.mxu0 %v1607
    %1823 = vmatprep.subr.bf16.mxu0 0
    %1824 = vmatpush1.bf16.msra.mxu0 %v1606
    %1825 = vmatprep.subr.bf16.mxu0 0
    %1826 = vmatpush2.bf16.msra.mxu0 %v1621
    %1827 = vmatprep.subr.bf16.mxu0 0
    %1828 = vmatpush2.bf16.msra.mxu0 %v1620
    %1829 = vmatprep.subr.bf16.mxu0 0
    %1830 = vmatpush2.bf16.msra.mxu0 %v1619
    %1831 = vmatprep.subr.bf16.mxu0 0
    %1832 = vmatpush2.bf16.msra.mxu0 %v1618
    %1833 = vmatprep.subr.bf16.mxu0 0
    %1834 = vmatpush2.bf16.msra.mxu0 %v1617
    %1835 = vmatprep.subr.bf16.mxu0 0
    %1836 = vmatpush2.bf16.msra.mxu0 %v1616
    %1837 = vmatprep.subr.bf16.mxu0 0
    %1838 = vmatpush2.bf16.msra.mxu0 %v1615
    %1839 = vmatprep.subr.bf16.mxu0 0
    %1840 = vmatpush2.bf16.msra.mxu0 %v1614
    %1841 = vmatprep.mubr.bf16.mxu0 %v1166
    %1842 = vmatmul.mubr.bf16.gmra.mxu0 %v1165
    %v1843 = vpop.f32.mrf.mxu0
    %v1844 = vadd.f32 %v1803, %v1843
    %v1845 = vpop.f32.mrf.mxu0
    %v1846 = vpop.f32.mrf.mxu0
    %v1847 = vadd.f32 %v1806, %v1846
    %v1848 = vpop.f32.mrf.mxu0
    %1849 = vdwg.mxu0
    %v1850 = vmax.f32 %v1844, 0.0
    %v1851 = vmax.f32 %v1847, 0.0
    %v1852 = vld [vmem:[#allocation11] sm:$0xff]
    %v1853 = vld [vmem:[#allocation11 + $0x8] sm:$0xff]
    %v1854 = vld [vmem:[#allocation11 + $0x10] sm:$0xff]
    %v1855 = vld [vmem:[#allocation11 + $0x18] sm:$0xff]
    %v1856 = vld [vmem:[#allocation11 + $0x20] sm:$0xff]
    %v1857 = vld [vmem:[#allocation11 + $0x28] sm:$0xff]
    %v1858 = vld [vmem:[#allocation11 + $0x30] sm:$0xff]
    %v1859 = vld [vmem:[#allocation11 + $0x38] sm:$0xff]
    %v1860 = vld [vmem:[#allocation11 + $0x40] sm:$0xff]
    %v1861 = vld [vmem:[#allocation11 + $0x48] sm:$0xff]
    %v1862 = vld [vmem:[#allocation11 + $0x50] sm:$0xff]
    %v1863 = vld [vmem:[#allocation11 + $0x58] sm:$0xff]
    %v1864 = vld [vmem:[#allocation11 + $0x60] sm:$0xff]
    %v1865 = vld [vmem:[#allocation11 + $0x68] sm:$0xff]
    %v1866 = vld [vmem:[#allocation11 + $0x70] sm:$0xff]
    %v1867 = vld [vmem:[#allocation11 + $0x78] sm:$0xff]
    %v1868 = vld [vmem:[#allocation11 + $0x80] sm:$0xff]
    %v1869 = vld [vmem:[#allocation11 + $0x88] sm:$0xff]
    %v1870 = vld [vmem:[#allocation11 + $0x90] sm:$0xff]
    %v1871 = vld [vmem:[#allocation11 + $0x98] sm:$0xff]
    %v1872 = vld [vmem:[#allocation11 + $0xa0] sm:$0xff]
    %v1873 = vld [vmem:[#allocation11 + $0xa8] sm:$0xff]
    %v1874 = vld [vmem:[#allocation11 + $0xb0] sm:$0xff]
    %v1875 = vld [vmem:[#allocation11 + $0xb8] sm:$0xff]
    %v1876 = vld [vmem:[#allocation11 + $0xc0] sm:$0xff]
    %v1877 = vld [vmem:[#allocation11 + $0xc8] sm:$0xff]
    %v1878 = vld [vmem:[#allocation11 + $0xd0] sm:$0xff]
    %v1879 = vld [vmem:[#allocation11 + $0xd8] sm:$0xff]
    %v1880 = vld [vmem:[#allocation11 + $0xe0] sm:$0xff]
    %v1881 = vld [vmem:[#allocation11 + $0xe8] sm:$0xff]
    %v1882 = vld [vmem:[#allocation11 + $0xf0] sm:$0xff]
    %v1883 = vld [vmem:[#allocation11 + $0xf8] sm:$0xff]
    %v1884 = vld [vmem:[#allocation11 + $0x100] sm:$0xff]
    %v1885 = vld [vmem:[#allocation11 + $0x108] sm:$0xff]
    %v1886 = vld [vmem:[#allocation11 + $0x110] sm:$0xff]
    %v1887 = vld [vmem:[#allocation11 + $0x118] sm:$0xff]
    %v1888 = vld [vmem:[#allocation11 + $0x120] sm:$0xff]
    %v1889 = vld [vmem:[#allocation11 + $0x128] sm:$0xff]
    %v1890 = vld [vmem:[#allocation11 + $0x130] sm:$0xff]
    %v1891 = vld [vmem:[#allocation11 + $0x138] sm:$0xff]
    %v1892 = vld [vmem:[#allocation11 + $0x140] sm:$0xff]
    %v1893 = vld [vmem:[#allocation11 + $0x148] sm:$0xff]
    %v1894 = vld [vmem:[#allocation11 + $0x150] sm:$0xff]
    %v1895 = vld [vmem:[#allocation11 + $0x158] sm:$0xff]
    %v1896 = vld [vmem:[#allocation11 + $0x160] sm:$0xff]
    %v1897 = vld [vmem:[#allocation11 + $0x168] sm:$0xff]
    %v1898 = vld [vmem:[#allocation11 + $0x170] sm:$0xff]
    %v1899 = vld [vmem:[#allocation11 + $0x178] sm:$0xff]
    %v1900 = vld [vmem:[#allocation11 + $0x180] sm:$0xff]
    %v1901 = vld [vmem:[#allocation11 + $0x188] sm:$0xff]
    %v1902 = vld [vmem:[#allocation11 + $0x190] sm:$0xff]
    %v1903 = vld [vmem:[#allocation11 + $0x198] sm:$0xff]
    %v1904 = vld [vmem:[#allocation11 + $0x1a0] sm:$0xff]
    %v1905 = vld [vmem:[#allocation11 + $0x1a8] sm:$0xff]
    %v1906 = vld [vmem:[#allocation11 + $0x1b0] sm:$0xff]
    %v1907 = vld [vmem:[#allocation11 + $0x1b8] sm:$0xff]
    %v1908 = vld [vmem:[#allocation11 + $0x1c0] sm:$0xff]
    %v1909 = vld [vmem:[#allocation11 + $0x1c8] sm:$0xff]
    %v1910 = vld [vmem:[#allocation11 + $0x1d0] sm:$0xff]
    %v1911 = vld [vmem:[#allocation11 + $0x1d8] sm:$0xff]
    %v1912 = vld [vmem:[#allocation11 + $0x1e0] sm:$0xff]
    %v1913 = vld [vmem:[#allocation11 + $0x1e8] sm:$0xff]
    %v1914 = vld [vmem:[#allocation11 + $0x1f0] sm:$0xff]
    %v1915 = vld [vmem:[#allocation11 + $0x1f8] sm:$0xff]
    %v1916 = vld [vmem:[#allocation11 + $0x200] sm:$0xff]
    %v1917 = vld [vmem:[#allocation11 + $0x208] sm:$0xff]
    %v1918 = vld [vmem:[#allocation11 + $0x210] sm:$0xff]
    %v1919 = vld [vmem:[#allocation11 + $0x218] sm:$0xff]
    %v1920 = vld [vmem:[#allocation11 + $0x220] sm:$0xff]
    %v1921 = vld [vmem:[#allocation11 + $0x228] sm:$0xff]
    %v1922 = vld [vmem:[#allocation11 + $0x230] sm:$0xff]
    %v1923 = vld [vmem:[#allocation11 + $0x238] sm:$0xff]
    %v1924 = vld [vmem:[#allocation11 + $0x240] sm:$0xff]
    %v1925 = vld [vmem:[#allocation11 + $0x248] sm:$0xff]
    %v1926 = vld [vmem:[#allocation11 + $0x250] sm:$0xff]
    %v1927 = vld [vmem:[#allocation11 + $0x258] sm:$0xff]
    %v1928 = vld [vmem:[#allocation11 + $0x260] sm:$0xff]
    %v1929 = vld [vmem:[#allocation11 + $0x268] sm:$0xff]
    %v1930 = vld [vmem:[#allocation11 + $0x270] sm:$0xff]
    %v1931 = vld [vmem:[#allocation11 + $0x278] sm:$0xff]
    %v1932 = vld [vmem:[#allocation11 + $0x280] sm:$0xff]
    %v1933 = vld [vmem:[#allocation11 + $0x288] sm:$0xff]
    %v1934 = vld [vmem:[#allocation11 + $0x290] sm:$0xff]
    %v1935 = vld [vmem:[#allocation11 + $0x298] sm:$0xff]
    %v1936 = vld [vmem:[#allocation11 + $0x2a0] sm:$0xff]
    %v1937 = vld [vmem:[#allocation11 + $0x2a8] sm:$0xff]
    %v1938 = vld [vmem:[#allocation11 + $0x2b0] sm:$0xff]
    %v1939 = vld [vmem:[#allocation11 + $0x2b8] sm:$0xff]
    %v1940 = vld [vmem:[#allocation11 + $0x2c0] sm:$0xff]
    %v1941 = vld [vmem:[#allocation11 + $0x2c8] sm:$0xff]
    %v1942 = vld [vmem:[#allocation11 + $0x2d0] sm:$0xff]
    %v1943 = vld [vmem:[#allocation11 + $0x2d8] sm:$0xff]
    %v1944 = vld [vmem:[#allocation11 + $0x2e0] sm:$0xff]
    %v1945 = vld [vmem:[#allocation11 + $0x2e8] sm:$0xff]
    %v1946 = vld [vmem:[#allocation11 + $0x2f0] sm:$0xff]
    %v1947 = vld [vmem:[#allocation11 + $0x2f8] sm:$0xff]
    %v1948 = vld [vmem:[#allocation11 + $0x300] sm:$0xff]
    %v1949 = vld [vmem:[#allocation11 + $0x308] sm:$0xff]
    %v1950 = vld [vmem:[#allocation11 + $0x310] sm:$0xff]
    %v1951 = vld [vmem:[#allocation11 + $0x318] sm:$0xff]
    %v1952 = vld [vmem:[#allocation11 + $0x320] sm:$0xff]
    %v1953 = vld [vmem:[#allocation11 + $0x328] sm:$0xff]
    %v1954 = vld [vmem:[#allocation11 + $0x330] sm:$0xff]
    %v1955 = vld [vmem:[#allocation11 + $0x338] sm:$0xff]
    %v1956 = vld [vmem:[#allocation11 + $0x340] sm:$0xff]
    %v1957 = vld [vmem:[#allocation11 + $0x348] sm:$0xff]
    %v1958 = vld [vmem:[#allocation11 + $0x350] sm:$0xff]
    %v1959 = vld [vmem:[#allocation11 + $0x358] sm:$0xff]
    %v1960 = vld [vmem:[#allocation11 + $0x360] sm:$0xff]
    %v1961 = vld [vmem:[#allocation11 + $0x368] sm:$0xff]
    %v1962 = vld [vmem:[#allocation11 + $0x370] sm:$0xff]
    %v1963 = vld [vmem:[#allocation11 + $0x378] sm:$0xff]
    %v1964 = vld [vmem:[#allocation11 + $0x380] sm:$0xff]
    %v1965 = vld [vmem:[#allocation11 + $0x388] sm:$0xff]
    %v1966 = vld [vmem:[#allocation11 + $0x390] sm:$0xff]
    %v1967 = vld [vmem:[#allocation11 + $0x398] sm:$0xff]
    %v1968 = vld [vmem:[#allocation11 + $0x3a0] sm:$0xff]
    %v1969 = vld [vmem:[#allocation11 + $0x3a8] sm:$0xff]
    %v1970 = vld [vmem:[#allocation11 + $0x3b0] sm:$0xff]
    %v1971 = vld [vmem:[#allocation11 + $0x3b8] sm:$0xff]
    %v1972 = vld [vmem:[#allocation11 + $0x3c0] sm:$0xff]
    %v1973 = vld [vmem:[#allocation11 + $0x3c8] sm:$0xff]
    %v1974 = vld [vmem:[#allocation11 + $0x3d0] sm:$0xff]
    %v1975 = vld [vmem:[#allocation11 + $0x3d8] sm:$0xff]
    %v1976 = vld [vmem:[#allocation11 + $0x3e0] sm:$0xff]
    %v1977 = vld [vmem:[#allocation11 + $0x3e8] sm:$0xff]
    %v1978 = vld [vmem:[#allocation11 + $0x3f0] sm:$0xff]
    %v1979 = vld [vmem:[#allocation11 + $0x3f8] sm:$0xff]
    %v1980 = vld [vmem:[%s7] sm:$0xff]
    %v1982 = vlaneseq
    %v1983 = vshrl.u32 %v1982, 7
    %v1984 = vsub.s32 0, %v1983
    %v1985 = vrot.slane %v1980, %v1984
    %v1986 = vlaneseq
    %v1987 = vshrl.u32 %v1986, 7
    %v1988 = vsub.s32 1, %v1987
    %v1989 = vrot.slane %v1980, %v1988
    %v1990 = vlaneseq
    %v1991 = vshrl.u32 %v1990, 7
    %v1992 = vsub.s32 2, %v1991
    %v1993 = vrot.slane %v1980, %v1992
    %v1994 = vlaneseq
    %v1995 = vshrl.u32 %v1994, 7
    %v1996 = vsub.s32 3, %v1995
    %v1997 = vrot.slane %v1980, %v1996
    %v1998 = vlaneseq
    %v1999 = vshrl.u32 %v1998, 7
    %v2000 = vsub.s32 4, %v1999
    %v2001 = vrot.slane %v1980, %v2000
    %v2002 = vlaneseq
    %v2003 = vshrl.u32 %v2002, 7
    %v2004 = vsub.s32 5, %v2003
    %v2005 = vrot.slane %v1980, %v2004
    %v2006 = vlaneseq
    %v2007 = vshrl.u32 %v2006, 7
    %v2008 = vsub.s32 6, %v2007
    %v2009 = vrot.slane %v1980, %v2008
    %v2010 = vlaneseq
    %v2011 = vshrl.u32 %v2010, 7
    %v2012 = vsub.s32 7, %v2011
    %v2013 = vrot.slane %v1980, %v2012
    %v2024 = vunpack.c.l.b16 %v149
    %v2025 = vunpack.c.h.b16 %v149
    %v2026 = vunpack.c.l.b16 %v150
    %v2027 = vunpack.c.h.b16 %v150
    %v2028 = vpack.c.b16 %v2026, %v2024
    %v2029 = vpack.c.b16 %v2027, %v2025
    %v2160 = vunpack.c.l.b16 %v1852
    %v2161 = vunpack.c.h.b16 %v1852
    %v2162 = vunpack.c.l.b16 %v1853
    %v2163 = vunpack.c.h.b16 %v1853
    %v2164 = vunpack.c.l.b16 %v1854
    %v2165 = vunpack.c.h.b16 %v1854
    %v2166 = vunpack.c.l.b16 %v1855
    %v2167 = vunpack.c.h.b16 %v1855
    %v2168 = vunpack.c.l.b16 %v1856
    %v2169 = vunpack.c.h.b16 %v1856
    %v2170 = vunpack.c.l.b16 %v1857
    %v2171 = vunpack.c.h.b16 %v1857
    %v2172 = vunpack.c.l.b16 %v1858
    %v2173 = vunpack.c.h.b16 %v1858
    %v2174 = vunpack.c.l.b16 %v1859
    %v2175 = vunpack.c.h.b16 %v1859
    %v2176 = vunpack.c.l.b16 %v1860
    %v2177 = vunpack.c.h.b16 %v1860
    %v2178 = vunpack.c.l.b16 %v1861
    %v2179 = vunpack.c.h.b16 %v1861
    %v2180 = vunpack.c.l.b16 %v1862
    %v2181 = vunpack.c.h.b16 %v1862
    %v2182 = vunpack.c.l.b16 %v1863
    %v2183 = vunpack.c.h.b16 %v1863
    %v2184 = vunpack.c.l.b16 %v1864
    %v2185 = vunpack.c.h.b16 %v1864
    %v2186 = vunpack.c.l.b16 %v1865
    %v2187 = vunpack.c.h.b16 %v1865
    %v2188 = vunpack.c.l.b16 %v1866
    %v2189 = vunpack.c.h.b16 %v1866
    %v2190 = vunpack.c.l.b16 %v1867
    %v2191 = vunpack.c.h.b16 %v1867
    %v2192 = vunpack.c.l.b16 %v1868
    %v2193 = vunpack.c.h.b16 %v1868
    %v2194 = vunpack.c.l.b16 %v1869
    %v2195 = vunpack.c.h.b16 %v1869
    %v2196 = vunpack.c.l.b16 %v1870
    %v2197 = vunpack.c.h.b16 %v1870
    %v2198 = vunpack.c.l.b16 %v1871
    %v2199 = vunpack.c.h.b16 %v1871
    %v2200 = vunpack.c.l.b16 %v1872
    %v2201 = vunpack.c.h.b16 %v1872
    %v2202 = vunpack.c.l.b16 %v1873
    %v2203 = vunpack.c.h.b16 %v1873
    %v2204 = vunpack.c.l.b16 %v1874
    %v2205 = vunpack.c.h.b16 %v1874
    %v2206 = vunpack.c.l.b16 %v1875
    %v2207 = vunpack.c.h.b16 %v1875
    %v2208 = vunpack.c.l.b16 %v1876
    %v2209 = vunpack.c.h.b16 %v1876
    %v2210 = vunpack.c.l.b16 %v1877
    %v2211 = vunpack.c.h.b16 %v1877
    %v2212 = vunpack.c.l.b16 %v1878
    %v2213 = vunpack.c.h.b16 %v1878
    %v2214 = vunpack.c.l.b16 %v1879
    %v2215 = vunpack.c.h.b16 %v1879
    %v2216 = vunpack.c.l.b16 %v1880
    %v2217 = vunpack.c.h.b16 %v1880
    %v2218 = vunpack.c.l.b16 %v1881
    %v2219 = vunpack.c.h.b16 %v1881
    %v2220 = vunpack.c.l.b16 %v1882
    %v2221 = vunpack.c.h.b16 %v1882
    %v2222 = vunpack.c.l.b16 %v1883
    %v2223 = vunpack.c.h.b16 %v1883
    %v2224 = vunpack.c.l.b16 %v1884
    %v2225 = vunpack.c.h.b16 %v1884
    %v2226 = vunpack.c.l.b16 %v1885
    %v2227 = vunpack.c.h.b16 %v1885
    %v2228 = vunpack.c.l.b16 %v1886
    %v2229 = vunpack.c.h.b16 %v1886
    %v2230 = vunpack.c.l.b16 %v1887
    %v2231 = vunpack.c.h.b16 %v1887
    %v2232 = vunpack.c.l.b16 %v1888
    %v2233 = vunpack.c.h.b16 %v1888
    %v2234 = vunpack.c.l.b16 %v1889
    %v2235 = vunpack.c.h.b16 %v1889
    %v2236 = vunpack.c.l.b16 %v1890
    %v2237 = vunpack.c.h.b16 %v1890
    %v2238 = vunpack.c.l.b16 %v1891
    %v2239 = vunpack.c.h.b16 %v1891
    %v2240 = vunpack.c.l.b16 %v1892
    %v2241 = vunpack.c.h.b16 %v1892
    %v2242 = vunpack.c.l.b16 %v1893
    %v2243 = vunpack.c.h.b16 %v1893
    %v2244 = vunpack.c.l.b16 %v1894
    %v2245 = vunpack.c.h.b16 %v1894
    %v2246 = vunpack.c.l.b16 %v1895
    %v2247 = vunpack.c.h.b16 %v1895
    %v2248 = vunpack.c.l.b16 %v1896
    %v2249 = vunpack.c.h.b16 %v1896
    %v2250 = vunpack.c.l.b16 %v1897
    %v2251 = vunpack.c.h.b16 %v1897
    %v2252 = vunpack.c.l.b16 %v1898
    %v2253 = vunpack.c.h.b16 %v1898
    %v2254 = vunpack.c.l.b16 %v1899
    %v2255 = vunpack.c.h.b16 %v1899
    %v2256 = vunpack.c.l.b16 %v1900
    %v2257 = vunpack.c.h.b16 %v1900
    %v2258 = vunpack.c.l.b16 %v1901
    %v2259 = vunpack.c.h.b16 %v1901
    %v2260 = vunpack.c.l.b16 %v1902
    %v2261 = vunpack.c.h.b16 %v1902
    %v2262 = vunpack.c.l.b16 %v1903
    %v2263 = vunpack.c.h.b16 %v1903
    %v2264 = vunpack.c.l.b16 %v1904
    %v2265 = vunpack.c.h.b16 %v1904
    %v2266 = vunpack.c.l.b16 %v1905
    %v2267 = vunpack.c.h.b16 %v1905
    %v2268 = vunpack.c.l.b16 %v1906
    %v2269 = vunpack.c.h.b16 %v1906
    %v2270 = vunpack.c.l.b16 %v1907
    %v2271 = vunpack.c.h.b16 %v1907
    %v2272 = vunpack.c.l.b16 %v1908
    %v2273 = vunpack.c.h.b16 %v1908
    %v2274 = vunpack.c.l.b16 %v1909
    %v2275 = vunpack.c.h.b16 %v1909
    %v2276 = vunpack.c.l.b16 %v1910
    %v2277 = vunpack.c.h.b16 %v1910
    %v2278 = vunpack.c.l.b16 %v1911
    %v2279 = vunpack.c.h.b16 %v1911
    %v2280 = vunpack.c.l.b16 %v1912
    %v2281 = vunpack.c.h.b16 %v1912
    %v2282 = vunpack.c.l.b16 %v1913
    %v2283 = vunpack.c.h.b16 %v1913
    %v2284 = vunpack.c.l.b16 %v1914
    %v2285 = vunpack.c.h.b16 %v1914
    %v2286 = vunpack.c.l.b16 %v1915
    %v2287 = vunpack.c.h.b16 %v1915
    %v2288 = vunpack.c.l.b16 %v1916
    %v2289 = vunpack.c.h.b16 %v1916
    %v2290 = vunpack.c.l.b16 %v1917
    %v2291 = vunpack.c.h.b16 %v1917
    %v2292 = vunpack.c.l.b16 %v1918
    %v2293 = vunpack.c.h.b16 %v1918
    %v2294 = vunpack.c.l.b16 %v1919
    %v2295 = vunpack.c.h.b16 %v1919
    %v2296 = vunpack.c.l.b16 %v1920
    %v2297 = vunpack.c.h.b16 %v1920
    %v2298 = vunpack.c.l.b16 %v1921
    %v2299 = vunpack.c.h.b16 %v1921
    %v2300 = vunpack.c.l.b16 %v1922
    %v2301 = vunpack.c.h.b16 %v1922
    %v2302 = vunpack.c.l.b16 %v1923
    %v2303 = vunpack.c.h.b16 %v1923
    %v2304 = vunpack.c.l.b16 %v1924
    %v2305 = vunpack.c.h.b16 %v1924
    %v2306 = vunpack.c.l.b16 %v1925
    %v2307 = vunpack.c.h.b16 %v1925
    %v2308 = vunpack.c.l.b16 %v1926
    %v2309 = vunpack.c.h.b16 %v1926
    %v2310 = vunpack.c.l.b16 %v1927
    %v2311 = vunpack.c.h.b16 %v1927
    %v2312 = vunpack.c.l.b16 %v1928
    %v2313 = vunpack.c.h.b16 %v1928
    %v2314 = vunpack.c.l.b16 %v1929
    %v2315 = vunpack.c.h.b16 %v1929
    %v2316 = vunpack.c.l.b16 %v1930
    %v2317 = vunpack.c.h.b16 %v1930
    %v2318 = vunpack.c.l.b16 %v1931
    %v2319 = vunpack.c.h.b16 %v1931
    %v2320 = vunpack.c.l.b16 %v1932
    %v2321 = vunpack.c.h.b16 %v1932
    %v2322 = vunpack.c.l.b16 %v1933
    %v2323 = vunpack.c.h.b16 %v1933
    %v2324 = vunpack.c.l.b16 %v1934
    %v2325 = vunpack.c.h.b16 %v1934
    %v2326 = vunpack.c.l.b16 %v1935
    %v2327 = vunpack.c.h.b16 %v1935
    %v2328 = vunpack.c.l.b16 %v1936
    %v2329 = vunpack.c.h.b16 %v1936
    %v2330 = vunpack.c.l.b16 %v1937
    %v2331 = vunpack.c.h.b16 %v1937
    %v2332 = vunpack.c.l.b16 %v1938
    %v2333 = vunpack.c.h.b16 %v1938
    %v2334 = vunpack.c.l.b16 %v1939
    %v2335 = vunpack.c.h.b16 %v1939
    %v2336 = vunpack.c.l.b16 %v1940
    %v2337 = vunpack.c.h.b16 %v1940
    %v2338 = vunpack.c.l.b16 %v1941
    %v2339 = vunpack.c.h.b16 %v1941
    %v2340 = vunpack.c.l.b16 %v1942
    %v2341 = vunpack.c.h.b16 %v1942
    %v2342 = vunpack.c.l.b16 %v1943
    %v2343 = vunpack.c.h.b16 %v1943
    %v2344 = vunpack.c.l.b16 %v1944
    %v2345 = vunpack.c.h.b16 %v1944
    %v2346 = vunpack.c.l.b16 %v1945
    %v2347 = vunpack.c.h.b16 %v1945
    %v2348 = vunpack.c.l.b16 %v1946
    %v2349 = vunpack.c.h.b16 %v1946
    %v2350 = vunpack.c.l.b16 %v1947
    %v2351 = vunpack.c.h.b16 %v1947
    %v2352 = vunpack.c.l.b16 %v1948
    %v2353 = vunpack.c.h.b16 %v1948
    %v2354 = vunpack.c.l.b16 %v1949
    %v2355 = vunpack.c.h.b16 %v1949
    %v2356 = vunpack.c.l.b16 %v1950
    %v2357 = vunpack.c.h.b16 %v1950
    %v2358 = vunpack.c.l.b16 %v1951
    %v2359 = vunpack.c.h.b16 %v1951
    %v2360 = vunpack.c.l.b16 %v1952
    %v2361 = vunpack.c.h.b16 %v1952
    %v2362 = vunpack.c.l.b16 %v1953
    %v2363 = vunpack.c.h.b16 %v1953
    %v2364 = vunpack.c.l.b16 %v1954
    %v2365 = vunpack.c.h.b16 %v1954
    %v2366 = vunpack.c.l.b16 %v1955
    %v2367 = vunpack.c.h.b16 %v1955
    %v2368 = vunpack.c.l.b16 %v1956
    %v2369 = vunpack.c.h.b16 %v1956
    %v2370 = vunpack.c.l.b16 %v1957
    %v2371 = vunpack.c.h.b16 %v1957
    %v2372 = vunpack.c.l.b16 %v1958
    %v2373 = vunpack.c.h.b16 %v1958
    %v2374 = vunpack.c.l.b16 %v1959
    %v2375 = vunpack.c.h.b16 %v1959
    %v2376 = vunpack.c.l.b16 %v1960
    %v2377 = vunpack.c.h.b16 %v1960
    %v2378 = vunpack.c.l.b16 %v1961
    %v2379 = vunpack.c.h.b16 %v1961
    %v2380 = vunpack.c.l.b16 %v1962
    %v2381 = vunpack.c.h.b16 %v1962
    %v2382 = vunpack.c.l.b16 %v1963
    %v2383 = vunpack.c.h.b16 %v1963
    %v2384 = vunpack.c.l.b16 %v1964
    %v2385 = vunpack.c.h.b16 %v1964
    %v2386 = vunpack.c.l.b16 %v1965
    %v2387 = vunpack.c.h.b16 %v1965
    %v2388 = vunpack.c.l.b16 %v1966
    %v2389 = vunpack.c.h.b16 %v1966
    %v2390 = vunpack.c.l.b16 %v1967
    %v2391 = vunpack.c.h.b16 %v1967
    %v2392 = vunpack.c.l.b16 %v1968
    %v2393 = vunpack.c.h.b16 %v1968
    %v2394 = vunpack.c.l.b16 %v1969
    %v2395 = vunpack.c.h.b16 %v1969
    %v2396 = vunpack.c.l.b16 %v1970
    %v2397 = vunpack.c.h.b16 %v1970
    %v2398 = vunpack.c.l.b16 %v1971
    %v2399 = vunpack.c.h.b16 %v1971
    %v2400 = vunpack.c.l.b16 %v1972
    %v2401 = vunpack.c.h.b16 %v1972
    %v2402 = vunpack.c.l.b16 %v1973
    %v2403 = vunpack.c.h.b16 %v1973
    %v2404 = vunpack.c.l.b16 %v1974
    %v2405 = vunpack.c.h.b16 %v1974
    %v2406 = vunpack.c.l.b16 %v1975
    %v2407 = vunpack.c.h.b16 %v1975
    %v2408 = vunpack.c.l.b16 %v1976
    %v2409 = vunpack.c.h.b16 %v1976
    %v2410 = vunpack.c.l.b16 %v1977
    %v2411 = vunpack.c.h.b16 %v1977
    %v2412 = vunpack.c.l.b16 %v1978
    %v2413 = vunpack.c.h.b16 %v1978
    %v2414 = vunpack.c.l.b16 %v1979
    %v2415 = vunpack.c.h.b16 %v1979
    %v2416 = vpack.c.b16 %v2168, %v2160
    %v2417 = vpack.c.b16 %v2169, %v2161
    %v2418 = vpack.c.b16 %v2170, %v2162
    %v2419 = vpack.c.b16 %v2171, %v2163
    %v2420 = vpack.c.b16 %v2172, %v2164
    %v2421 = vpack.c.b16 %v2173, %v2165
    %v2422 = vpack.c.b16 %v2174, %v2166
    %v2423 = vpack.c.b16 %v2175, %v2167
    %v2424 = vpack.c.b16 %v2184, %v2176
    %v2425 = vpack.c.b16 %v2185, %v2177
    %v2426 = vpack.c.b16 %v2186, %v2178
    %v2427 = vpack.c.b16 %v2187, %v2179
    %v2428 = vpack.c.b16 %v2188, %v2180
    %v2429 = vpack.c.b16 %v2189, %v2181
    %v2430 = vpack.c.b16 %v2190, %v2182
    %v2431 = vpack.c.b16 %v2191, %v2183
    %v2432 = vpack.c.b16 %v2200, %v2192
    %v2433 = vpack.c.b16 %v2201, %v2193
    %v2434 = vpack.c.b16 %v2202, %v2194
    %v2435 = vpack.c.b16 %v2203, %v2195
    %v2436 = vpack.c.b16 %v2204, %v2196
    %v2437 = vpack.c.b16 %v2205, %v2197
    %v2438 = vpack.c.b16 %v2206, %v2198
    %v2439 = vpack.c.b16 %v2207, %v2199
    %v2440 = vpack.c.b16 %v2216, %v2208
    %v2441 = vpack.c.b16 %v2217, %v2209
    %v2442 = vpack.c.b16 %v2218, %v2210
    %v2443 = vpack.c.b16 %v2219, %v2211
    %v2444 = vpack.c.b16 %v2220, %v2212
    %v2445 = vpack.c.b16 %v2221, %v2213
    %v2446 = vpack.c.b16 %v2222, %v2214
    %v2447 = vpack.c.b16 %v2223, %v2215
    %v2448 = vpack.c.b16 %v2232, %v2224
    %v2449 = vpack.c.b16 %v2233, %v2225
    %v2450 = vpack.c.b16 %v2234, %v2226
    %v2451 = vpack.c.b16 %v2235, %v2227
    %v2452 = vpack.c.b16 %v2236, %v2228
    %v2453 = vpack.c.b16 %v2237, %v2229
    %v2454 = vpack.c.b16 %v2238, %v2230
    %v2455 = vpack.c.b16 %v2239, %v2231
    %v2456 = vpack.c.b16 %v2248, %v2240
    %v2457 = vpack.c.b16 %v2249, %v2241
    %v2458 = vpack.c.b16 %v2250, %v2242
    %v2459 = vpack.c.b16 %v2251, %v2243
    %v2460 = vpack.c.b16 %v2252, %v2244
    %v2461 = vpack.c.b16 %v2253, %v2245
    %v2462 = vpack.c.b16 %v2254, %v2246
    %v2463 = vpack.c.b16 %v2255, %v2247
    %v2464 = vpack.c.b16 %v2264, %v2256
    %v2465 = vpack.c.b16 %v2265, %v2257
    %v2466 = vpack.c.b16 %v2266, %v2258
    %v2467 = vpack.c.b16 %v2267, %v2259
    %v2468 = vpack.c.b16 %v2268, %v2260
    %v2469 = vpack.c.b16 %v2269, %v2261
    %v2470 = vpack.c.b16 %v2270, %v2262
    %v2471 = vpack.c.b16 %v2271, %v2263
    %v2472 = vpack.c.b16 %v2280, %v2272
    %v2473 = vpack.c.b16 %v2281, %v2273
    %v2474 = vpack.c.b16 %v2282, %v2274
    %v2475 = vpack.c.b16 %v2283, %v2275
    %v2476 = vpack.c.b16 %v2284, %v2276
    %v2477 = vpack.c.b16 %v2285, %v2277
    %v2478 = vpack.c.b16 %v2286, %v2278
    %v2479 = vpack.c.b16 %v2287, %v2279
    %v2480 = vpack.c.b16 %v2296, %v2288
    %v2481 = vpack.c.b16 %v2297, %v2289
    %v2482 = vpack.c.b16 %v2298, %v2290
    %v2483 = vpack.c.b16 %v2299, %v2291
    %v2484 = vpack.c.b16 %v2300, %v2292
    %v2485 = vpack.c.b16 %v2301, %v2293
    %v2486 = vpack.c.b16 %v2302, %v2294
    %v2487 = vpack.c.b16 %v2303, %v2295
    %v2488 = vpack.c.b16 %v2312, %v2304
    %v2489 = vpack.c.b16 %v2313, %v2305
    %v2490 = vpack.c.b16 %v2314, %v2306
    %v2491 = vpack.c.b16 %v2315, %v2307
    %v2492 = vpack.c.b16 %v2316, %v2308
    %v2493 = vpack.c.b16 %v2317, %v2309
    %v2494 = vpack.c.b16 %v2318, %v2310
    %v2495 = vpack.c.b16 %v2319, %v2311
    %v2496 = vpack.c.b16 %v2328, %v2320
    %v2497 = vpack.c.b16 %v2329, %v2321
    %v2498 = vpack.c.b16 %v2330, %v2322
    %v2499 = vpack.c.b16 %v2331, %v2323
    %v2500 = vpack.c.b16 %v2332, %v2324
    %v2501 = vpack.c.b16 %v2333, %v2325
    %v2502 = vpack.c.b16 %v2334, %v2326
    %v2503 = vpack.c.b16 %v2335, %v2327
    %v2504 = vpack.c.b16 %v2344, %v2336
    %v2505 = vpack.c.b16 %v2345, %v2337
    %v2506 = vpack.c.b16 %v2346, %v2338
    %v2507 = vpack.c.b16 %v2347, %v2339
    %v2508 = vpack.c.b16 %v2348, %v2340
    %v2509 = vpack.c.b16 %v2349, %v2341
    %v2510 = vpack.c.b16 %v2350, %v2342
    %v2511 = vpack.c.b16 %v2351, %v2343
    %v2512 = vpack.c.b16 %v2360, %v2352
    %v2513 = vpack.c.b16 %v2361, %v2353
    %v2514 = vpack.c.b16 %v2362, %v2354
    %v2515 = vpack.c.b16 %v2363, %v2355
    %v2516 = vpack.c.b16 %v2364, %v2356
    %v2517 = vpack.c.b16 %v2365, %v2357
    %v2518 = vpack.c.b16 %v2366, %v2358
    %v2519 = vpack.c.b16 %v2367, %v2359
    %v2520 = vpack.c.b16 %v2376, %v2368
    %v2521 = vpack.c.b16 %v2377, %v2369
    %v2522 = vpack.c.b16 %v2378, %v2370
    %v2523 = vpack.c.b16 %v2379, %v2371
    %v2524 = vpack.c.b16 %v2380, %v2372
    %v2525 = vpack.c.b16 %v2381, %v2373
    %v2526 = vpack.c.b16 %v2382, %v2374
    %v2527 = vpack.c.b16 %v2383, %v2375
    %v2528 = vpack.c.b16 %v2392, %v2384
    %v2529 = vpack.c.b16 %v2393, %v2385
    %v2530 = vpack.c.b16 %v2394, %v2386
    %v2531 = vpack.c.b16 %v2395, %v2387
    %v2532 = vpack.c.b16 %v2396, %v2388
    %v2533 = vpack.c.b16 %v2397, %v2389
    %v2534 = vpack.c.b16 %v2398, %v2390
    %v2535 = vpack.c.b16 %v2399, %v2391
    %v2536 = vpack.c.b16 %v2408, %v2400
    %v2537 = vpack.c.b16 %v2409, %v2401
    %v2538 = vpack.c.b16 %v2410, %v2402
    %v2539 = vpack.c.b16 %v2411, %v2403
    %v2540 = vpack.c.b16 %v2412, %v2404
    %v2541 = vpack.c.b16 %v2413, %v2405
    %v2542 = vpack.c.b16 %v2414, %v2406
    %v2543 = vpack.c.b16 %v2415, %v2407
    %2672 = vmatprep.subr.bf16.mxu0 %v2473
    %2673 = vmatpush1.bf16.msra.mxu0 %v2472
    %2674 = vmatprep.subr.bf16.mxu0 %v2465
    %2675 = vmatpush1.bf16.msra.mxu0 %v2464
    %2676 = vmatprep.subr.bf16.mxu0 %v2457
    %2677 = vmatpush1.bf16.msra.mxu0 %v2456
    %2678 = vmatprep.subr.bf16.mxu0 %v2449
    %2679 = vmatpush1.bf16.msra.mxu0 %v2448
    %2680 = vmatprep.subr.bf16.mxu0 %v2441
    %2681 = vmatpush1.bf16.msra.mxu0 %v2440
    %2682 = vmatprep.subr.bf16.mxu0 %v2433
    %2683 = vmatpush1.bf16.msra.mxu0 %v2432
    %2684 = vmatprep.subr.bf16.mxu0 %v2425
    %2685 = vmatpush1.bf16.msra.mxu0 %v2424
    %2686 = vmatprep.subr.bf16.mxu0 %v2417
    %2687 = vmatpush1.bf16.msra.mxu0 %v2416
    %2688 = vmatprep.subr.bf16.mxu0 %v2537
    %2689 = vmatpush2.bf16.msra.mxu0 %v2536
    %2690 = vmatprep.subr.bf16.mxu0 %v2529
    %2691 = vmatpush2.bf16.msra.mxu0 %v2528
    %2692 = vmatprep.subr.bf16.mxu0 %v2521
    %2693 = vmatpush2.bf16.msra.mxu0 %v2520
    %2694 = vmatprep.subr.bf16.mxu0 %v2513
    %2695 = vmatpush2.bf16.msra.mxu0 %v2512
    %2696 = vmatprep.subr.bf16.mxu0 %v2505
    %2697 = vmatpush2.bf16.msra.mxu0 %v2504
    %2698 = vmatprep.subr.bf16.mxu0 %v2497
    %2699 = vmatpush2.bf16.msra.mxu0 %v2496
    %2700 = vmatprep.subr.bf16.mxu0 %v2489
    %2701 = vmatpush2.bf16.msra.mxu0 %v2488
    %2702 = vmatprep.subr.bf16.mxu0 %v2481
    %2703 = vmatpush2.bf16.msra.mxu0 %v2480
    %2704 = vmatprep.mubr.bf16.mxu0 %v2029
    %2705 = vmatmul.mubr.bf16.gmra.mxu0 %v2028
    %v2706 = vpop.f32.mrf.mxu0
    %v2707 = vadd.f32 %v1985, %v2706
    %v2708 = vpop.f32.mrf.mxu0
    %v2709 = vadd.f32 %v1989, %v2708
    %v2710 = vpop.f32.mrf.mxu0
    %v2711 = vadd.f32 %v1985, %v2710
    %v2712 = vpop.f32.mrf.mxu0
    %v2713 = vadd.f32 %v1989, %v2712
    %2714 = vdwg.mxu0
    %2715 = vmatprep.subr.bf16.mxu0 %v2475
    %2716 = vmatpush1.bf16.msra.mxu0 %v2474
    %2717 = vmatprep.subr.bf16.mxu0 %v2467
    %2718 = vmatpush1.bf16.msra.mxu0 %v2466
    %2719 = vmatprep.subr.bf16.mxu0 %v2459
    %2720 = vmatpush1.bf16.msra.mxu0 %v2458
    %2721 = vmatprep.subr.bf16.mxu0 %v2451
    %2722 = vmatpush1.bf16.msra.mxu0 %v2450
    %2723 = vmatprep.subr.bf16.mxu0 %v2443
    %2724 = vmatpush1.bf16.msra.mxu0 %v2442
    %2725 = vmatprep.subr.bf16.mxu0 %v2435
    %2726 = vmatpush1.bf16.msra.mxu0 %v2434
    %2727 = vmatprep.subr.bf16.mxu0 %v2427
    %2728 = vmatpush1.bf16.msra.mxu0 %v2426
    %2729 = vmatprep.subr.bf16.mxu0 %v2419
    %2730 = vmatpush1.bf16.msra.mxu0 %v2418
    %2731 = vmatprep.subr.bf16.mxu0 %v2539
    %2732 = vmatpush2.bf16.msra.mxu0 %v2538
    %2733 = vmatprep.subr.bf16.mxu0 %v2531
    %2734 = vmatpush2.bf16.msra.mxu0 %v2530
    %2735 = vmatprep.subr.bf16.mxu0 %v2523
    %2736 = vmatpush2.bf16.msra.mxu0 %v2522
    %2737 = vmatprep.subr.bf16.mxu0 %v2515
    %2738 = vmatpush2.bf16.msra.mxu0 %v2514
    %2739 = vmatprep.subr.bf16.mxu0 %v2507
    %2740 = vmatpush2.bf16.msra.mxu0 %v2506
    %2741 = vmatprep.subr.bf16.mxu0 %v2499
    %2742 = vmatpush2.bf16.msra.mxu0 %v2498
    %2743 = vmatprep.subr.bf16.mxu0 %v2491
    %2744 = vmatpush2.bf16.msra.mxu0 %v2490
    %2745 = vmatprep.subr.bf16.mxu0 %v2483
    %2746 = vmatpush2.bf16.msra.mxu0 %v2482
    %2747 = vmatprep.mubr.bf16.mxu0 %v2029
    %2748 = vmatmul.mubr.bf16.gmra.mxu0 %v2028
    %v2749 = vpop.f32.mrf.mxu0
    %v2750 = vadd.f32 %v1993, %v2749
    %v2751 = vpop.f32.mrf.mxu0
    %v2752 = vadd.f32 %v1997, %v2751
    %v2753 = vpop.f32.mrf.mxu0
    %v2754 = vadd.f32 %v1993, %v2753
    %v2755 = vpop.f32.mrf.mxu0
    %v2756 = vadd.f32 %v1997, %v2755
    %2757 = vdwg.mxu0
    %2758 = vmatprep.subr.bf16.mxu0 %v2477
    %2759 = vmatpush1.bf16.msra.mxu0 %v2476
    %2760 = vmatprep.subr.bf16.mxu0 %v2469
    %2761 = vmatpush1.bf16.msra.mxu0 %v2468
    %2762 = vmatprep.subr.bf16.mxu0 %v2461
    %2763 = vmatpush1.bf16.msra.mxu0 %v2460
    %2764 = vmatprep.subr.bf16.mxu0 %v2453
    %2765 = vmatpush1.bf16.msra.mxu0 %v2452
    %2766 = vmatprep.subr.bf16.mxu0 %v2445
    %2767 = vmatpush1.bf16.msra.mxu0 %v2444
    %2768 = vmatprep.subr.bf16.mxu0 %v2437
    %2769 = vmatpush1.bf16.msra.mxu0 %v2436
    %2770 = vmatprep.subr.bf16.mxu0 %v2429
    %2771 = vmatpush1.bf16.msra.mxu0 %v2428
    %2772 = vmatprep.subr.bf16.mxu0 %v2421
    %2773 = vmatpush1.bf16.msra.mxu0 %v2420
    %2774 = vmatprep.subr.bf16.mxu0 %v2541
    %2775 = vmatpush2.bf16.msra.mxu0 %v2540
    %2776 = vmatprep.subr.bf16.mxu0 %v2533
    %2777 = vmatpush2.bf16.msra.mxu0 %v2532
    %2778 = vmatprep.subr.bf16.mxu0 %v2525
    %2779 = vmatpush2.bf16.msra.mxu0 %v2524
    %2780 = vmatprep.subr.bf16.mxu0 %v2517
    %2781 = vmatpush2.bf16.msra.mxu0 %v2516
    %2782 = vmatprep.subr.bf16.mxu0 %v2509
    %2783 = vmatpush2.bf16.msra.mxu0 %v2508
    %2784 = vmatprep.subr.bf16.mxu0 %v2501
    %2785 = vmatpush2.bf16.msra.mxu0 %v2500
    %2786 = vmatprep.subr.bf16.mxu0 %v2493
    %2787 = vmatpush2.bf16.msra.mxu0 %v2492
    %2788 = vmatprep.subr.bf16.mxu0 %v2485
    %2789 = vmatpush2.bf16.msra.mxu0 %v2484
    %2790 = vmatprep.mubr.bf16.mxu0 %v2029
    %2791 = vmatmul.mubr.bf16.gmra.mxu0 %v2028
    %v2792 = vpop.f32.mrf.mxu0
    %v2793 = vadd.f32 %v2001, %v2792
    %v2794 = vpop.f32.mrf.mxu0
    %v2795 = vadd.f32 %v2005, %v2794
    %v2796 = vpop.f32.mrf.mxu0
    %v2797 = vadd.f32 %v2001, %v2796
    %v2798 = vpop.f32.mrf.mxu0
    %v2799 = vadd.f32 %v2005, %v2798
    %2800 = vdwg.mxu0
    %2801 = vmatprep.subr.bf16.mxu0 %v2479
    %2802 = vmatpush1.bf16.msra.mxu0 %v2478
    %2803 = vmatprep.subr.bf16.mxu0 %v2471
    %2804 = vmatpush1.bf16.msra.mxu0 %v2470
    %2805 = vmatprep.subr.bf16.mxu0 %v2463
    %2806 = vmatpush1.bf16.msra.mxu0 %v2462
    %2807 = vmatprep.subr.bf16.mxu0 %v2455
    %2808 = vmatpush1.bf16.msra.mxu0 %v2454
    %2809 = vmatprep.subr.bf16.mxu0 %v2447
    %2810 = vmatpush1.bf16.msra.mxu0 %v2446
    %2811 = vmatprep.subr.bf16.mxu0 %v2439
    %2812 = vmatpush1.bf16.msra.mxu0 %v2438
    %2813 = vmatprep.subr.bf16.mxu0 %v2431
    %2814 = vmatpush1.bf16.msra.mxu0 %v2430
    %2815 = vmatprep.subr.bf16.mxu0 %v2423
    %2816 = vmatpush1.bf16.msra.mxu0 %v2422
    %2817 = vmatprep.subr.bf16.mxu0 %v2543
    %2818 = vmatpush2.bf16.msra.mxu0 %v2542
    %2819 = vmatprep.subr.bf16.mxu0 %v2535
    %2820 = vmatpush2.bf16.msra.mxu0 %v2534
    %2821 = vmatprep.subr.bf16.mxu0 %v2527
    %2822 = vmatpush2.bf16.msra.mxu0 %v2526
    %2823 = vmatprep.subr.bf16.mxu0 %v2519
    %2824 = vmatpush2.bf16.msra.mxu0 %v2518
    %2825 = vmatprep.subr.bf16.mxu0 %v2511
    %2826 = vmatpush2.bf16.msra.mxu0 %v2510
    %2827 = vmatprep.subr.bf16.mxu0 %v2503
    %2828 = vmatpush2.bf16.msra.mxu0 %v2502
    %2829 = vmatprep.subr.bf16.mxu0 %v2495
    %2830 = vmatpush2.bf16.msra.mxu0 %v2494
    %2831 = vmatprep.subr.bf16.mxu0 %v2487
    %2832 = vmatpush2.bf16.msra.mxu0 %v2486
    %2833 = vmatprep.mubr.bf16.mxu0 %v2029
    %2834 = vmatmul.mubr.bf16.gmra.mxu0 %v2028
    %v2835 = vpop.f32.mrf.mxu0
    %v2836 = vadd.f32 %v2009, %v2835
    %v2837 = vpop.f32.mrf.mxu0
    %v2838 = vadd.f32 %v2013, %v2837
    %v2839 = vpop.f32.mrf.mxu0
    %v2840 = vadd.f32 %v2009, %v2839
    %v2841 = vpop.f32.mrf.mxu0
    %v2842 = vadd.f32 %v2013, %v2841
    %2843 = vdwg.mxu0
    %v2844 = vmax.f32 %v2707, 0.0
    %v2845 = vmax.f32 %v2709, 0.0
    %v2846 = vmax.f32 %v2750, 0.0
    %v2847 = vmax.f32 %v2752, 0.0
    %v2848 = vmax.f32 %v2793, 0.0
    %v2849 = vmax.f32 %v2795, 0.0
    %v2850 = vmax.f32 %v2836, 0.0
    %v2851 = vmax.f32 %v2838, 0.0
    %v2852 = vmax.f32 %v2711, 0.0
    %v2853 = vmax.f32 %v2713, 0.0
    %v2854 = vmax.f32 %v2754, 0.0
    %v2855 = vmax.f32 %v2756, 0.0
    %v2856 = vmax.f32 %v2797, 0.0
    %v2857 = vmax.f32 %v2799, 0.0
    %v2858 = vmax.f32 %v2840, 0.0
    %v2859 = vmax.f32 %v2842, 0.0
    %v2860 = vpack.c.bf16 %v2852, %v2844
    %v2861 = vpack.c.bf16 %v2853, %v2845
    %v2862 = vpack.c.bf16 %v2854, %v2846
    %v2863 = vpack.c.bf16 %v2855, %v2847
    %v2864 = vpack.c.bf16 %v2856, %v2848
    %v2865 = vpack.c.bf16 %v2857, %v2849
    %v2866 = vpack.c.bf16 %v2858, %v2850
    %v2867 = vpack.c.bf16 %v2859, %v2851
    %v2868 = vld [vmem:[#allocation13] sm:$0xf]
    %v2869 = vld [vmem:[#allocation13 + $0x4] sm:$0xf]
    %v2870 = vld [vmem:[#allocation13 + $0x8] sm:$0xf]
    %v2871 = vld [vmem:[#allocation13 + $0xc] sm:$0xf]
    %v2872 = vld [vmem:[#allocation13 + $0x10] sm:$0xf]
    %v2873 = vld [vmem:[#allocation13 + $0x14] sm:$0xf]
    %v2874 = vld [vmem:[#allocation13 + $0x18] sm:$0xf]
    %v2875 = vld [vmem:[#allocation13 + $0x1c] sm:$0xf]
    %v2876 = vld [vmem:[#allocation13 + $0x20] sm:$0xf]
    %v2877 = vld [vmem:[#allocation13 + $0x24] sm:$0xf]
    %v2878 = vld [vmem:[#allocation13 + $0x28] sm:$0xf]
    %v2879 = vld [vmem:[#allocation13 + $0x2c] sm:$0xf]
    %v2880 = vld [vmem:[#allocation13 + $0x30] sm:$0xf]
    %v2881 = vld [vmem:[#allocation13 + $0x34] sm:$0xf]
    %v2882 = vld [vmem:[#allocation13 + $0x38] sm:$0xf]
    %v2883 = vld [vmem:[#allocation13 + $0x3c] sm:$0xf]
    %v2884 = vld [vmem:[#allocation13 + $0x40] sm:$0xf]
    %v2885 = vld [vmem:[#allocation13 + $0x44] sm:$0xf]
    %v2886 = vld [vmem:[#allocation13 + $0x48] sm:$0xf]
    %v2887 = vld [vmem:[#allocation13 + $0x4c] sm:$0xf]
    %v2888 = vld [vmem:[#allocation13 + $0x50] sm:$0xf]
    %v2889 = vld [vmem:[#allocation13 + $0x54] sm:$0xf]
    %v2890 = vld [vmem:[#allocation13 + $0x58] sm:$0xf]
    %v2891 = vld [vmem:[#allocation13 + $0x5c] sm:$0xf]
    %v2892 = vld [vmem:[#allocation13 + $0x60] sm:$0xf]
    %v2893 = vld [vmem:[#allocation13 + $0x64] sm:$0xf]
    %v2894 = vld [vmem:[#allocation13 + $0x68] sm:$0xf]
    %v2895 = vld [vmem:[#allocation13 + $0x6c] sm:$0xf]
    %v2896 = vld [vmem:[#allocation13 + $0x70] sm:$0xf]
    %v2897 = vld [vmem:[#allocation13 + $0x74] sm:$0xf]
    %v2898 = vld [vmem:[#allocation13 + $0x78] sm:$0xf]
    %v2899 = vld [vmem:[#allocation13 + $0x7c] sm:$0xf]
    %v2900 = vld [vmem:[#allocation13 + $0x80] sm:$0xf]
    %v2901 = vld [vmem:[#allocation13 + $0x84] sm:$0xf]
    %v2902 = vld [vmem:[#allocation13 + $0x88] sm:$0xf]
    %v2903 = vld [vmem:[#allocation13 + $0x8c] sm:$0xf]
    %v2904 = vld [vmem:[#allocation13 + $0x90] sm:$0xf]
    %v2905 = vld [vmem:[#allocation13 + $0x94] sm:$0xf]
    %v2906 = vld [vmem:[#allocation13 + $0x98] sm:$0xf]
    %v2907 = vld [vmem:[#allocation13 + $0x9c] sm:$0xf]
    %v2908 = vld [vmem:[#allocation13 + $0xa0] sm:$0xf]
    %v2909 = vld [vmem:[#allocation13 + $0xa4] sm:$0xf]
    %v2910 = vld [vmem:[#allocation13 + $0xa8] sm:$0xf]
    %v2911 = vld [vmem:[#allocation13 + $0xac] sm:$0xf]
    %v2912 = vld [vmem:[#allocation13 + $0xb0] sm:$0xf]
    %v2913 = vld [vmem:[#allocation13 + $0xb4] sm:$0xf]
    %v2914 = vld [vmem:[#allocation13 + $0xb8] sm:$0xf]
    %v2915 = vld [vmem:[#allocation13 + $0xbc] sm:$0xf]
    %v2916 = vld [vmem:[#allocation13 + $0xc0] sm:$0xf]
    %v2917 = vld [vmem:[#allocation13 + $0xc4] sm:$0xf]
    %v2918 = vld [vmem:[#allocation13 + $0xc8] sm:$0xf]
    %v2919 = vld [vmem:[#allocation13 + $0xcc] sm:$0xf]
    %v2920 = vld [vmem:[#allocation13 + $0xd0] sm:$0xf]
    %v2921 = vld [vmem:[#allocation13 + $0xd4] sm:$0xf]
    %v2922 = vld [vmem:[#allocation13 + $0xd8] sm:$0xf]
    %v2923 = vld [vmem:[#allocation13 + $0xdc] sm:$0xf]
    %v2924 = vld [vmem:[#allocation13 + $0xe0] sm:$0xf]
    %v2925 = vld [vmem:[#allocation13 + $0xe4] sm:$0xf]
    %v2926 = vld [vmem:[#allocation13 + $0xe8] sm:$0xf]
    %v2927 = vld [vmem:[#allocation13 + $0xec] sm:$0xf]
    %v2928 = vld [vmem:[#allocation13 + $0xf0] sm:$0xf]
    %v2929 = vld [vmem:[#allocation13 + $0xf4] sm:$0xf]
    %v2930 = vld [vmem:[#allocation13 + $0xf8] sm:$0xf]
    %v2931 = vld [vmem:[#allocation13 + $0xfc] sm:$0xf]
    %v2932 = vld [vmem:[#allocation13 + $0x100] sm:$0xf]
    %v2933 = vld [vmem:[#allocation13 + $0x104] sm:$0xf]
    %v2934 = vld [vmem:[#allocation13 + $0x108] sm:$0xf]
    %v2935 = vld [vmem:[#allocation13 + $0x10c] sm:$0xf]
    %v2936 = vld [vmem:[#allocation13 + $0x110] sm:$0xf]
    %v2937 = vld [vmem:[#allocation13 + $0x114] sm:$0xf]
    %v2938 = vld [vmem:[#allocation13 + $0x118] sm:$0xf]
    %v2939 = vld [vmem:[#allocation13 + $0x11c] sm:$0xf]
    %v2940 = vld [vmem:[#allocation13 + $0x120] sm:$0xf]
    %v2941 = vld [vmem:[#allocation13 + $0x124] sm:$0xf]
    %v2942 = vld [vmem:[#allocation13 + $0x128] sm:$0xf]
    %v2943 = vld [vmem:[#allocation13 + $0x12c] sm:$0xf]
    %v2944 = vld [vmem:[#allocation13 + $0x130] sm:$0xf]
    %v2945 = vld [vmem:[#allocation13 + $0x134] sm:$0xf]
    %v2946 = vld [vmem:[#allocation13 + $0x138] sm:$0xf]
    %v2947 = vld [vmem:[#allocation13 + $0x13c] sm:$0xf]
    %v2948 = vld [vmem:[#allocation13 + $0x140] sm:$0xf]
    %v2949 = vld [vmem:[#allocation13 + $0x144] sm:$0xf]
    %v2950 = vld [vmem:[#allocation13 + $0x148] sm:$0xf]
    %v2951 = vld [vmem:[#allocation13 + $0x14c] sm:$0xf]
    %v2952 = vld [vmem:[#allocation13 + $0x150] sm:$0xf]
    %v2953 = vld [vmem:[#allocation13 + $0x154] sm:$0xf]
    %v2954 = vld [vmem:[#allocation13 + $0x158] sm:$0xf]
    %v2955 = vld [vmem:[#allocation13 + $0x15c] sm:$0xf]
    %v2956 = vld [vmem:[#allocation13 + $0x160] sm:$0xf]
    %v2957 = vld [vmem:[#allocation13 + $0x164] sm:$0xf]
    %v2958 = vld [vmem:[#allocation13 + $0x168] sm:$0xf]
    %v2959 = vld [vmem:[#allocation13 + $0x16c] sm:$0xf]
    %v2960 = vld [vmem:[#allocation13 + $0x170] sm:$0xf]
    %v2961 = vld [vmem:[#allocation13 + $0x174] sm:$0xf]
    %v2962 = vld [vmem:[#allocation13 + $0x178] sm:$0xf]
    %v2963 = vld [vmem:[#allocation13 + $0x17c] sm:$0xf]
    %v2964 = vld [vmem:[#allocation13 + $0x180] sm:$0xf]
    %v2965 = vld [vmem:[#allocation13 + $0x184] sm:$0xf]
    %v2966 = vld [vmem:[#allocation13 + $0x188] sm:$0xf]
    %v2967 = vld [vmem:[#allocation13 + $0x18c] sm:$0xf]
    %v2968 = vld [vmem:[#allocation13 + $0x190] sm:$0xf]
    %v2969 = vld [vmem:[#allocation13 + $0x194] sm:$0xf]
    %v2970 = vld [vmem:[#allocation13 + $0x198] sm:$0xf]
    %v2971 = vld [vmem:[#allocation13 + $0x19c] sm:$0xf]
    %v2972 = vld [vmem:[#allocation13 + $0x1a0] sm:$0xf]
    %v2973 = vld [vmem:[#allocation13 + $0x1a4] sm:$0xf]
    %v2974 = vld [vmem:[#allocation13 + $0x1a8] sm:$0xf]
    %v2975 = vld [vmem:[#allocation13 + $0x1ac] sm:$0xf]
    %v2976 = vld [vmem:[#allocation13 + $0x1b0] sm:$0xf]
    %v2977 = vld [vmem:[#allocation13 + $0x1b4] sm:$0xf]
    %v2978 = vld [vmem:[#allocation13 + $0x1b8] sm:$0xf]
    %v2979 = vld [vmem:[#allocation13 + $0x1bc] sm:$0xf]
    %v2980 = vld [vmem:[#allocation13 + $0x1c0] sm:$0xf]
    %v2981 = vld [vmem:[#allocation13 + $0x1c4] sm:$0xf]
    %v2982 = vld [vmem:[#allocation13 + $0x1c8] sm:$0xf]
    %v2983 = vld [vmem:[#allocation13 + $0x1cc] sm:$0xf]
    %v2984 = vld [vmem:[#allocation13 + $0x1d0] sm:$0xf]
    %v2985 = vld [vmem:[#allocation13 + $0x1d4] sm:$0xf]
    %v2986 = vld [vmem:[#allocation13 + $0x1d8] sm:$0xf]
    %v2987 = vld [vmem:[#allocation13 + $0x1dc] sm:$0xf]
    %v2988 = vld [vmem:[#allocation13 + $0x1e0] sm:$0xf]
    %v2989 = vld [vmem:[#allocation13 + $0x1e4] sm:$0xf]
    %v2990 = vld [vmem:[#allocation13 + $0x1e8] sm:$0xf]
    %v2991 = vld [vmem:[#allocation13 + $0x1ec] sm:$0xf]
    %v2992 = vld [vmem:[#allocation13 + $0x1f0] sm:$0xf]
    %v2993 = vld [vmem:[#allocation13 + $0x1f4] sm:$0xf]
    %v2994 = vld [vmem:[#allocation13 + $0x1f8] sm:$0xf]
    %v2995 = vld [vmem:[#allocation13 + $0x1fc] sm:$0xf]
    %v2996 = vld [vmem:[%s9] sm:$0x1]
    %v2998 = vlaneseq
    %v2999 = vshrl.u32 %v2998, 7
    %v3000 = vsub.s32 0, %v2999
    %v3001 = vrot.slane %v2996, %v3000
    %v3131 = vunpack.c.l.b16 %v2868
    %v3132 = vunpack.c.l.b16 %v2869
    %v3133 = vunpack.c.l.b16 %v2870
    %v3134 = vunpack.c.l.b16 %v2871
    %v3135 = vunpack.c.l.b16 %v2872
    %v3136 = vunpack.c.l.b16 %v2873
    %v3137 = vunpack.c.l.b16 %v2874
    %v3138 = vunpack.c.l.b16 %v2875
    %v3139 = vunpack.c.l.b16 %v2876
    %v3140 = vunpack.c.l.b16 %v2877
    %v3141 = vunpack.c.l.b16 %v2878
    %v3142 = vunpack.c.l.b16 %v2879
    %v3143 = vunpack.c.l.b16 %v2880
    %v3144 = vunpack.c.l.b16 %v2881
    %v3145 = vunpack.c.l.b16 %v2882
    %v3146 = vunpack.c.l.b16 %v2883
    %v3147 = vunpack.c.l.b16 %v2884
    %v3148 = vunpack.c.l.b16 %v2885
    %v3149 = vunpack.c.l.b16 %v2886
    %v3150 = vunpack.c.l.b16 %v2887
    %v3151 = vunpack.c.l.b16 %v2888
    %v3152 = vunpack.c.l.b16 %v2889
    %v3153 = vunpack.c.l.b16 %v2890
    %v3154 = vunpack.c.l.b16 %v2891
    %v3155 = vunpack.c.l.b16 %v2892
    %v3156 = vunpack.c.l.b16 %v2893
    %v3157 = vunpack.c.l.b16 %v2894
    %v3158 = vunpack.c.l.b16 %v2895
    %v3159 = vunpack.c.l.b16 %v2896
    %v3160 = vunpack.c.l.b16 %v2897
    %v3161 = vunpack.c.l.b16 %v2898
    %v3162 = vunpack.c.l.b16 %v2899
    %v3163 = vunpack.c.l.b16 %v2900
    %v3164 = vunpack.c.l.b16 %v2901
    %v3165 = vunpack.c.l.b16 %v2902
    %v3166 = vunpack.c.l.b16 %v2903
    %v3167 = vunpack.c.l.b16 %v2904
    %v3168 = vunpack.c.l.b16 %v2905
    %v3169 = vunpack.c.l.b16 %v2906
    %v3170 = vunpack.c.l.b16 %v2907
    %v3171 = vunpack.c.l.b16 %v2908
    %v3172 = vunpack.c.l.b16 %v2909
    %v3173 = vunpack.c.l.b16 %v2910
    %v3174 = vunpack.c.l.b16 %v2911
    %v3175 = vunpack.c.l.b16 %v2912
    %v3176 = vunpack.c.l.b16 %v2913
    %v3177 = vunpack.c.l.b16 %v2914
    %v3178 = vunpack.c.l.b16 %v2915
    %v3179 = vunpack.c.l.b16 %v2916
    %v3180 = vunpack.c.l.b16 %v2917
    %v3181 = vunpack.c.l.b16 %v2918
    %v3182 = vunpack.c.l.b16 %v2919
    %v3183 = vunpack.c.l.b16 %v2920
    %v3184 = vunpack.c.l.b16 %v2921
    %v3185 = vunpack.c.l.b16 %v2922
    %v3186 = vunpack.c.l.b16 %v2923
    %v3187 = vunpack.c.l.b16 %v2924
    %v3188 = vunpack.c.l.b16 %v2925
    %v3189 = vunpack.c.l.b16 %v2926
    %v3190 = vunpack.c.l.b16 %v2927
    %v3191 = vunpack.c.l.b16 %v2928
    %v3192 = vunpack.c.l.b16 %v2929
    %v3193 = vunpack.c.l.b16 %v2930
    %v3194 = vunpack.c.l.b16 %v2931
    %v3195 = vunpack.c.l.b16 %v2932
    %v3196 = vunpack.c.l.b16 %v2933
    %v3197 = vunpack.c.l.b16 %v2934
    %v3198 = vunpack.c.l.b16 %v2935
    %v3199 = vunpack.c.l.b16 %v2936
    %v3200 = vunpack.c.l.b16 %v2937
    %v3201 = vunpack.c.l.b16 %v2938
    %v3202 = vunpack.c.l.b16 %v2939
    %v3203 = vunpack.c.l.b16 %v2940
    %v3204 = vunpack.c.l.b16 %v2941
    %v3205 = vunpack.c.l.b16 %v2942
    %v3206 = vunpack.c.l.b16 %v2943
    %v3207 = vunpack.c.l.b16 %v2944
    %v3208 = vunpack.c.l.b16 %v2945
    %v3209 = vunpack.c.l.b16 %v2946
    %v3210 = vunpack.c.l.b16 %v2947
    %v3211 = vunpack.c.l.b16 %v2948
    %v3212 = vunpack.c.l.b16 %v2949
    %v3213 = vunpack.c.l.b16 %v2950
    %v3214 = vunpack.c.l.b16 %v2951
    %v3215 = vunpack.c.l.b16 %v2952
    %v3216 = vunpack.c.l.b16 %v2953
    %v3217 = vunpack.c.l.b16 %v2954
    %v3218 = vunpack.c.l.b16 %v2955
    %v3219 = vunpack.c.l.b16 %v2956
    %v3220 = vunpack.c.l.b16 %v2957
    %v3221 = vunpack.c.l.b16 %v2958
    %v3222 = vunpack.c.l.b16 %v2959
    %v3223 = vunpack.c.l.b16 %v2960
    %v3224 = vunpack.c.l.b16 %v2961
    %v3225 = vunpack.c.l.b16 %v2962
    %v3226 = vunpack.c.l.b16 %v2963
    %v3227 = vunpack.c.l.b16 %v2964
    %v3228 = vunpack.c.l.b16 %v2965
    %v3229 = vunpack.c.l.b16 %v2966
    %v3230 = vunpack.c.l.b16 %v2967
    %v3231 = vunpack.c.l.b16 %v2968
    %v3232 = vunpack.c.l.b16 %v2969
    %v3233 = vunpack.c.l.b16 %v2970
    %v3234 = vunpack.c.l.b16 %v2971
    %v3235 = vunpack.c.l.b16 %v2972
    %v3236 = vunpack.c.l.b16 %v2973
    %v3237 = vunpack.c.l.b16 %v2974
    %v3238 = vunpack.c.l.b16 %v2975
    %v3239 = vunpack.c.l.b16 %v2976
    %v3240 = vunpack.c.l.b16 %v2977
    %v3241 = vunpack.c.l.b16 %v2978
    %v3242 = vunpack.c.l.b16 %v2979
    %v3243 = vunpack.c.l.b16 %v2980
    %v3244 = vunpack.c.l.b16 %v2981
    %v3245 = vunpack.c.l.b16 %v2982
    %v3246 = vunpack.c.l.b16 %v2983
    %v3247 = vunpack.c.l.b16 %v2984
    %v3248 = vunpack.c.l.b16 %v2985
    %v3249 = vunpack.c.l.b16 %v2986
    %v3250 = vunpack.c.l.b16 %v2987
    %v3251 = vunpack.c.l.b16 %v2988
    %v3252 = vunpack.c.l.b16 %v2989
    %v3253 = vunpack.c.l.b16 %v2990
    %v3254 = vunpack.c.l.b16 %v2991
    %v3255 = vunpack.c.l.b16 %v2992
    %v3256 = vunpack.c.l.b16 %v2993
    %v3257 = vunpack.c.l.b16 %v2994
    %v3258 = vunpack.c.l.b16 %v2995
    %v3259 = vpack.c.b16 %v3132, %v3131
    %v3260 = vpack.c.b16 %v3134, %v3133
    %v3261 = vpack.c.b16 %v3136, %v3135
    %v3262 = vpack.c.b16 %v3138, %v3137
    %v3263 = vpack.c.b16 %v3140, %v3139
    %v3264 = vpack.c.b16 %v3142, %v3141
    %v3265 = vpack.c.b16 %v3144, %v3143
    %v3266 = vpack.c.b16 %v3146, %v3145
    %v3267 = vpack.c.b16 %v3148, %v3147
    %v3268 = vpack.c.b16 %v3150, %v3149
    %v3269 = vpack.c.b16 %v3152, %v3151
    %v3270 = vpack.c.b16 %v3154, %v3153
    %v3271 = vpack.c.b16 %v3156, %v3155
    %v3272 = vpack.c.b16 %v3158, %v3157
    %v3273 = vpack.c.b16 %v3160, %v3159
    %v3274 = vpack.c.b16 %v3162, %v3161
    %v3275 = vpack.c.b16 %v3164, %v3163
    %v3276 = vpack.c.b16 %v3166, %v3165
    %v3277 = vpack.c.b16 %v3168, %v3167
    %v3278 = vpack.c.b16 %v3170, %v3169
    %v3279 = vpack.c.b16 %v3172, %v3171
    %v3280 = vpack.c.b16 %v3174, %v3173
    %v3281 = vpack.c.b16 %v3176, %v3175
    %v3282 = vpack.c.b16 %v3178, %v3177
    %v3283 = vpack.c.b16 %v3180, %v3179
    %v3284 = vpack.c.b16 %v3182, %v3181
    %v3285 = vpack.c.b16 %v3184, %v3183
    %v3286 = vpack.c.b16 %v3186, %v3185
    %v3287 = vpack.c.b16 %v3188, %v3187
    %v3288 = vpack.c.b16 %v3190, %v3189
    %v3289 = vpack.c.b16 %v3192, %v3191
    %v3290 = vpack.c.b16 %v3194, %v3193
    %v3291 = vpack.c.b16 %v3196, %v3195
    %v3292 = vpack.c.b16 %v3198, %v3197
    %v3293 = vpack.c.b16 %v3200, %v3199
    %v3294 = vpack.c.b16 %v3202, %v3201
    %v3295 = vpack.c.b16 %v3204, %v3203
    %v3296 = vpack.c.b16 %v3206, %v3205
    %v3297 = vpack.c.b16 %v3208, %v3207
    %v3298 = vpack.c.b16 %v3210, %v3209
    %v3299 = vpack.c.b16 %v3212, %v3211
    %v3300 = vpack.c.b16 %v3214, %v3213
    %v3301 = vpack.c.b16 %v3216, %v3215
    %v3302 = vpack.c.b16 %v3218, %v3217
    %v3303 = vpack.c.b16 %v3220, %v3219
    %v3304 = vpack.c.b16 %v3222, %v3221
    %v3305 = vpack.c.b16 %v3224, %v3223
    %v3306 = vpack.c.b16 %v3226, %v3225
    %v3307 = vpack.c.b16 %v3228, %v3227
    %v3308 = vpack.c.b16 %v3230, %v3229
    %v3309 = vpack.c.b16 %v3232, %v3231
    %v3310 = vpack.c.b16 %v3234, %v3233
    %v3311 = vpack.c.b16 %v3236, %v3235
    %v3312 = vpack.c.b16 %v3238, %v3237
    %v3313 = vpack.c.b16 %v3240, %v3239
    %v3314 = vpack.c.b16 %v3242, %v3241
    %v3315 = vpack.c.b16 %v3244, %v3243
    %v3316 = vpack.c.b16 %v3246, %v3245
    %v3317 = vpack.c.b16 %v3248, %v3247
    %v3318 = vpack.c.b16 %v3250, %v3249
    %v3319 = vpack.c.b16 %v3252, %v3251
    %v3320 = vpack.c.b16 %v3254, %v3253
    %v3321 = vpack.c.b16 %v3256, %v3255
    %v3322 = vpack.c.b16 %v3258, %v3257
    %3387 = vmatprep.subr.bf16.mxu0 0
    %3388 = vmatpush1.bf16.msra.mxu0 %v3266
    %3389 = vmatprep.subr.bf16.mxu0 0
    %3390 = vmatpush1.bf16.msra.mxu0 %v3265
    %3391 = vmatprep.subr.bf16.mxu0 0
    %3392 = vmatpush1.bf16.msra.mxu0 %v3264
    %3393 = vmatprep.subr.bf16.mxu0 0
    %3394 = vmatpush1.bf16.msra.mxu0 %v3263
    %3395 = vmatprep.subr.bf16.mxu0 0
    %3396 = vmatpush1.bf16.msra.mxu0 %v3262
    %3397 = vmatprep.subr.bf16.mxu0 0
    %3398 = vmatpush1.bf16.msra.mxu0 %v3261
    %3399 = vmatprep.subr.bf16.mxu0 0
    %3400 = vmatpush1.bf16.msra.mxu0 %v3260
    %3401 = vmatprep.subr.bf16.mxu0 0
    %3402 = vmatpush1.bf16.msra.mxu0 %v3259
    %3403 = vmatprep.subr.bf16.mxu0 0
    %3404 = vmatpush2.bf16.msra.mxu0 %v3274
    %3405 = vmatprep.subr.bf16.mxu0 0
    %3406 = vmatpush2.bf16.msra.mxu0 %v3273
    %3407 = vmatprep.subr.bf16.mxu0 0
    %3408 = vmatpush2.bf16.msra.mxu0 %v3272
    %3409 = vmatprep.subr.bf16.mxu0 0
    %3410 = vmatpush2.bf16.msra.mxu0 %v3271
    %3411 = vmatprep.subr.bf16.mxu0 0
    %3412 = vmatpush2.bf16.msra.mxu0 %v3270
    %3413 = vmatprep.subr.bf16.mxu0 0
    %3414 = vmatpush2.bf16.msra.mxu0 %v3269
    %3415 = vmatprep.subr.bf16.mxu0 0
    %3416 = vmatpush2.bf16.msra.mxu0 %v3268
    %3417 = vmatprep.subr.bf16.mxu0 0
    %3418 = vmatpush2.bf16.msra.mxu0 %v3267
    %3419 = vmatprep.mubr.bf16.mxu0 %v2861
    %3420 = vmatmul.mubr.bf16.gmra.mxu0 %v2860
    %v3421 = vpop.f32.mrf.mxu0
    %v3422 = vadd.f32 %v3001, %v3421
    %v3423 = vpop.f32.mrf.mxu0
    %v3424 = vpop.f32.mrf.mxu0
    %v3425 = vadd.f32 %v3001, %v3424
    %v3426 = vpop.f32.mrf.mxu0
    %3427 = vdwg.mxu0
    %3428 = vmatprep.subr.bf16.mxu0 0
    %3429 = vmatpush1.bf16.msra.mxu0 %v3282
    %3430 = vmatprep.subr.bf16.mxu0 0
    %3431 = vmatpush1.bf16.msra.mxu0 %v3281
    %3432 = vmatprep.subr.bf16.mxu0 0
    %3433 = vmatpush1.bf16.msra.mxu0 %v3280
    %3434 = vmatprep.subr.bf16.mxu0 0
    %3435 = vmatpush1.bf16.msra.mxu0 %v3279
    %3436 = vmatprep.subr.bf16.mxu0 0
    %3437 = vmatpush1.bf16.msra.mxu0 %v3278
    %3438 = vmatprep.subr.bf16.mxu0 0
    %3439 = vmatpush1.bf16.msra.mxu0 %v3277
    %3440 = vmatprep.subr.bf16.mxu0 0
    %3441 = vmatpush1.bf16.msra.mxu0 %v3276
    %3442 = vmatprep.subr.bf16.mxu0 0
    %3443 = vmatpush1.bf16.msra.mxu0 %v3275
    %3444 = vmatprep.subr.bf16.mxu0 0
    %3445 = vmatpush2.bf16.msra.mxu0 %v3290
    %3446 = vmatprep.subr.bf16.mxu0 0
    %3447 = vmatpush2.bf16.msra.mxu0 %v3289
    %3448 = vmatprep.subr.bf16.mxu0 0
    %3449 = vmatpush2.bf16.msra.mxu0 %v3288
    %3450 = vmatprep.subr.bf16.mxu0 0
    %3451 = vmatpush2.bf16.msra.mxu0 %v3287
    %3452 = vmatprep.subr.bf16.mxu0 0
    %3453 = vmatpush2.bf16.msra.mxu0 %v3286
    %3454 = vmatprep.subr.bf16.mxu0 0
    %3455 = vmatpush2.bf16.msra.mxu0 %v3285
    %3456 = vmatprep.subr.bf16.mxu0 0
    %3457 = vmatpush2.bf16.msra.mxu0 %v3284
    %3458 = vmatprep.subr.bf16.mxu0 0
    %3459 = vmatpush2.bf16.msra.mxu0 %v3283
    %3460 = vmatprep.mubr.bf16.mxu0 %v2863
    %3461 = vmatmul.mubr.bf16.gmra.mxu0 %v2862
    %v3462 = vpop.f32.mrf.mxu0
    %v3463 = vadd.f32 %v3422, %v3462
    %v3464 = vpop.f32.mrf.mxu0
    %v3465 = vpop.f32.mrf.mxu0
    %v3466 = vadd.f32 %v3425, %v3465
    %v3467 = vpop.f32.mrf.mxu0
    %3468 = vdwg.mxu0
    %3469 = vmatprep.subr.bf16.mxu0 0
    %3470 = vmatpush1.bf16.msra.mxu0 %v3298
    %3471 = vmatprep.subr.bf16.mxu0 0
    %3472 = vmatpush1.bf16.msra.mxu0 %v3297
    %3473 = vmatprep.subr.bf16.mxu0 0
    %3474 = vmatpush1.bf16.msra.mxu0 %v3296
    %3475 = vmatprep.subr.bf16.mxu0 0
    %3476 = vmatpush1.bf16.msra.mxu0 %v3295
    %3477 = vmatprep.subr.bf16.mxu0 0
    %3478 = vmatpush1.bf16.msra.mxu0 %v3294
    %3479 = vmatprep.subr.bf16.mxu0 0
    %3480 = vmatpush1.bf16.msra.mxu0 %v3293
    %3481 = vmatprep.subr.bf16.mxu0 0
    %3482 = vmatpush1.bf16.msra.mxu0 %v3292
    %3483 = vmatprep.subr.bf16.mxu0 0
    %3484 = vmatpush1.bf16.msra.mxu0 %v3291
    %3485 = vmatprep.subr.bf16.mxu0 0
    %3486 = vmatpush2.bf16.msra.mxu0 %v3306
    %3487 = vmatprep.subr.bf16.mxu0 0
    %3488 = vmatpush2.bf16.msra.mxu0 %v3305
    %3489 = vmatprep.subr.bf16.mxu0 0
    %3490 = vmatpush2.bf16.msra.mxu0 %v3304
    %3491 = vmatprep.subr.bf16.mxu0 0
    %3492 = vmatpush2.bf16.msra.mxu0 %v3303
    %3493 = vmatprep.subr.bf16.mxu0 0
    %3494 = vmatpush2.bf16.msra.mxu0 %v3302
    %3495 = vmatprep.subr.bf16.mxu0 0
    %3496 = vmatpush2.bf16.msra.mxu0 %v3301
    %3497 = vmatprep.subr.bf16.mxu0 0
    %3498 = vmatpush2.bf16.msra.mxu0 %v3300
    %3499 = vmatprep.subr.bf16.mxu0 0
    %3500 = vmatpush2.bf16.msra.mxu0 %v3299
    %3501 = vmatprep.mubr.bf16.mxu0 %v2865
    %3502 = vmatmul.mubr.bf16.gmra.mxu0 %v2864
    %v3503 = vpop.f32.mrf.mxu0
    %v3504 = vadd.f32 %v3463, %v3503
    %v3505 = vpop.f32.mrf.mxu0
    %v3506 = vpop.f32.mrf.mxu0
    %v3507 = vadd.f32 %v3466, %v3506
    %v3508 = vpop.f32.mrf.mxu0
    %3509 = vdwg.mxu0
    %3510 = vmatprep.subr.bf16.mxu0 0
    %3511 = vmatpush1.bf16.msra.mxu0 %v3314
    %3512 = vmatprep.subr.bf16.mxu0 0
    %3513 = vmatpush1.bf16.msra.mxu0 %v3313
    %3514 = vmatprep.subr.bf16.mxu0 0
    %3515 = vmatpush1.bf16.msra.mxu0 %v3312
    %3516 = vmatprep.subr.bf16.mxu0 0
    %3517 = vmatpush1.bf16.msra.mxu0 %v3311
    %3518 = vmatprep.subr.bf16.mxu0 0
    %3519 = vmatpush1.bf16.msra.mxu0 %v3310
    %3520 = vmatprep.subr.bf16.mxu0 0
    %3521 = vmatpush1.bf16.msra.mxu0 %v3309
    %3522 = vmatprep.subr.bf16.mxu0 0
    %3523 = vmatpush1.bf16.msra.mxu0 %v3308
    %3524 = vmatprep.subr.bf16.mxu0 0
    %3525 = vmatpush1.bf16.msra.mxu0 %v3307
    %3526 = vmatprep.subr.bf16.mxu0 0
    %3527 = vmatpush2.bf16.msra.mxu0 %v3322
    %3528 = vmatprep.subr.bf16.mxu0 0
    %3529 = vmatpush2.bf16.msra.mxu0 %v3321
    %3530 = vmatprep.subr.bf16.mxu0 0
    %3531 = vmatpush2.bf16.msra.mxu0 %v3320
    %3532 = vmatprep.subr.bf16.mxu0 0
    %3533 = vmatpush2.bf16.msra.mxu0 %v3319
    %3534 = vmatprep.subr.bf16.mxu0 0
    %3535 = vmatpush2.bf16.msra.mxu0 %v3318
    %3536 = vmatprep.subr.bf16.mxu0 0
    %3537 = vmatpush2.bf16.msra.mxu0 %v3317
    %3538 = vmatprep.subr.bf16.mxu0 0
    %3539 = vmatpush2.bf16.msra.mxu0 %v3316
    %3540 = vmatprep.subr.bf16.mxu0 0
    %3541 = vmatpush2.bf16.msra.mxu0 %v3315
    %3542 = vmatprep.mubr.bf16.mxu0 %v2867
    %3543 = vmatmul.mubr.bf16.gmra.mxu0 %v2866
    %v3544 = vpop.f32.mrf.mxu0
    %v3545 = vadd.f32 %v3504, %v3544
    %v3546 = vpop.f32.mrf.mxu0
    %v3547 = vpop.f32.mrf.mxu0
    %v3548 = vadd.f32 %v3507, %v3547
    %v3549 = vpop.f32.mrf.mxu0
    %3550 = vdwg.mxu0
    %v3551 = vmax.f32 %v3545, 0.0
    %v3552 = vmax.f32 %v3548, 0.0
    %v3553 = vld [vmem:[#allocation14] sm:$0xff]
    %v3554 = vld [vmem:[#allocation14 + $0x8] sm:$0xff]
    %v3555 = vld [vmem:[#allocation14 + $0x10] sm:$0xff]
    %v3556 = vld [vmem:[#allocation14 + $0x18] sm:$0xff]
    %v3557 = vld [vmem:[#allocation14 + $0x20] sm:$0xff]
    %v3558 = vld [vmem:[#allocation14 + $0x28] sm:$0xff]
    %v3559 = vld [vmem:[#allocation14 + $0x30] sm:$0xff]
    %v3560 = vld [vmem:[#allocation14 + $0x38] sm:$0xff]
    %v3561 = vld [vmem:[#allocation14 + $0x40] sm:$0xff]
    %v3562 = vld [vmem:[#allocation14 + $0x48] sm:$0xff]
    %v3563 = vld [vmem:[#allocation14 + $0x50] sm:$0xff]
    %v3564 = vld [vmem:[#allocation14 + $0x58] sm:$0xff]
    %v3565 = vld [vmem:[#allocation14 + $0x60] sm:$0xff]
    %v3566 = vld [vmem:[#allocation14 + $0x68] sm:$0xff]
    %v3567 = vld [vmem:[#allocation14 + $0x70] sm:$0xff]
    %v3568 = vld [vmem:[#allocation14 + $0x78] sm:$0xff]
    %v3569 = vld [vmem:[#allocation14 + $0x80] sm:$0xff]
    %v3570 = vld [vmem:[#allocation14 + $0x88] sm:$0xff]
    %v3571 = vld [vmem:[#allocation14 + $0x90] sm:$0xff]
    %v3572 = vld [vmem:[#allocation14 + $0x98] sm:$0xff]
    %v3573 = vld [vmem:[#allocation14 + $0xa0] sm:$0xff]
    %v3574 = vld [vmem:[#allocation14 + $0xa8] sm:$0xff]
    %v3575 = vld [vmem:[#allocation14 + $0xb0] sm:$0xff]
    %v3576 = vld [vmem:[#allocation14 + $0xb8] sm:$0xff]
    %v3577 = vld [vmem:[#allocation14 + $0xc0] sm:$0xff]
    %v3578 = vld [vmem:[#allocation14 + $0xc8] sm:$0xff]
    %v3579 = vld [vmem:[#allocation14 + $0xd0] sm:$0xff]
    %v3580 = vld [vmem:[#allocation14 + $0xd8] sm:$0xff]
    %v3581 = vld [vmem:[#allocation14 + $0xe0] sm:$0xff]
    %v3582 = vld [vmem:[#allocation14 + $0xe8] sm:$0xff]
    %v3583 = vld [vmem:[#allocation14 + $0xf0] sm:$0xff]
    %v3584 = vld [vmem:[#allocation14 + $0xf8] sm:$0xff]
    %3585 = vmatprep.subr.mxu0 0.0
    %3586 = vmatpush1.msra.mxu0 %v3568
    %3587 = vmatprep.subr.mxu0 0.0
    %3588 = vmatpush1.msra.mxu0 %v3567
    %3589 = vmatprep.subr.mxu0 0.0
    %3590 = vmatpush1.msra.mxu0 %v3566
    %3591 = vmatprep.subr.mxu0 0.0
    %3592 = vmatpush1.msra.mxu0 %v3565
    %3593 = vmatprep.subr.mxu0 0.0
    %3594 = vmatpush1.msra.mxu0 %v3564
    %3595 = vmatprep.subr.mxu0 0.0
    %3596 = vmatpush1.msra.mxu0 %v3563
    %3597 = vmatprep.subr.mxu0 0.0
    %3598 = vmatpush1.msra.mxu0 %v3562
    %3599 = vmatprep.subr.mxu0 0.0
    %3600 = vmatpush1.msra.mxu0 %v3561
    %3601 = vmatprep.subr.mxu0 0.0
    %3602 = vmatpush1.msra.mxu0 %v3560
    %3603 = vmatprep.subr.mxu0 0.0
    %3604 = vmatpush1.msra.mxu0 %v3559
    %3605 = vmatprep.subr.mxu0 0.0
    %3606 = vmatpush1.msra.mxu0 %v3558
    %3607 = vmatprep.subr.mxu0 0.0
    %3608 = vmatpush1.msra.mxu0 %v3557
    %3609 = vmatprep.subr.mxu0 0.0
    %3610 = vmatpush1.msra.mxu0 %v3556
    %3611 = vmatprep.subr.mxu0 0.0
    %3612 = vmatpush1.msra.mxu0 %v3555
    %3613 = vmatprep.subr.mxu0 0.0
    %3614 = vmatpush1.msra.mxu0 %v3554
    %3615 = vmatprep.subr.mxu0 0.0
    %3616 = vmatpush1.msra.mxu0 %v3553
    %3617 = vmatprep.subr.mxu0 0.0
    %3618 = vmatpush2.msra.mxu0 %v3584
    %3619 = vmatprep.subr.mxu0 0.0
    %3620 = vmatpush2.msra.mxu0 %v3583
    %3621 = vmatprep.subr.mxu0 0.0
    %3622 = vmatpush2.msra.mxu0 %v3582
    %3623 = vmatprep.subr.mxu0 0.0
    %3624 = vmatpush2.msra.mxu0 %v3581
    %3625 = vmatprep.subr.mxu0 0.0
    %3626 = vmatpush2.msra.mxu0 %v3580
    %3627 = vmatprep.subr.mxu0 0.0
    %3628 = vmatpush2.msra.mxu0 %v3579
    %3629 = vmatprep.subr.mxu0 0.0
    %3630 = vmatpush2.msra.mxu0 %v3578
    %3631 = vmatprep.subr.mxu0 0.0
    %3632 = vmatpush2.msra.mxu0 %v3577
    %3633 = vmatprep.subr.mxu0 0.0
    %3634 = vmatpush2.msra.mxu0 %v3576
    %3635 = vmatprep.subr.mxu0 0.0
    %3636 = vmatpush2.msra.mxu0 %v3575
    %3637 = vmatprep.subr.mxu0 0.0
    %3638 = vmatpush2.msra.mxu0 %v3574
    %3639 = vmatprep.subr.mxu0 0.0
    %3640 = vmatpush2.msra.mxu0 %v3573
    %3641 = vmatprep.subr.mxu0 0.0
    %3642 = vmatpush2.msra.mxu0 %v3572
    %3643 = vmatprep.subr.mxu0 0.0
    %3644 = vmatpush2.msra.mxu0 %v3571
    %3645 = vmatprep.subr.mxu0 0.0
    %3646 = vmatpush2.msra.mxu0 %v3570
    %3647 = vmatprep.subr.mxu0 0.0
    %3648 = vmatpush2.msra.mxu0 %v3569
    %3649 = vmatprep.mubr.f32.mxu0 %v3551
    %3650 = vmatmul.mubr.f32.gmra.mxu0 %v1850
    %v3651 = vpop.f32.mrf.mxu0
    %v3652 = vadd.f32 0.0, %v3651
    %v3653 = vpop.f32.mrf.mxu0
    %3654 = vmatprep.mubr.f32.mxu0 %v3552
    %3655 = vmatmul.mubr.f32.gmra.mxu0 %v1851
    %v3656 = vpop.f32.mrf.mxu0
    %v3657 = vadd.f32 0.0, %v3656
    %v3658 = vpop.f32.mrf.mxu0
    %3659 = vdwg.mxu0
    %v3660 = vlaneseq
    %v3661 = vand.u32 %v3660, 127
    %vm3662 = vcmp.lt.s32.totalorder %v3661, 3
    %v3663 = vsel %vm3662, %v3652, -1e+30
    %v3664 = vsel %vm3662, %v3657, -1e+30
    %3665 = vmax.xlane.f32.xlu0 %v3663
    %v3666 = vpop.xlane.xlu0 %3665
    %3667 = vmax.xlane.f32.xlu0 %v3664
    %v3668 = vpop.xlane.xlu0 %3667
    %v3669 = vsub.f32 %v3663, %v3666
    %v3670 = vsub.f32 %v3664, %v3668
    %v3671 = vmul.f32 %v3669, 1.442695
    %v3672 = vpow.pop %v3671
    %v3673 = vmul.f32 %v3670, 1.442695
    %v3674 = vpow.pop %v3673
    %3675 = vadd.xlane.f32.xlu0 %v3672
    %v3676 = vpop.xlane.xlu0 %3675
    %3677 = vadd.xlane.f32.xlu0 %v3674
    %v3678 = vpop.xlane.xlu0 %3677
    %v3679 = vrcp.pop %v3676
    %v3680 = vrcp.pop %v3678
    %v3681 = vmul.f32 %v3672, %v3679
    %v3682 = vmul.f32 %v3674, %v3680
    %3683 = vst [vmem:[#allocation16] sm:$0xff] %v3681
    %3684 = vst [vmem:[#allocation16 + $0x8] sm:$0xff] %v3682
    // Predicated region
    $region78: #{tpu_custom_call.1} parent=1 // pred_check
      _
    $region79: #{tpu_custom_call.1} parent=1 // pred_check_branch
      %3686 = sbr.rel (0) target = $region81
    $region80: #{tpu_custom_call.1} parent=1 // pred_region
      %s3688 = ssub.s32 256, 256
      %3689 = vsyncadd [#allocation4], %s3688
      %s3690 = sshll.u32 [#allocation16], 4
      %s3691 = int_to_ptr.vmem [resolvable:$true] %s3690
      %3696 = dma.vmem_to_hbm [thread:$0]  %s3691, 256, %s11, [#allocation4], 128, 128, 8
    $region81: #{tpu_custom_call.1} parent=1 // pred_fallthru
      _
    // Predicated region
    $region82: #{tpu_custom_call.1} parent=1 // pred_check
      _
    $region83: #{tpu_custom_call.1} parent=1 // pred_check_branch
      %3698 = sbr.rel (0) target = $region85
    $region84: #{tpu_custom_call.1} parent=1 // pred_region
      %3699 = dma.done [#allocation4], 256
    $region85: #{tpu_custom_call.1} parent=1 // pred_fallthru
      _
    %3700 = vsyncpa [#allocation3], 1
    %3701 = vsyncpa [#allocation6], 1
    %3702 = vsyncpa [#allocation9], 1
    %3703 = vsyncpa [#allocation12], 1
    %3704 = vsyncpa [#allocation15], 1
    %3705 = vsyncpa [#allocation4], 1

</llo_original>
